<compile_context>
chip_gen: v5e
topology: v5e:2x2
jax: 0.10.0
libtpu: 0.0.40
codegen_flags: <defaults>
</compile_context>

<pallas_src>
import functools

import numpy as np
import jax
import jax.numpy as jnp
from jax import lax
from jax.experimental import pallas as pl
from jax.experimental.pallas import tpu as pltpu


# ----------------------------------------------------------------------------
# In-kernel helpers.
# ----------------------------------------------------------------------------
def _strided_rows(ref, start, count):
    """count rows starting at `start` with sublane stride 2 (full lane width)."""
    if count == 1:
        return ref[pl.ds(start, 1), :]
    return ref[pl.ds(start, count, stride=2), :]


def _pool_scatter(src_ref, *, row_stride, h, w, bias_ref, leaky,
                  pad_dst=None, pad_wp=None, flat_dst=None):
    """2x2 max-pool of a conv map in VMEM, fused with folded BN bias and
    LeakyReLU, scattered into the next block's zero-padded layout and/or a
    dense (pos, C) output slab.

    src_ref rows are conv outputs in (y, x) order with row stride `row_stride`
    (w valid columns per conv row).  Four strided loads per output row read
    every conv row exactly once - no selector matmuls, no full-map reloads.
    """
    wp = w // 2
    bias = bias_ref[...]                       # (1, C) broadcasts over rows
    for i in range(h // 2):
        r0 = 2 * i * row_stride                # conv row y = 2i
        r1 = r0 + row_stride                   # conv row y = 2i + 1
        v = jnp.maximum(
            jnp.maximum(_strided_rows(src_ref, r0, wp),
                        _strided_rows(src_ref, r0 + 1, wp)),
            jnp.maximum(_strided_rows(src_ref, r1, wp),
                        _strided_rows(src_ref, r1 + 1, wp)))
        # Per-channel bias and LeakyReLU commute with the 2x2 max.
        v = v + bias
        if leaky:
            v = jnp.where(v >= 0.0, v, 0.1 * v)
        if pad_dst is not None:                # interior of next padded layout
            pad_dst[pl.ds((i + 1) * pad_wp + 1, wp), :] = v
        if flat_dst is not None:               # dense (pos, C) output slab
            flat_dst[pl.ds(i * wp, wp), :] = v


def _conv_padded(a_ref, w_ref, *, h, w):
    """3x3 SAME conv on a flat zero-padded map a_ref of shape ((h+2)*(w+2), Cin).
    The 9 taps are contiguous row slices -> 9 accumulated MXU matmuls.
    Returns (h*(w+2) - 2, Cout); rows with x >= w are finite junk, never read.
    """
    cin = a_ref.shape[1]
    wp = w + 2
    l = h * wp - 2
    acc = jnp.dot(a_ref[pl.ds(0, l), :], w_ref[pl.ds(0, cin), :],
                  preferred_element_type=jnp.float32)
    for t in range(1, 9):
        dy, dx = divmod(t, 3)
        acc = acc + jnp.dot(a_ref[pl.ds(dy * wp + dx, l), :],
                            w_ref[pl.ds(t * cin, cin), :],
                            preferred_element_type=jnp.float32)
    return acc


# ----------------------------------------------------------------------------
# Fused per-image kernel: all 4 blocks, activations resident in VMEM scratch.
# ----------------------------------------------------------------------------
def _r2d2_kernel(x1_ref, w1_ref, b1_ref, w2_ref, b2_ref, w3_ref, b3_ref,
                 w4_ref, b4_ref,
                 o3_ref, o4_ref,
                 yc1, a2, yc2, a3, yc3, a4, yc4, *, s):
    # Re-create the 1-pixel zero border every step (scratch is per-core, tiny).
    a2[...] = jnp.zeros_like(a2)
    a3[...] = jnp.zeros_like(a3)
    a4[...] = jnp.zeros_like(a4)

    # ---- block 1: host im2col'd input -> single K-packed matmul ----
    yc1[...] = jnp.dot(x1_ref[...], w1_ref[...],
                       preferred_element_type=jnp.float32)
    _pool_scatter(yc1, row_stride=s, h=s, w=s, bias_ref=b1_ref, leaky=True,
                  pad_dst=a2, pad_wp=s // 2 + 2)

    # ---- block 2 ----
    yc2[...] = _conv_padded(a2, w2_ref, h=s // 2, w=s // 2)
    _pool_scatter(yc2, row_stride=s // 2 + 2, h=s // 2, w=s // 2,
                  bias_ref=b2_ref, leaky=True, pad_dst=a3, pad_wp=s // 4 + 2)

    # ---- block 3 ----
    # TODO(synk): Dropout(p=0.1) on block 3 is train-only; identity at inference.
    yc3[...] = _conv_padded(a3, w3_ref, h=s // 4, w=s // 4)
    _pool_scatter(yc3, row_stride=s // 4 + 2, h=s // 4, w=s // 4,
                  bias_ref=b3_ref, leaky=True, pad_dst=a4, pad_wp=s // 8 + 2,
                  flat_dst=o3_ref)

    # ---- block 4 (no activation) ----
    # TODO(synk): Dropout(p=0.3) on block 4 is train-only; identity at inference.
    yc4[...] = _conv_padded(a4, w4_ref, h=s // 8, w=s // 8)
    _pool_scatter(yc4, row_stride=s // 8 + 2, h=s // 8, w=s // 8,
                  bias_ref=b4_ref, leaky=False, flat_dst=o4_ref)


# ----------------------------------------------------------------------------
# Public forward: PyTorch-style NCHW input -> (N, h3*(S/8)^2 + z*(S/16)^2).
# ----------------------------------------------------------------------------
def r2d2_embedding(x_nchw, params):
    n, c_in, s, s_w = x_nchw.shape
    assert s == s_w and s % 16 == 0, "spatial size must be divisible by 16"

    # --- host prep: tiny layout work + BN-scale folding (no dense selectors) ---
    x = jnp.transpose(x_nchw, (0, 2, 3, 1)).astype(jnp.float32)        # NHWC
    xp = jnp.pad(x, ((0, 0), (1, 1), (1, 1), (0, 0)))
    # Block-1 im2col on the host (Cin is tiny): K packs 9*Cin -> >=32 lanes.
    cols = [xp[:, dy:dy + s, dx:dx + s, :] for dy in range(3) for dx in range(3)]
    k1 = 9 * c_in
    k1p = max(32, ((k1 + 7) // 8) * 8)
    x1 = jnp.concatenate(cols, axis=-1).reshape(n, s * s, k1)
    if k1p > k1:
        x1 = jnp.pad(x1, ((0, 0), (0, 0), (0, k1p - k1)))

    # Fold BN scale into the conv weights; (9*Cin, Cout) tap-major layout.
    ws, bs = [], []
    for w_hwio, scale, bias in params:
        co = w_hwio.shape[3]
        ws.append((w_hwio * scale).reshape(-1, co).astype(jnp.float32))
        bs.append(bias.reshape(1, co).astype(jnp.float32))
    if k1p > k1:
        ws[0] = jnp.pad(ws[0], ((0, k1p - k1), (0, 0)))
    h1, h2, h3, z = (w.shape[1] for w in ws)
    hp3, hp4 = s // 8, s // 16

    # Per-image scratch (all activations stay in VMEM).
    scratch_dims = [
        (s * s, h1),                                  # yc1: block-1 conv map
        ((s // 2 + 2) * (s // 2 + 2), h1),            # a2 : block-2 padded input
        ((s // 2) * (s // 2 + 2) - 2, h2),            # yc2
        ((s // 4 + 2) * (s // 4 + 2), h2),            # a3
        ((s // 4) * (s // 4 + 2) - 2, h3),            # yc3
        ((s // 8 + 2) * (s // 8 + 2), h3),            # a4
        ((s // 8) * (s // 8 + 2) - 2, z),             # yc4
    ]
    scratch = [pltpu.VMEM(d, jnp.float32) for d in scratch_dims]

    # VMEM budget derived from actual buffer sizes (2x for double-buffering,
    # 2x headroom for compiler temporaries); stays well under v7x's 64 MiB.
    def _bytes(shape):
        return int(np.prod(shape)) * 4
    weight_arrs = [ws[0], bs[0], ws[1], bs[1], ws[2], bs[2], ws[3], bs[3]]
    vmem_est = (2 * _bytes((s * s, k1p))
                + 2 * sum(_bytes(a.shape) for a in weight_arrs)
                + 2 * (_bytes((hp3 * hp3, h3)) + _bytes((hp4 * hp4, z)))
                + sum(_bytes(d) for d in scratch_dims))
    vmem_limit = int(min(max(2 * vmem_est, 16 * 2 ** 20), 48 * 2 ** 20))

    def _bcast(shape):
        nd = len(shape)
        return pl.BlockSpec(shape, lambda b, _nd=nd: (0,) * _nd)

    in_specs = [pl.BlockSpec((None, s * s, k1p), lambda b: (b, 0, 0)),
                _bcast(ws[0].shape), _bcast(bs[0].shape),
                _bcast(ws[1].shape), _bcast(bs[1].shape),
                _bcast(ws[2].shape), _bcast(bs[2].shape),
                _bcast(ws[3].shape), _bcast(bs[3].shape)]
    out_specs = [pl.BlockSpec((None, hp3 * hp3, h3), lambda b: (b, 0, 0)),
                 pl.BlockSpec((None, hp4 * hp4, z), lambda b: (b, 0, 0))]

    o3, o4 = pl.pallas_call(
        functools.partial(_r2d2_kernel, s=s),
        out_shape=(jax.ShapeDtypeStruct((n, hp3 * hp3, h3), jnp.float32),
                   jax.ShapeDtypeStruct((n, hp4 * hp4, z), jnp.float32)),
        grid_spec=pltpu.PrefetchScalarGridSpec(
            num_scalar_prefetch=0,
            grid=(n,),
            in_specs=in_specs,
            out_specs=out_specs,
            scratch_shapes=scratch),
        compiler_params=pltpu.CompilerParams(
            dimension_semantics=("parallel",),
            vmem_limit_bytes=vmem_limit),
    )(x1, ws[0], bs[0], ws[1], bs[1], ws[2], bs[2], ws[3], bs[3])

    # Tiny final re-layout: kernel emits lane-dense (pos, C) slabs; torch's
    # b.view(N, -1) on NCHW is channel-major -> one small transpose + concat.
    f3 = jnp.transpose(o3, (0, 2, 1)).reshape(n, -1)
    f4 = jnp.transpose(o4, (0, 2, 1)).reshape(n, -1)
    return jnp.concatenate([f3, f4], axis=1)


# ----------------------------------------------------------------------------
# Parameter init (deterministic, synthetic).  Conv bias + BatchNorm (eval mode,
# running stats) folded into per-channel (scale, bias).
# ----------------------------------------------------------------------------
def init_block_params(key, cin, cout):
    kw, kb, kg, kbe, km, kv = jax.random.split(key, 6)
    w = 0.05 * jax.random.normal(kw, (3, 3, cin, cout), jnp.float32)   # HWIO
    conv_b = 0.05 * jax.random.normal(kb, (cout,), jnp.float32)
    gamma = 1.0 + 0.1 * jax.random.normal(kg, (cout,), jnp.float32)
    beta = 0.1 * jax.random.normal(kbe, (cout,), jnp.float32)
    r_mean = 0.1 * jax.random.normal(km, (cout,), jnp.float32)
    r_var = jnp.abs(1.0 + 0.1 * jax.random.normal(kv, (cout,), jnp.float32))
    eps = 1e-5
    scale = gamma / jnp.sqrt(r_var + eps)
    bias = (conv_b - r_mean) * scale + beta
    return w, scale, bias


# ----------------------------------------------------------------------------
# Pure-JAX reference (lax conv / reduce_window) for validation.
# ----------------------------------------------------------------------------
def _ref_block(x_nhwc, w_hwio, scale, bias, *, leaky):
    y = lax.conv_general_dilated(
        x_nhwc, w_hwio, (1, 1), [(1, 1), (1, 1)],
        dimension_numbers=("NHWC", "HWIO", "NHWC"))
    y = y * scale + bias
    y = lax.reduce_window(y, -jnp.inf, lax.max,
                          (1, 2, 2, 1), (1, 2, 2, 1), "VALID")
    if leaky:
        y = jnp.where(y >= 0.0, y, 0.1 * y)
    return y


def r2d2_embedding_ref(x_nchw, params):
    x = jnp.transpose(x_nchw, (0, 2, 3, 1)).astype(jnp.float32)
    b1 = _ref_block(x, *params[0], leaky=True)
    b2 = _ref_block(b1, *params[1], leaky=True)
    b3 = _ref_block(b2, *params[2], leaky=True)
    b4 = _ref_block(b3, *params[3], leaky=False)
    n = x_nchw.shape[0]
    f3 = jnp.transpose(b3, (0, 3, 1, 2)).reshape(n, -1)
    f4 = jnp.transpose(b4, (0, 3, 1, 2)).reshape(n, -1)
    return jnp.concatenate([f3, f4], axis=1)


if __name__ == "__main__":
    key = jax.random.PRNGKey(0)
    kx, kp1, kp2, kp3, kp4 = jax.random.split(key, 5)

    # Small, module-consistent shapes: x_dim=3, scaled-down hidden dims,
    # 16x16 spatial (4 maxpools -> b3: 2x2, b4: 1x1), batch=2.
    N, x_dim, S = 2, 3, 16
    h1, h2, h3, z = 32, 64, 128, 128

    x = jax.random.normal(kx, (N, x_dim, S, S), jnp.float32)   # NCHW, like torch
    params = [
        init_block_params(kp1, x_dim, h1),
        init_block_params(kp2, h1, h2),
        init_block_params(kp3, h2, h3),
        init_block_params(kp4, h3, z),
    ]

    fwd = jax.jit(r2d2_embedding)
    out = jax.block_until_ready(fwd(x, params))
    ref = jax.block_until_ready(jax.jit(r2d2_embedding_ref)(x, params))

    expected_dim = h3 * (S // 8) ** 2 + z * (S // 16) ** 2
    assert out.shape == (N, expected_dim), out.shape
    assert out.dtype == jnp.float32
    max_err = float(jnp.max(jnp.abs(out - ref)))
    assert max_err < 1e-3, f"mismatch vs reference: {max_err}"

    print("KERNEL_OK")
</pallas_src>

<mosaic_0001>
module attributes {stable_mosaic.version = 11 : i64} {
  func.func @_r2d2_kernel(%arg0: i32, %arg1: memref<1x256x32xf32, #tpu.memory_space<vmem>>, %arg2: memref<32x32xf32, #tpu.memory_space<vmem>>, %arg3: memref<1x32xf32, #tpu.memory_space<vmem>>, %arg4: memref<288x64xf32, #tpu.memory_space<vmem>>, %arg5: memref<1x64xf32, #tpu.memory_space<vmem>>, %arg6: memref<576x128xf32, #tpu.memory_space<vmem>>, %arg7: memref<1x128xf32, #tpu.memory_space<vmem>>, %arg8: memref<1152x128xf32, #tpu.memory_space<vmem>>, %arg9: memref<1x128xf32, #tpu.memory_space<vmem>>, %arg10: memref<1x4x128xf32, #tpu.memory_space<vmem>>, %arg11: memref<1x1x128xf32, #tpu.memory_space<vmem>>, %arg12: memref<256x32xf32, #tpu.memory_space<vmem>>, %arg13: memref<100x32xf32, #tpu.memory_space<vmem>>, %arg14: memref<78x64xf32, #tpu.memory_space<vmem>>, %arg15: memref<36x64xf32, #tpu.memory_space<vmem>>, %arg16: memref<22x128xf32, #tpu.memory_space<vmem>>, %arg17: memref<16x128xf32, #tpu.memory_space<vmem>>, %arg18: memref<6x128xf32, #tpu.memory_space<vmem>>) attributes {dimension_semantics = [#tpu.dimension_semantics<parallel>], iteration_bounds = array<i64: 2>, scalar_prefetch = 0 : i64, scratch_operands = 7 : i64, tpu.core_type = #tpu.core_type<tc>, window_params = [{transform_indices = @transform_0, window_bounds = array<i64: 1, 256, 32>}, {pipeline_mode = #tpu.pipeline_mode<synchronous>, transform_indices = @transform_1, window_bounds = array<i64: 32, 32>}, {pipeline_mode = #tpu.pipeline_mode<synchronous>, transform_indices = @transform_2, window_bounds = array<i64: 1, 32>}, {pipeline_mode = #tpu.pipeline_mode<synchronous>, transform_indices = @transform_3, window_bounds = array<i64: 288, 64>}, {pipeline_mode = #tpu.pipeline_mode<synchronous>, transform_indices = @transform_4, window_bounds = array<i64: 1, 64>}, {pipeline_mode = #tpu.pipeline_mode<synchronous>, transform_indices = @transform_5, window_bounds = array<i64: 576, 128>}, {pipeline_mode = #tpu.pipeline_mode<synchronous>, transform_indices = @transform_6, window_bounds = array<i64: 1, 128>}, {pipeline_mode = #tpu.pipeline_mode<synchronous>, transform_indices = @transform_7, window_bounds = array<i64: 1152, 128>}, {pipeline_mode = #tpu.pipeline_mode<synchronous>, transform_indices = @transform_8, window_bounds = array<i64: 1, 128>}, {transform_indices = @transform_9, window_bounds = array<i64: 1, 4, 128>}, {transform_indices = @transform_10, window_bounds = array<i64: 1, 1, 128>}]} {
    %cst = arith.constant 0.000000e+00 : f32
    %0 = vector.broadcast %cst : f32 to vector<100x32xf32>
    %c0 = arith.constant 0 : index
    %c0_0 = arith.constant 0 : index
    %1 = vector.load %arg13[%c0, %c0_0] : memref<100x32xf32, #tpu.memory_space<vmem>>, vector<100x32xf32>
    tpu.vector_store %arg13[%c0, %c0_0], %0 {strides = array<i32>} : memref<100x32xf32, #tpu.memory_space<vmem>>, vector<100x32xf32>,
    %cst_1 = arith.constant 0.000000e+00 : f32
    %2 = vector.broadcast %cst_1 : f32 to vector<36x64xf32>
    %c0_2 = arith.constant 0 : index
    %c0_3 = arith.constant 0 : index
    %3 = vector.load %arg15[%c0_2, %c0_3] : memref<36x64xf32, #tpu.memory_space<vmem>>, vector<36x64xf32>
    tpu.vector_store %arg15[%c0_2, %c0_3], %2 {strides = array<i32>} : memref<36x64xf32, #tpu.memory_space<vmem>>, vector<36x64xf32>,
    %cst_4 = arith.constant 0.000000e+00 : f32
    %4 = vector.broadcast %cst_4 : f32 to vector<16x128xf32>
    %c0_5 = arith.constant 0 : index
    %c0_6 = arith.constant 0 : index
    %5 = vector.load %arg17[%c0_5, %c0_6] : memref<16x128xf32, #tpu.memory_space<vmem>>, vector<16x128xf32>
    tpu.vector_store %arg17[%c0_5, %c0_6], %4 {strides = array<i32>} : memref<16x128xf32, #tpu.memory_space<vmem>>, vector<16x128xf32>,
    %c0_7 = arith.constant 0 : index
    %c0_8 = arith.constant 0 : index
    %c0_9 = arith.constant 0 : index
    %6 = vector.load %arg1[%c0_7, %c0_8, %c0_9] : memref<1x256x32xf32, #tpu.memory_space<vmem>>, vector<1x256x32xf32>
    %7 = vector.shape_cast %6 : vector<1x256x32xf32> to vector<256x32xf32>
    %c0_10 = arith.constant 0 : index
    %c0_11 = arith.constant 0 : index
    %8 = vector.load %arg2[%c0_10, %c0_11] : memref<32x32xf32, #tpu.memory_space<vmem>>, vector<32x32xf32>
    %cst_12 = arith.constant dense<0.000000e+00> : vector<256x32xf32>
    %9 = tpu.matmul %7, %8, %cst_12 {dimension_numbers = #tpu.dot_dimension_numbers<[1], [0], [0], [1], [0, 0, 1, 1], [], []>} : vector<256x32xf32>, vector<32x32xf32>, vector<256x32xf32> -> vector<256x32xf32>
    %c0_13 = arith.constant 0 : index
    %c0_14 = arith.constant 0 : index
    %10 = vector.load %arg12[%c0_13, %c0_14] : memref<256x32xf32, #tpu.memory_space<vmem>>, vector<256x32xf32>
    tpu.vector_store %arg12[%c0_13, %c0_14], %9 {strides = array<i32>} : memref<256x32xf32, #tpu.memory_space<vmem>>, vector<256x32xf32>,
    %c0_15 = arith.constant 0 : index
    %c0_16 = arith.constant 0 : index
    %11 = vector.load %arg3[%c0_15, %c0_16] : memref<1x32xf32, #tpu.memory_space<vmem>>, vector<1x32xf32>
    %c0_17 = arith.constant 0 : index
    %c0_18 = arith.constant 0 : index
    %12 = tpu.strided_load %arg12[%c0_17, %c0_18] {strides = array<i32: 2, 1>} : memref<256x32xf32, #tpu.memory_space<vmem>>, vector<8x32xf32>
    %c1 = arith.constant 1 : index
    %c0_19 = arith.constant 0 : index
    %13 = tpu.strided_load %arg12[%c1, %c0_19] {strides = array<i32: 2, 1>} : memref<256x32xf32, #tpu.memory_space<vmem>>, vector<8x32xf32>
    %14 = arith.maximumf %12, %13 : vector<8x32xf32>
    %c16 = arith.constant 16 : index
    %c0_20 = arith.constant 0 : index
    %15 = tpu.strided_load %arg12[%c16, %c0_20] {strides = array<i32: 2, 1>} : memref<256x32xf32, #tpu.memory_space<vmem>>, vector<8x32xf32>
    %c17 = arith.constant 17 : index
    %c0_21 = arith.constant 0 : index
    %16 = tpu.strided_load %arg12[%c17, %c0_21] {strides = array<i32: 2, 1>} : memref<256x32xf32, #tpu.memory_space<vmem>>, vector<8x32xf32>
    %17 = arith.maximumf %15, %16 : vector<8x32xf32>
    %18 = arith.maximumf %14, %17 : vector<8x32xf32>
    %19 = vector.broadcast %11 : vector<1x32xf32> to vector<8x32xf32>
    %20 = arith.addf %18, %19 : vector<8x32xf32>
    %cst_22 = arith.constant 0.000000e+00 : f32
    %21 = vector.broadcast %cst_22 : f32 to vector<8x32xf32>
    %22 = arith.cmpf oge, %20, %21 : vector<8x32xf32>
    %cst_23 = arith.constant 1.000000e-01 : f32
    %23 = vector.broadcast %cst_23 : f32 to vector<8x32xf32>
    %24 = arith.mulf %23, %20 : vector<8x32xf32>
    %25 = arith.select %22, %20, %24 : vector<8x32xi1>, vector<8x32xf32>
    %c11 = arith.constant 11 : index
    %c0_24 = arith.constant 0 : index
    %26 = vector.load %arg13[%c11, %c0_24] : memref<100x32xf32, #tpu.memory_space<vmem>>, vector<8x32xf32>
    tpu.vector_store %arg13[%c11, %c0_24], %25 {strides = array<i32>} : memref<100x32xf32, #tpu.memory_space<vmem>>, vector<8x32xf32>,
    %c32 = arith.constant 32 : index
    %c0_25 = arith.constant 0 : index
    %27 = tpu.strided_load %arg12[%c32, %c0_25] {strides = array<i32: 2, 1>} : memref<256x32xf32, #tpu.memory_space<vmem>>, vector<8x32xf32>
    %c33 = arith.constant 33 : index
    %c0_26 = arith.constant 0 : index
    %28 = tpu.strided_load %arg12[%c33, %c0_26] {strides = array<i32: 2, 1>} : memref<256x32xf32, #tpu.memory_space<vmem>>, vector<8x32xf32>
    %29 = arith.maximumf %27, %28 : vector<8x32xf32>
    %c48 = arith.constant 48 : index
    %c0_27 = arith.constant 0 : index
    %30 = tpu.strided_load %arg12[%c48, %c0_27] {strides = array<i32: 2, 1>} : memref<256x32xf32, #tpu.memory_space<vmem>>, vector<8x32xf32>
    %c49 = arith.constant 49 : index
    %c0_28 = arith.constant 0 : index
    %31 = tpu.strided_load %arg12[%c49, %c0_28] {strides = array<i32: 2, 1>} : memref<256x32xf32, #tpu.memory_space<vmem>>, vector<8x32xf32>
    %32 = arith.maximumf %30, %31 : vector<8x32xf32>
    %33 = arith.maximumf %29, %32 : vector<8x32xf32>
    %34 = vector.broadcast %11 : vector<1x32xf32> to vector<8x32xf32>
    %35 = arith.addf %33, %34 : vector<8x32xf32>
    %cst_29 = arith.constant 0.000000e+00 : f32
    %36 = vector.broadcast %cst_29 : f32 to vector<8x32xf32>
    %37 = arith.cmpf oge, %35, %36 : vector<8x32xf32>
    %cst_30 = arith.constant 1.000000e-01 : f32
    %38 = vector.broadcast %cst_30 : f32 to vector<8x32xf32>
    %39 = arith.mulf %38, %35 : vector<8x32xf32>
    %40 = arith.select %37, %35, %39 : vector<8x32xi1>, vector<8x32xf32>
    %c21 = arith.constant 21 : index
    %c0_31 = arith.constant 0 : index
    %41 = vector.load %arg13[%c21, %c0_31] : memref<100x32xf32, #tpu.memory_space<vmem>>, vector<8x32xf32>
    tpu.vector_store %arg13[%c21, %c0_31], %40 {strides = array<i32>} : memref<100x32xf32, #tpu.memory_space<vmem>>, vector<8x32xf32>,
    %c64 = arith.constant 64 : index
    %c0_32 = arith.constant 0 : index
    %42 = tpu.strided_load %arg12[%c64, %c0_32] {strides = array<i32: 2, 1>} : memref<256x32xf32, #tpu.memory_space<vmem>>, vector<8x32xf32>
    %c65 = arith.constant 65 : index
    %c0_33 = arith.constant 0 : index
    %43 = tpu.strided_load %arg12[%c65, %c0_33] {strides = array<i32: 2, 1>} : memref<256x32xf32, #tpu.memory_space<vmem>>, vector<8x32xf32>
    %44 = arith.maximumf %42, %43 : vector<8x32xf32>
    %c80 = arith.constant 80 : index
    %c0_34 = arith.constant 0 : index
    %45 = tpu.strided_load %arg12[%c80, %c0_34] {strides = array<i32: 2, 1>} : memref<256x32xf32, #tpu.memory_space<vmem>>, vector<8x32xf32>
    %c81 = arith.constant 81 : index
    %c0_35 = arith.constant 0 : index
    %46 = tpu.strided_load %arg12[%c81, %c0_35] {strides = array<i32: 2, 1>} : memref<256x32xf32, #tpu.memory_space<vmem>>, vector<8x32xf32>
    %47 = arith.maximumf %45, %46 : vector<8x32xf32>
    %48 = arith.maximumf %44, %47 : vector<8x32xf32>
    %49 = vector.broadcast %11 : vector<1x32xf32> to vector<8x32xf32>
    %50 = arith.addf %48, %49 : vector<8x32xf32>
    %cst_36 = arith.constant 0.000000e+00 : f32
    %51 = vector.broadcast %cst_36 : f32 to vector<8x32xf32>
    %52 = arith.cmpf oge, %50, %51 : vector<8x32xf32>
    %cst_37 = arith.constant 1.000000e-01 : f32
    %53 = vector.broadcast %cst_37 : f32 to vector<8x32xf32>
    %54 = arith.mulf %53, %50 : vector<8x32xf32>
    %55 = arith.select %52, %50, %54 : vector<8x32xi1>, vector<8x32xf32>
    %c31 = arith.constant 31 : index
    %c0_38 = arith.constant 0 : index
    %56 = vector.load %arg13[%c31, %c0_38] : memref<100x32xf32, #tpu.memory_space<vmem>>, vector<8x32xf32>
    tpu.vector_store %arg13[%c31, %c0_38], %55 {strides = array<i32>} : memref<100x32xf32, #tpu.memory_space<vmem>>, vector<8x32xf32>,
    %c96 = arith.constant 96 : index
    %c0_39 = arith.constant 0 : index
    %57 = tpu.strided_load %arg12[%c96, %c0_39] {strides = array<i32: 2, 1>} : memref<256x32xf32, #tpu.memory_space<vmem>>, vector<8x32xf32>
    %c97 = arith.constant 97 : index
    %c0_40 = arith.constant 0 : index
    %58 = tpu.strided_load %arg12[%c97, %c0_40] {strides = array<i32: 2, 1>} : memref<256x32xf32, #tpu.memory_space<vmem>>, vector<8x32xf32>
    %59 = arith.maximumf %57, %58 : vector<8x32xf32>
    %c112 = arith.constant 112 : index
    %c0_41 = arith.constant 0 : index
    %60 = tpu.strided_load %arg12[%c112, %c0_41] {strides = array<i32: 2, 1>} : memref<256x32xf32, #tpu.memory_space<vmem>>, vector<8x32xf32>
    %c113 = arith.constant 113 : index
    %c0_42 = arith.constant 0 : index
    %61 = tpu.strided_load %arg12[%c113, %c0_42] {strides = array<i32: 2, 1>} : memref<256x32xf32, #tpu.memory_space<vmem>>, vector<8x32xf32>
    %62 = arith.maximumf %60, %61 : vector<8x32xf32>
    %63 = arith.maximumf %59, %62 : vector<8x32xf32>
    %64 = vector.broadcast %11 : vector<1x32xf32> to vector<8x32xf32>
    %65 = arith.addf %63, %64 : vector<8x32xf32>
    %cst_43 = arith.constant 0.000000e+00 : f32
    %66 = vector.broadcast %cst_43 : f32 to vector<8x32xf32>
    %67 = arith.cmpf oge, %65, %66 : vector<8x32xf32>
    %cst_44 = arith.constant 1.000000e-01 : f32
    %68 = vector.broadcast %cst_44 : f32 to vector<8x32xf32>
    %69 = arith.mulf %68, %65 : vector<8x32xf32>
    %70 = arith.select %67, %65, %69 : vector<8x32xi1>, vector<8x32xf32>
    %c41 = arith.constant 41 : index
    %c0_45 = arith.constant 0 : index
    %71 = vector.load %arg13[%c41, %c0_45] : memref<100x32xf32, #tpu.memory_space<vmem>>, vector<8x32xf32>
    tpu.vector_store %arg13[%c41, %c0_45], %70 {strides = array<i32>} : memref<100x32xf32, #tpu.memory_space<vmem>>, vector<8x32xf32>,
    %c128 = arith.constant 128 : index
    %c0_46 = arith.constant 0 : index
    %72 = tpu.strided_load %arg12[%c128, %c0_46] {strides = array<i32: 2, 1>} : memref<256x32xf32, #tpu.memory_space<vmem>>, vector<8x32xf32>
    %c129 = arith.constant 129 : index
    %c0_47 = arith.constant 0 : index
    %73 = tpu.strided_load %arg12[%c129, %c0_47] {strides = array<i32: 2, 1>} : memref<256x32xf32, #tpu.memory_space<vmem>>, vector<8x32xf32>
    %74 = arith.maximumf %72, %73 : vector<8x32xf32>
    %c144 = arith.constant 144 : index
    %c0_48 = arith.constant 0 : index
    %75 = tpu.strided_load %arg12[%c144, %c0_48] {strides = array<i32: 2, 1>} : memref<256x32xf32, #tpu.memory_space<vmem>>, vector<8x32xf32>
    %c145 = arith.constant 145 : index
    %c0_49 = arith.constant 0 : index
    %76 = tpu.strided_load %arg12[%c145, %c0_49] {strides = array<i32: 2, 1>} : memref<256x32xf32, #tpu.memory_space<vmem>>, vector<8x32xf32>
    %77 = arith.maximumf %75, %76 : vector<8x32xf32>
    %78 = arith.maximumf %74, %77 : vector<8x32xf32>
    %79 = vector.broadcast %11 : vector<1x32xf32> to vector<8x32xf32>
    %80 = arith.addf %78, %79 : vector<8x32xf32>
    %cst_50 = arith.constant 0.000000e+00 : f32
    %81 = vector.broadcast %cst_50 : f32 to vector<8x32xf32>
    %82 = arith.cmpf oge, %80, %81 : vector<8x32xf32>
    %cst_51 = arith.constant 1.000000e-01 : f32
    %83 = vector.broadcast %cst_51 : f32 to vector<8x32xf32>
    %84 = arith.mulf %83, %80 : vector<8x32xf32>
    %85 = arith.select %82, %80, %84 : vector<8x32xi1>, vector<8x32xf32>
    %c51 = arith.constant 51 : index
    %c0_52 = arith.constant 0 : index
    %86 = vector.load %arg13[%c51, %c0_52] : memref<100x32xf32, #tpu.memory_space<vmem>>, vector<8x32xf32>
    tpu.vector_store %arg13[%c51, %c0_52], %85 {strides = array<i32>} : memref<100x32xf32, #tpu.memory_space<vmem>>, vector<8x32xf32>,
    %c160 = arith.constant 160 : index
    %c0_53 = arith.constant 0 : index
    %87 = tpu.strided_load %arg12[%c160, %c0_53] {strides = array<i32: 2, 1>} : memref<256x32xf32, #tpu.memory_space<vmem>>, vector<8x32xf32>
    %c161 = arith.constant 161 : index
    %c0_54 = arith.constant 0 : index
    %88 = tpu.strided_load %arg12[%c161, %c0_54] {strides = array<i32: 2, 1>} : memref<256x32xf32, #tpu.memory_space<vmem>>, vector<8x32xf32>
    %89 = arith.maximumf %87, %88 : vector<8x32xf32>
    %c176 = arith.constant 176 : index
    %c0_55 = arith.constant 0 : index
    %90 = tpu.strided_load %arg12[%c176, %c0_55] {strides = array<i32: 2, 1>} : memref<256x32xf32, #tpu.memory_space<vmem>>, vector<8x32xf32>
    %c177 = arith.constant 177 : index
    %c0_56 = arith.constant 0 : index
    %91 = tpu.strided_load %arg12[%c177, %c0_56] {strides = array<i32: 2, 1>} : memref<256x32xf32, #tpu.memory_space<vmem>>, vector<8x32xf32>
    %92 = arith.maximumf %90, %91 : vector<8x32xf32>
    %93 = arith.maximumf %89, %92 : vector<8x32xf32>
    %94 = vector.broadcast %11 : vector<1x32xf32> to vector<8x32xf32>
    %95 = arith.addf %93, %94 : vector<8x32xf32>
    %cst_57 = arith.constant 0.000000e+00 : f32
    %96 = vector.broadcast %cst_57 : f32 to vector<8x32xf32>
    %97 = arith.cmpf oge, %95, %96 : vector<8x32xf32>
    %cst_58 = arith.constant 1.000000e-01 : f32
    %98 = vector.broadcast %cst_58 : f32 to vector<8x32xf32>
    %99 = arith.mulf %98, %95 : vector<8x32xf32>
    %100 = arith.select %97, %95, %99 : vector<8x32xi1>, vector<8x32xf32>
    %c61 = arith.constant 61 : index
    %c0_59 = arith.constant 0 : index
    %101 = vector.load %arg13[%c61, %c0_59] : memref<100x32xf32, #tpu.memory_space<vmem>>, vector<8x32xf32>
    tpu.vector_store %arg13[%c61, %c0_59], %100 {strides = array<i32>} : memref<100x32xf32, #tpu.memory_space<vmem>>, vector<8x32xf32>,
    %c192 = arith.constant 192 : index
    %c0_60 = arith.constant 0 : index
    %102 = tpu.strided_load %arg12[%c192, %c0_60] {strides = array<i32: 2, 1>} : memref<256x32xf32, #tpu.memory_space<vmem>>, vector<8x32xf32>
    %c193 = arith.constant 193 : index
    %c0_61 = arith.constant 0 : index
    %103 = tpu.strided_load %arg12[%c193, %c0_61] {strides = array<i32: 2, 1>} : memref<256x32xf32, #tpu.memory_space<vmem>>, vector<8x32xf32>
    %104 = arith.maximumf %102, %103 : vector<8x32xf32>
    %c208 = arith.constant 208 : index
    %c0_62 = arith.constant 0 : index
    %105 = tpu.strided_load %arg12[%c208, %c0_62] {strides = array<i32: 2, 1>} : memref<256x32xf32, #tpu.memory_space<vmem>>, vector<8x32xf32>
    %c209 = arith.constant 209 : index
    %c0_63 = arith.constant 0 : index
    %106 = tpu.strided_load %arg12[%c209, %c0_63] {strides = array<i32: 2, 1>} : memref<256x32xf32, #tpu.memory_space<vmem>>, vector<8x32xf32>
    %107 = arith.maximumf %105, %106 : vector<8x32xf32>
    %108 = arith.maximumf %104, %107 : vector<8x32xf32>
    %109 = vector.broadcast %11 : vector<1x32xf32> to vector<8x32xf32>
    %110 = arith.addf %108, %109 : vector<8x32xf32>
    %cst_64 = arith.constant 0.000000e+00 : f32
    %111 = vector.broadcast %cst_64 : f32 to vector<8x32xf32>
    %112 = arith.cmpf oge, %110, %111 : vector<8x32xf32>
    %cst_65 = arith.constant 1.000000e-01 : f32
    %113 = vector.broadcast %cst_65 : f32 to vector<8x32xf32>
    %114 = arith.mulf %113, %110 : vector<8x32xf32>
    %115 = arith.select %112, %110, %114 : vector<8x32xi1>, vector<8x32xf32>
    %c71 = arith.constant 71 : index
    %c0_66 = arith.constant 0 : index
    %116 = vector.load %arg13[%c71, %c0_66] : memref<100x32xf32, #tpu.memory_space<vmem>>, vector<8x32xf32>
    tpu.vector_store %arg13[%c71, %c0_66], %115 {strides = array<i32>} : memref<100x32xf32, #tpu.memory_space<vmem>>, vector<8x32xf32>,
    %c224 = arith.constant 224 : index
    %c0_67 = arith.constant 0 : index
    %117 = tpu.strided_load %arg12[%c224, %c0_67] {strides = array<i32: 2, 1>} : memref<256x32xf32, #tpu.memory_space<vmem>>, vector<8x32xf32>
    %c225 = arith.constant 225 : index
    %c0_68 = arith.constant 0 : index
    %118 = tpu.strided_load %arg12[%c225, %c0_68] {strides = array<i32: 2, 1>} : memref<256x32xf32, #tpu.memory_space<vmem>>, vector<8x32xf32>
    %119 = arith.maximumf %117, %118 : vector<8x32xf32>
    %c240 = arith.constant 240 : index
    %c0_69 = arith.constant 0 : index
    %120 = tpu.strided_load %arg12[%c240, %c0_69] {strides = array<i32: 2, 1>} : memref<256x32xf32, #tpu.memory_space<vmem>>, vector<8x32xf32>
    %c241 = arith.constant 241 : index
    %c0_70 = arith.constant 0 : index
    %121 = tpu.strided_load %arg12[%c241, %c0_70] {strides = array<i32: 2, 1>} : memref<256x32xf32, #tpu.memory_space<vmem>>, vector<8x32xf32>
    %122 = arith.maximumf %120, %121 : vector<8x32xf32>
    %123 = arith.maximumf %119, %122 : vector<8x32xf32>
    %124 = vector.broadcast %11 : vector<1x32xf32> to vector<8x32xf32>
    %125 = arith.addf %123, %124 : vector<8x32xf32>
    %cst_71 = arith.constant 0.000000e+00 : f32
    %126 = vector.broadcast %cst_71 : f32 to vector<8x32xf32>
    %127 = arith.cmpf oge, %125, %126 : vector<8x32xf32>
    %cst_72 = arith.constant 1.000000e-01 : f32
    %128 = vector.broadcast %cst_72 : f32 to vector<8x32xf32>
    %129 = arith.mulf %128, %125 : vector<8x32xf32>
    %130 = arith.select %127, %125, %129 : vector<8x32xi1>, vector<8x32xf32>
    %c81_73 = arith.constant 81 : index
    %c0_74 = arith.constant 0 : index
    %131 = vector.load %arg13[%c81_73, %c0_74] : memref<100x32xf32, #tpu.memory_space<vmem>>, vector<8x32xf32>
    tpu.vector_store %arg13[%c81_73, %c0_74], %130 {strides = array<i32>} : memref<100x32xf32, #tpu.memory_space<vmem>>, vector<8x32xf32>,
    %c0_75 = arith.constant 0 : index
    %c0_76 = arith.constant 0 : index
    %132 = vector.load %arg13[%c0_75, %c0_76] : memref<100x32xf32, #tpu.memory_space<vmem>>, vector<78x32xf32>
    %c0_77 = arith.constant 0 : index
    %c0_78 = arith.constant 0 : index
    %133 = vector.load %arg4[%c0_77, %c0_78] : memref<288x64xf32, #tpu.memory_space<vmem>>, vector<32x64xf32>
    %cst_79 = arith.constant dense<0.000000e+00> : vector<78x64xf32>
    %134 = tpu.matmul %132, %133, %cst_79 {dimension_numbers = #tpu.dot_dimension_numbers<[1], [0], [0], [1], [0, 0, 1, 1], [], []>} : vector<78x32xf32>, vector<32x64xf32>, vector<78x64xf32> -> vector<78x64xf32>
    %c1_80 = arith.constant 1 : index
    %c0_81 = arith.constant 0 : index
    %135 = vector.load %arg13[%c1_80, %c0_81] : memref<100x32xf32, #tpu.memory_space<vmem>>, vector<78x32xf32>
    %c32_82 = arith.constant 32 : index
    %c0_83 = arith.constant 0 : index
    %136 = vector.load %arg4[%c32_82, %c0_83] : memref<288x64xf32, #tpu.memory_space<vmem>>, vector<32x64xf32>
    %cst_84 = arith.constant dense<0.000000e+00> : vector<78x64xf32>
    %137 = tpu.matmul %135, %136, %cst_84 {dimension_numbers = #tpu.dot_dimension_numbers<[1], [0], [0], [1], [0, 0, 1, 1], [], []>} : vector<78x32xf32>, vector<32x64xf32>, vector<78x64xf32> -> vector<78x64xf32>
    %138 = arith.addf %134, %137 : vector<78x64xf32>
    %c2 = arith.constant 2 : index
    %c0_85 = arith.constant 0 : index
    %139 = vector.load %arg13[%c2, %c0_85] : memref<100x32xf32, #tpu.memory_space<vmem>>, vector<78x32xf32>
    %c64_86 = arith.constant 64 : index
    %c0_87 = arith.constant 0 : index
    %140 = vector.load %arg4[%c64_86, %c0_87] : memref<288x64xf32, #tpu.memory_space<vmem>>, vector<32x64xf32>
    %cst_88 = arith.constant dense<0.000000e+00> : vector<78x64xf32>
    %141 = tpu.matmul %139, %140, %cst_88 {dimension_numbers = #tpu.dot_dimension_numbers<[1], [0], [0], [1], [0, 0, 1, 1], [], []>} : vector<78x32xf32>, vector<32x64xf32>, vector<78x64xf32> -> vector<78x64xf32>
    %142 = arith.addf %138, %141 : vector<78x64xf32>
    %c10 = arith.constant 10 : index
    %c0_89 = arith.constant 0 : index
    %143 = vector.load %arg13[%c10, %c0_89] : memref<100x32xf32, #tpu.memory_space<vmem>>, vector<78x32xf32>
    %c96_90 = arith.constant 96 : index
    %c0_91 = arith.constant 0 : index
    %144 = vector.load %arg4[%c96_90, %c0_91] : memref<288x64xf32, #tpu.memory_space<vmem>>, vector<32x64xf32>
    %cst_92 = arith.constant dense<0.000000e+00> : vector<78x64xf32>
    %145 = tpu.matmul %143, %144, %cst_92 {dimension_numbers = #tpu.dot_dimension_numbers<[1], [0], [0], [1], [0, 0, 1, 1], [], []>} : vector<78x32xf32>, vector<32x64xf32>, vector<78x64xf32> -> vector<78x64xf32>
    %146 = arith.addf %142, %145 : vector<78x64xf32>
    %c11_93 = arith.constant 11 : index
    %c0_94 = arith.constant 0 : index
    %147 = vector.load %arg13[%c11_93, %c0_94] : memref<100x32xf32, #tpu.memory_space<vmem>>, vector<78x32xf32>
    %c128_95 = arith.constant 128 : index
    %c0_96 = arith.constant 0 : index
    %148 = vector.load %arg4[%c128_95, %c0_96] : memref<288x64xf32, #tpu.memory_space<vmem>>, vector<32x64xf32>
    %cst_97 = arith.constant dense<0.000000e+00> : vector<78x64xf32>
    %149 = tpu.matmul %147, %148, %cst_97 {dimension_numbers = #tpu.dot_dimension_numbers<[1], [0], [0], [1], [0, 0, 1, 1], [], []>} : vector<78x32xf32>, vector<32x64xf32>, vector<78x64xf32> -> vector<78x64xf32>
    %150 = arith.addf %146, %149 : vector<78x64xf32>
    %c12 = arith.constant 12 : index
    %c0_98 = arith.constant 0 : index
    %151 = vector.load %arg13[%c12, %c0_98] : memref<100x32xf32, #tpu.memory_space<vmem>>, vector<78x32xf32>
    %c160_99 = arith.constant 160 : index
    %c0_100 = arith.constant 0 : index
    %152 = vector.load %arg4[%c160_99, %c0_100] : memref<288x64xf32, #tpu.memory_space<vmem>>, vector<32x64xf32>
    %cst_101 = arith.constant dense<0.000000e+00> : vector<78x64xf32>
    %153 = tpu.matmul %151, %152, %cst_101 {dimension_numbers = #tpu.dot_dimension_numbers<[1], [0], [0], [1], [0, 0, 1, 1], [], []>} : vector<78x32xf32>, vector<32x64xf32>, vector<78x64xf32> -> vector<78x64xf32>
    %154 = arith.addf %150, %153 : vector<78x64xf32>
    %c20 = arith.constant 20 : index
    %c0_102 = arith.constant 0 : index
    %155 = vector.load %arg13[%c20, %c0_102] : memref<100x32xf32, #tpu.memory_space<vmem>>, vector<78x32xf32>
    %c192_103 = arith.constant 192 : index
    %c0_104 = arith.constant 0 : index
    %156 = vector.load %arg4[%c192_103, %c0_104] : memref<288x64xf32, #tpu.memory_space<vmem>>, vector<32x64xf32>
    %cst_105 = arith.constant dense<0.000000e+00> : vector<78x64xf32>
    %157 = tpu.matmul %155, %156, %cst_105 {dimension_numbers = #tpu.dot_dimension_numbers<[1], [0], [0], [1], [0, 0, 1, 1], [], []>} : vector<78x32xf32>, vector<32x64xf32>, vector<78x64xf32> -> vector<78x64xf32>
    %158 = arith.addf %154, %157 : vector<78x64xf32>
    %c21_106 = arith.constant 21 : index
    %c0_107 = arith.constant 0 : index
    %159 = vector.load %arg13[%c21_106, %c0_107] : memref<100x32xf32, #tpu.memory_space<vmem>>, vector<78x32xf32>
    %c224_108 = arith.constant 224 : index
    %c0_109 = arith.constant 0 : index
    %160 = vector.load %arg4[%c224_108, %c0_109] : memref<288x64xf32, #tpu.memory_space<vmem>>, vector<32x64xf32>
    %cst_110 = arith.constant dense<0.000000e+00> : vector<78x64xf32>
    %161 = tpu.matmul %159, %160, %cst_110 {dimension_numbers = #tpu.dot_dimension_numbers<[1], [0], [0], [1], [0, 0, 1, 1], [], []>} : vector<78x32xf32>, vector<32x64xf32>, vector<78x64xf32> -> vector<78x64xf32>
    %162 = arith.addf %158, %161 : vector<78x64xf32>
    %c22 = arith.constant 22 : index
    %c0_111 = arith.constant 0 : index
    %163 = vector.load %arg13[%c22, %c0_111] : memref<100x32xf32, #tpu.memory_space<vmem>>, vector<78x32xf32>
    %c256 = arith.constant 256 : index
    %c0_112 = arith.constant 0 : index
    %164 = vector.load %arg4[%c256, %c0_112] : memref<288x64xf32, #tpu.memory_space<vmem>>, vector<32x64xf32>
    %cst_113 = arith.constant dense<0.000000e+00> : vector<78x64xf32>
    %165 = tpu.matmul %163, %164, %cst_113 {dimension_numbers = #tpu.dot_dimension_numbers<[1], [0], [0], [1], [0, 0, 1, 1], [], []>} : vector<78x32xf32>, vector<32x64xf32>, vector<78x64xf32> -> vector<78x64xf32>
    %166 = arith.addf %162, %165 : vector<78x64xf32>
    %c0_114 = arith.constant 0 : index
    %c0_115 = arith.constant 0 : index
    %167 = vector.load %arg14[%c0_114, %c0_115] : memref<78x64xf32, #tpu.memory_space<vmem>>, vector<78x64xf32>
    tpu.vector_store %arg14[%c0_114, %c0_115], %166 {strides = array<i32>} : memref<78x64xf32, #tpu.memory_space<vmem>>, vector<78x64xf32>,
    %c0_116 = arith.constant 0 : index
    %c0_117 = arith.constant 0 : index
    %168 = vector.load %arg5[%c0_116, %c0_117] : memref<1x64xf32, #tpu.memory_space<vmem>>, vector<1x64xf32>
    %c0_118 = arith.constant 0 : index
    %c0_119 = arith.constant 0 : index
    %169 = tpu.strided_load %arg14[%c0_118, %c0_119] {strides = array<i32: 2, 1>} : memref<78x64xf32, #tpu.memory_space<vmem>>, vector<4x64xf32>
    %c1_120 = arith.constant 1 : index
    %c0_121 = arith.constant 0 : index
    %170 = tpu.strided_load %arg14[%c1_120, %c0_121] {strides = array<i32: 2, 1>} : memref<78x64xf32, #tpu.memory_space<vmem>>, vector<4x64xf32>
    %171 = arith.maximumf %169, %170 : vector<4x64xf32>
    %c10_122 = arith.constant 10 : index
    %c0_123 = arith.constant 0 : index
    %172 = tpu.strided_load %arg14[%c10_122, %c0_123] {strides = array<i32: 2, 1>} : memref<78x64xf32, #tpu.memory_space<vmem>>, vector<4x64xf32>
    %c11_124 = arith.constant 11 : index
    %c0_125 = arith.constant 0 : index
    %173 = tpu.strided_load %arg14[%c11_124, %c0_125] {strides = array<i32: 2, 1>} : memref<78x64xf32, #tpu.memory_space<vmem>>, vector<4x64xf32>
    %174 = arith.maximumf %172, %173 : vector<4x64xf32>
    %175 = arith.maximumf %171, %174 : vector<4x64xf32>
    %176 = vector.broadcast %168 : vector<1x64xf32> to vector<4x64xf32>
    %177 = arith.addf %175, %176 : vector<4x64xf32>
    %cst_126 = arith.constant 0.000000e+00 : f32
    %178 = vector.broadcast %cst_126 : f32 to vector<4x64xf32>
    %179 = arith.cmpf oge, %177, %178 : vector<4x64xf32>
    %cst_127 = arith.constant 1.000000e-01 : f32
    %180 = vector.broadcast %cst_127 : f32 to vector<4x64xf32>
    %181 = arith.mulf %180, %177 : vector<4x64xf32>
    %182 = arith.select %179, %177, %181 : vector<4x64xi1>, vector<4x64xf32>
    %c7 = arith.constant 7 : index
    %c0_128 = arith.constant 0 : index
    %183 = vector.load %arg15[%c7, %c0_128] : memref<36x64xf32, #tpu.memory_space<vmem>>, vector<4x64xf32>
    tpu.vector_store %arg15[%c7, %c0_128], %182 {strides = array<i32>} : memref<36x64xf32, #tpu.memory_space<vmem>>, vector<4x64xf32>,
    %c20_129 = arith.constant 20 : index
    %c0_130 = arith.constant 0 : index
    %184 = tpu.strided_load %arg14[%c20_129, %c0_130] {strides = array<i32: 2, 1>} : memref<78x64xf32, #tpu.memory_space<vmem>>, vector<4x64xf32>
    %c21_131 = arith.constant 21 : index
    %c0_132 = arith.constant 0 : index
    %185 = tpu.strided_load %arg14[%c21_131, %c0_132] {strides = array<i32: 2, 1>} : memref<78x64xf32, #tpu.memory_space<vmem>>, vector<4x64xf32>
    %186 = arith.maximumf %184, %185 : vector<4x64xf32>
    %c30 = arith.constant 30 : index
    %c0_133 = arith.constant 0 : index
    %187 = tpu.strided_load %arg14[%c30, %c0_133] {strides = array<i32: 2, 1>} : memref<78x64xf32, #tpu.memory_space<vmem>>, vector<4x64xf32>
    %c31_134 = arith.constant 31 : index
    %c0_135 = arith.constant 0 : index
    %188 = tpu.strided_load %arg14[%c31_134, %c0_135] {strides = array<i32: 2, 1>} : memref<78x64xf32, #tpu.memory_space<vmem>>, vector<4x64xf32>
    %189 = arith.maximumf %187, %188 : vector<4x64xf32>
    %190 = arith.maximumf %186, %189 : vector<4x64xf32>
    %191 = vector.broadcast %168 : vector<1x64xf32> to vector<4x64xf32>
    %192 = arith.addf %190, %191 : vector<4x64xf32>
    %cst_136 = arith.constant 0.000000e+00 : f32
    %193 = vector.broadcast %cst_136 : f32 to vector<4x64xf32>
    %194 = arith.cmpf oge, %192, %193 : vector<4x64xf32>
    %cst_137 = arith.constant 1.000000e-01 : f32
    %195 = vector.broadcast %cst_137 : f32 to vector<4x64xf32>
    %196 = arith.mulf %195, %192 : vector<4x64xf32>
    %197 = arith.select %194, %192, %196 : vector<4x64xi1>, vector<4x64xf32>
    %c13 = arith.constant 13 : index
    %c0_138 = arith.constant 0 : index
    %198 = vector.load %arg15[%c13, %c0_138] : memref<36x64xf32, #tpu.memory_space<vmem>>, vector<4x64xf32>
    tpu.vector_store %arg15[%c13, %c0_138], %197 {strides = array<i32>} : memref<36x64xf32, #tpu.memory_space<vmem>>, vector<4x64xf32>,
    %c40 = arith.constant 40 : index
    %c0_139 = arith.constant 0 : index
    %199 = tpu.strided_load %arg14[%c40, %c0_139] {strides = array<i32: 2, 1>} : memref<78x64xf32, #tpu.memory_space<vmem>>, vector<4x64xf32>
    %c41_140 = arith.constant 41 : index
    %c0_141 = arith.constant 0 : index
    %200 = tpu.strided_load %arg14[%c41_140, %c0_141] {strides = array<i32: 2, 1>} : memref<78x64xf32, #tpu.memory_space<vmem>>, vector<4x64xf32>
    %201 = arith.maximumf %199, %200 : vector<4x64xf32>
    %c50 = arith.constant 50 : index
    %c0_142 = arith.constant 0 : index
    %202 = tpu.strided_load %arg14[%c50, %c0_142] {strides = array<i32: 2, 1>} : memref<78x64xf32, #tpu.memory_space<vmem>>, vector<4x64xf32>
    %c51_143 = arith.constant 51 : index
    %c0_144 = arith.constant 0 : index
    %203 = tpu.strided_load %arg14[%c51_143, %c0_144] {strides = array<i32: 2, 1>} : memref<78x64xf32, #tpu.memory_space<vmem>>, vector<4x64xf32>
    %204 = arith.maximumf %202, %203 : vector<4x64xf32>
    %205 = arith.maximumf %201, %204 : vector<4x64xf32>
    %206 = vector.broadcast %168 : vector<1x64xf32> to vector<4x64xf32>
    %207 = arith.addf %205, %206 : vector<4x64xf32>
    %cst_145 = arith.constant 0.000000e+00 : f32
    %208 = vector.broadcast %cst_145 : f32 to vector<4x64xf32>
    %209 = arith.cmpf oge, %207, %208 : vector<4x64xf32>
    %cst_146 = arith.constant 1.000000e-01 : f32
    %210 = vector.broadcast %cst_146 : f32 to vector<4x64xf32>
    %211 = arith.mulf %210, %207 : vector<4x64xf32>
    %212 = arith.select %209, %207, %211 : vector<4x64xi1>, vector<4x64xf32>
    %c19 = arith.constant 19 : index
    %c0_147 = arith.constant 0 : index
    %213 = vector.load %arg15[%c19, %c0_147] : memref<36x64xf32, #tpu.memory_space<vmem>>, vector<4x64xf32>
    tpu.vector_store %arg15[%c19, %c0_147], %212 {strides = array<i32>} : memref<36x64xf32, #tpu.memory_space<vmem>>, vector<4x64xf32>,
    %c60 = arith.constant 60 : index
    %c0_148 = arith.constant 0 : index
    %214 = tpu.strided_load %arg14[%c60, %c0_148] {strides = array<i32: 2, 1>} : memref<78x64xf32, #tpu.memory_space<vmem>>, vector<4x64xf32>
    %c61_149 = arith.constant 61 : index
    %c0_150 = arith.constant 0 : index
    %215 = tpu.strided_load %arg14[%c61_149, %c0_150] {strides = array<i32: 2, 1>} : memref<78x64xf32, #tpu.memory_space<vmem>>, vector<4x64xf32>
    %216 = arith.maximumf %214, %215 : vector<4x64xf32>
    %c70 = arith.constant 70 : index
    %c0_151 = arith.constant 0 : index
    %217 = tpu.strided_load %arg14[%c70, %c0_151] {strides = array<i32: 2, 1>} : memref<78x64xf32, #tpu.memory_space<vmem>>, vector<4x64xf32>
    %c71_152 = arith.constant 71 : index
    %c0_153 = arith.constant 0 : index
    %218 = tpu.strided_load %arg14[%c71_152, %c0_153] {strides = array<i32: 2, 1>} : memref<78x64xf32, #tpu.memory_space<vmem>>, vector<4x64xf32>
    %219 = arith.maximumf %217, %218 : vector<4x64xf32>
    %220 = arith.maximumf %216, %219 : vector<4x64xf32>
    %221 = vector.broadcast %168 : vector<1x64xf32> to vector<4x64xf32>
    %222 = arith.addf %220, %221 : vector<4x64xf32>
    %cst_154 = arith.constant 0.000000e+00 : f32
    %223 = vector.broadcast %cst_154 : f32 to vector<4x64xf32>
    %224 = arith.cmpf oge, %222, %223 : vector<4x64xf32>
    %cst_155 = arith.constant 1.000000e-01 : f32
    %225 = vector.broadcast %cst_155 : f32 to vector<4x64xf32>
    %226 = arith.mulf %225, %222 : vector<4x64xf32>
    %227 = arith.select %224, %222, %226 : vector<4x64xi1>, vector<4x64xf32>
    %c25 = arith.constant 25 : index
    %c0_156 = arith.constant 0 : index
    %228 = vector.load %arg15[%c25, %c0_156] : memref<36x64xf32, #tpu.memory_space<vmem>>, vector<4x64xf32>
    tpu.vector_store %arg15[%c25, %c0_156], %227 {strides = array<i32>} : memref<36x64xf32, #tpu.memory_space<vmem>>, vector<4x64xf32>,
    %c0_157 = arith.constant 0 : index
    %c0_158 = arith.constant 0 : index
    %229 = vector.load %arg15[%c0_157, %c0_158] : memref<36x64xf32, #tpu.memory_space<vmem>>, vector<22x64xf32>
    %c0_159 = arith.constant 0 : index
    %c0_160 = arith.constant 0 : index
    %230 = vector.load %arg6[%c0_159, %c0_160] : memref<576x128xf32, #tpu.memory_space<vmem>>, vector<64x128xf32>
    %cst_161 = arith.constant dense<0.000000e+00> : vector<22x128xf32>
    %231 = tpu.matmul %229, %230, %cst_161 {dimension_numbers = #tpu.dot_dimension_numbers<[1], [0], [0], [1], [0, 0, 1, 1], [], []>} : vector<22x64xf32>, vector<64x128xf32>, vector<22x128xf32> -> vector<22x128xf32>
    %c1_162 = arith.constant 1 : index
    %c0_163 = arith.constant 0 : index
    %232 = vector.load %arg15[%c1_162, %c0_163] : memref<36x64xf32, #tpu.memory_space<vmem>>, vector<22x64xf32>
    %c64_164 = arith.constant 64 : index
    %c0_165 = arith.constant 0 : index
    %233 = vector.load %arg6[%c64_164, %c0_165] : memref<576x128xf32, #tpu.memory_space<vmem>>, vector<64x128xf32>
    %cst_166 = arith.constant dense<0.000000e+00> : vector<22x128xf32>
    %234 = tpu.matmul %232, %233, %cst_166 {dimension_numbers = #tpu.dot_dimension_numbers<[1], [0], [0], [1], [0, 0, 1, 1], [], []>} : vector<22x64xf32>, vector<64x128xf32>, vector<22x128xf32> -> vector<22x128xf32>
    %235 = arith.addf %231, %234 : vector<22x128xf32>
    %c2_167 = arith.constant 2 : index
    %c0_168 = arith.constant 0 : index
    %236 = vector.load %arg15[%c2_167, %c0_168] : memref<36x64xf32, #tpu.memory_space<vmem>>, vector<22x64xf32>
    %c128_169 = arith.constant 128 : index
    %c0_170 = arith.constant 0 : index
    %237 = vector.load %arg6[%c128_169, %c0_170] : memref<576x128xf32, #tpu.memory_space<vmem>>, vector<64x128xf32>
    %cst_171 = arith.constant dense<0.000000e+00> : vector<22x128xf32>
    %238 = tpu.matmul %236, %237, %cst_171 {dimension_numbers = #tpu.dot_dimension_numbers<[1], [0], [0], [1], [0, 0, 1, 1], [], []>} : vector<22x64xf32>, vector<64x128xf32>, vector<22x128xf32> -> vector<22x128xf32>
    %239 = arith.addf %235, %238 : vector<22x128xf32>
    %c6 = arith.constant 6 : index
    %c0_172 = arith.constant 0 : index
    %240 = vector.load %arg15[%c6, %c0_172] : memref<36x64xf32, #tpu.memory_space<vmem>>, vector<22x64xf32>
    %c192_173 = arith.constant 192 : index
    %c0_174 = arith.constant 0 : index
    %241 = vector.load %arg6[%c192_173, %c0_174] : memref<576x128xf32, #tpu.memory_space<vmem>>, vector<64x128xf32>
    %cst_175 = arith.constant dense<0.000000e+00> : vector<22x128xf32>
    %242 = tpu.matmul %240, %241, %cst_175 {dimension_numbers = #tpu.dot_dimension_numbers<[1], [0], [0], [1], [0, 0, 1, 1], [], []>} : vector<22x64xf32>, vector<64x128xf32>, vector<22x128xf32> -> vector<22x128xf32>
    %243 = arith.addf %239, %242 : vector<22x128xf32>
    %c7_176 = arith.constant 7 : index
    %c0_177 = arith.constant 0 : index
    %244 = vector.load %arg15[%c7_176, %c0_177] : memref<36x64xf32, #tpu.memory_space<vmem>>, vector<22x64xf32>
    %c256_178 = arith.constant 256 : index
    %c0_179 = arith.constant 0 : index
    %245 = vector.load %arg6[%c256_178, %c0_179] : memref<576x128xf32, #tpu.memory_space<vmem>>, vector<64x128xf32>
    %cst_180 = arith.constant dense<0.000000e+00> : vector<22x128xf32>
    %246 = tpu.matmul %244, %245, %cst_180 {dimension_numbers = #tpu.dot_dimension_numbers<[1], [0], [0], [1], [0, 0, 1, 1], [], []>} : vector<22x64xf32>, vector<64x128xf32>, vector<22x128xf32> -> vector<22x128xf32>
    %247 = arith.addf %243, %246 : vector<22x128xf32>
    %c8 = arith.constant 8 : index
    %c0_181 = arith.constant 0 : index
    %248 = vector.load %arg15[%c8, %c0_181] : memref<36x64xf32, #tpu.memory_space<vmem>>, vector<22x64xf32>
    %c320 = arith.constant 320 : index
    %c0_182 = arith.constant 0 : index
    %249 = vector.load %arg6[%c320, %c0_182] : memref<576x128xf32, #tpu.memory_space<vmem>>, vector<64x128xf32>
    %cst_183 = arith.constant dense<0.000000e+00> : vector<22x128xf32>
    %250 = tpu.matmul %248, %249, %cst_183 {dimension_numbers = #tpu.dot_dimension_numbers<[1], [0], [0], [1], [0, 0, 1, 1], [], []>} : vector<22x64xf32>, vector<64x128xf32>, vector<22x128xf32> -> vector<22x128xf32>
    %251 = arith.addf %247, %250 : vector<22x128xf32>
    %c12_184 = arith.constant 12 : index
    %c0_185 = arith.constant 0 : index
    %252 = vector.load %arg15[%c12_184, %c0_185] : memref<36x64xf32, #tpu.memory_space<vmem>>, vector<22x64xf32>
    %c384 = arith.constant 384 : index
    %c0_186 = arith.constant 0 : index
    %253 = vector.load %arg6[%c384, %c0_186] : memref<576x128xf32, #tpu.memory_space<vmem>>, vector<64x128xf32>
    %cst_187 = arith.constant dense<0.000000e+00> : vector<22x128xf32>
    %254 = tpu.matmul %252, %253, %cst_187 {dimension_numbers = #tpu.dot_dimension_numbers<[1], [0], [0], [1], [0, 0, 1, 1], [], []>} : vector<22x64xf32>, vector<64x128xf32>, vector<22x128xf32> -> vector<22x128xf32>
    %255 = arith.addf %251, %254 : vector<22x128xf32>
    %c13_188 = arith.constant 13 : index
    %c0_189 = arith.constant 0 : index
    %256 = vector.load %arg15[%c13_188, %c0_189] : memref<36x64xf32, #tpu.memory_space<vmem>>, vector<22x64xf32>
    %c448 = arith.constant 448 : index
    %c0_190 = arith.constant 0 : index
    %257 = vector.load %arg6[%c448, %c0_190] : memref<576x128xf32, #tpu.memory_space<vmem>>, vector<64x128xf32>
    %cst_191 = arith.constant dense<0.000000e+00> : vector<22x128xf32>
    %258 = tpu.matmul %256, %257, %cst_191 {dimension_numbers = #tpu.dot_dimension_numbers<[1], [0], [0], [1], [0, 0, 1, 1], [], []>} : vector<22x64xf32>, vector<64x128xf32>, vector<22x128xf32> -> vector<22x128xf32>
    %259 = arith.addf %255, %258 : vector<22x128xf32>
    %c14 = arith.constant 14 : index
    %c0_192 = arith.constant 0 : index
    %260 = vector.load %arg15[%c14, %c0_192] : memref<36x64xf32, #tpu.memory_space<vmem>>, vector<22x64xf32>
    %c512 = arith.constant 512 : index
    %c0_193 = arith.constant 0 : index
    %261 = vector.load %arg6[%c512, %c0_193] : memref<576x128xf32, #tpu.memory_space<vmem>>, vector<64x128xf32>
    %cst_194 = arith.constant dense<0.000000e+00> : vector<22x128xf32>
    %262 = tpu.matmul %260, %261, %cst_194 {dimension_numbers = #tpu.dot_dimension_numbers<[1], [0], [0], [1], [0, 0, 1, 1], [], []>} : vector<22x64xf32>, vector<64x128xf32>, vector<22x128xf32> -> vector<22x128xf32>
    %263 = arith.addf %259, %262 : vector<22x128xf32>
    %c0_195 = arith.constant 0 : index
    %c0_196 = arith.constant 0 : index
    %264 = vector.load %arg16[%c0_195, %c0_196] : memref<22x128xf32, #tpu.memory_space<vmem>>, vector<22x128xf32>
    tpu.vector_store %arg16[%c0_195, %c0_196], %263 {strides = array<i32>} : memref<22x128xf32, #tpu.memory_space<vmem>>, vector<22x128xf32>,
    %c0_197 = arith.constant 0 : index
    %c0_198 = arith.constant 0 : index
    %265 = vector.load %arg7[%c0_197, %c0_198] : memref<1x128xf32, #tpu.memory_space<vmem>>, vector<1x128xf32>
    %c0_199 = arith.constant 0 : index
    %c0_200 = arith.constant 0 : index
    %266 = tpu.strided_load %arg16[%c0_199, %c0_200] {strides = array<i32: 2, 1>} : memref<22x128xf32, #tpu.memory_space<vmem>>, vector<2x128xf32>
    %c1_201 = arith.constant 1 : index
    %c0_202 = arith.constant 0 : index
    %267 = tpu.strided_load %arg16[%c1_201, %c0_202] {strides = array<i32: 2, 1>} : memref<22x128xf32, #tpu.memory_space<vmem>>, vector<2x128xf32>
    %268 = arith.maximumf %266, %267 : vector<2x128xf32>
    %c6_203 = arith.constant 6 : index
    %c0_204 = arith.constant 0 : index
    %269 = tpu.strided_load %arg16[%c6_203, %c0_204] {strides = array<i32: 2, 1>} : memref<22x128xf32, #tpu.memory_space<vmem>>, vector<2x128xf32>
    %c7_205 = arith.constant 7 : index
    %c0_206 = arith.constant 0 : index
    %270 = tpu.strided_load %arg16[%c7_205, %c0_206] {strides = array<i32: 2, 1>} : memref<22x128xf32, #tpu.memory_space<vmem>>, vector<2x128xf32>
    %271 = arith.maximumf %269, %270 : vector<2x128xf32>
    %272 = arith.maximumf %268, %271 : vector<2x128xf32>
    %273 = vector.broadcast %265 : vector<1x128xf32> to vector<2x128xf32>
    %274 = arith.addf %272, %273 : vector<2x128xf32>
    %cst_207 = arith.constant 0.000000e+00 : f32
    %275 = vector.broadcast %cst_207 : f32 to vector<2x128xf32>
    %276 = arith.cmpf oge, %274, %275 : vector<2x128xf32>
    %cst_208 = arith.constant 1.000000e-01 : f32
    %277 = vector.broadcast %cst_208 : f32 to vector<2x128xf32>
    %278 = arith.mulf %277, %274 : vector<2x128xf32>
    %279 = arith.select %276, %274, %278 : vector<2x128xi1>, vector<2x128xf32>
    %c5 = arith.constant 5 : index
    %c0_209 = arith.constant 0 : index
    %280 = vector.load %arg17[%c5, %c0_209] : memref<16x128xf32, #tpu.memory_space<vmem>>, vector<2x128xf32>
    tpu.vector_store %arg17[%c5, %c0_209], %279 {strides = array<i32>} : memref<16x128xf32, #tpu.memory_space<vmem>>, vector<2x128xf32>,
    %c0_210 = arith.constant 0 : index
    %c0_211 = arith.constant 0 : index
    %c0_212 = arith.constant 0 : index
    %281 = vector.load %arg10[%c0_210, %c0_211, %c0_212] : memref<1x4x128xf32, #tpu.memory_space<vmem>>, vector<1x2x128xf32>
    %282 = vector.shape_cast %281 : vector<1x2x128xf32> to vector<2x128xf32>
    %283 = vector.shape_cast %279 : vector<2x128xf32> to vector<1x2x128xf32>
    tpu.vector_store %arg10[%c0_210, %c0_211, %c0_212], %283 {strides = array<i32>} : memref<1x4x128xf32, #tpu.memory_space<vmem>>, vector<1x2x128xf32>,
    %c12_213 = arith.constant 12 : index
    %c0_214 = arith.constant 0 : index
    %284 = tpu.strided_load %arg16[%c12_213, %c0_214] {strides = array<i32: 2, 1>} : memref<22x128xf32, #tpu.memory_space<vmem>>, vector<2x128xf32>
    %c13_215 = arith.constant 13 : index
    %c0_216 = arith.constant 0 : index
    %285 = tpu.strided_load %arg16[%c13_215, %c0_216] {strides = array<i32: 2, 1>} : memref<22x128xf32, #tpu.memory_space<vmem>>, vector<2x128xf32>
    %286 = arith.maximumf %284, %285 : vector<2x128xf32>
    %c18 = arith.constant 18 : index
    %c0_217 = arith.constant 0 : index
    %287 = tpu.strided_load %arg16[%c18, %c0_217] {strides = array<i32: 2, 1>} : memref<22x128xf32, #tpu.memory_space<vmem>>, vector<2x128xf32>
    %c19_218 = arith.constant 19 : index
    %c0_219 = arith.constant 0 : index
    %288 = tpu.strided_load %arg16[%c19_218, %c0_219] {strides = array<i32: 2, 1>} : memref<22x128xf32, #tpu.memory_space<vmem>>, vector<2x128xf32>
    %289 = arith.maximumf %287, %288 : vector<2x128xf32>
    %290 = arith.maximumf %286, %289 : vector<2x128xf32>
    %291 = vector.broadcast %265 : vector<1x128xf32> to vector<2x128xf32>
    %292 = arith.addf %290, %291 : vector<2x128xf32>
    %cst_220 = arith.constant 0.000000e+00 : f32
    %293 = vector.broadcast %cst_220 : f32 to vector<2x128xf32>
    %294 = arith.cmpf oge, %292, %293 : vector<2x128xf32>
    %cst_221 = arith.constant 1.000000e-01 : f32
    %295 = vector.broadcast %cst_221 : f32 to vector<2x128xf32>
    %296 = arith.mulf %295, %292 : vector<2x128xf32>
    %297 = arith.select %294, %292, %296 : vector<2x128xi1>, vector<2x128xf32>
    %c9 = arith.constant 9 : index
    %c0_222 = arith.constant 0 : index
    %298 = vector.load %arg17[%c9, %c0_222] : memref<16x128xf32, #tpu.memory_space<vmem>>, vector<2x128xf32>
    tpu.vector_store %arg17[%c9, %c0_222], %297 {strides = array<i32>} : memref<16x128xf32, #tpu.memory_space<vmem>>, vector<2x128xf32>,
    %c0_223 = arith.constant 0 : index
    %c2_224 = arith.constant 2 : index
    %c0_225 = arith.constant 0 : index
    %299 = vector.load %arg10[%c0_223, %c2_224, %c0_225] : memref<1x4x128xf32, #tpu.memory_space<vmem>>, vector<1x2x128xf32>
    %300 = vector.shape_cast %299 : vector<1x2x128xf32> to vector<2x128xf32>
    %301 = vector.shape_cast %297 : vector<2x128xf32> to vector<1x2x128xf32>
    tpu.vector_store %arg10[%c0_223, %c2_224, %c0_225], %301 {strides = array<i32>} : memref<1x4x128xf32, #tpu.memory_space<vmem>>, vector<1x2x128xf32>,
    %c0_226 = arith.constant 0 : index
    %c0_227 = arith.constant 0 : index
    %302 = vector.load %arg17[%c0_226, %c0_227] : memref<16x128xf32, #tpu.memory_space<vmem>>, vector<6x128xf32>
    %c0_228 = arith.constant 0 : index
    %c0_229 = arith.constant 0 : index
    %303 = vector.load %arg8[%c0_228, %c0_229] : memref<1152x128xf32, #tpu.memory_space<vmem>>, vector<128x128xf32>
    %cst_230 = arith.constant dense<0.000000e+00> : vector<6x128xf32>
    %304 = tpu.matmul %302, %303, %cst_230 {dimension_numbers = #tpu.dot_dimension_numbers<[1], [0], [0], [1], [0, 0, 1, 1], [], []>} : vector<6x128xf32>, vector<128x128xf32>, vector<6x128xf32> -> vector<6x128xf32>
    %c1_231 = arith.constant 1 : index
    %c0_232 = arith.constant 0 : index
    %305 = vector.load %arg17[%c1_231, %c0_232] : memref<16x128xf32, #tpu.memory_space<vmem>>, vector<6x128xf32>
    %c128_233 = arith.constant 128 : index
    %c0_234 = arith.constant 0 : index
    %306 = vector.load %arg8[%c128_233, %c0_234] : memref<1152x128xf32, #tpu.memory_space<vmem>>, vector<128x128xf32>
    %cst_235 = arith.constant dense<0.000000e+00> : vector<6x128xf32>
    %307 = tpu.matmul %305, %306, %cst_235 {dimension_numbers = #tpu.dot_dimension_numbers<[1], [0], [0], [1], [0, 0, 1, 1], [], []>} : vector<6x128xf32>, vector<128x128xf32>, vector<6x128xf32> -> vector<6x128xf32>
    %308 = arith.addf %304, %307 : vector<6x128xf32>
    %c2_236 = arith.constant 2 : index
    %c0_237 = arith.constant 0 : index
    %309 = vector.load %arg17[%c2_236, %c0_237] : memref<16x128xf32, #tpu.memory_space<vmem>>, vector<6x128xf32>
    %c256_238 = arith.constant 256 : index
    %c0_239 = arith.constant 0 : index
    %310 = vector.load %arg8[%c256_238, %c0_239] : memref<1152x128xf32, #tpu.memory_space<vmem>>, vector<128x128xf32>
    %cst_240 = arith.constant dense<0.000000e+00> : vector<6x128xf32>
    %311 = tpu.matmul %309, %310, %cst_240 {dimension_numbers = #tpu.dot_dimension_numbers<[1], [0], [0], [1], [0, 0, 1, 1], [], []>} : vector<6x128xf32>, vector<128x128xf32>, vector<6x128xf32> -> vector<6x128xf32>
    %312 = arith.addf %308, %311 : vector<6x128xf32>
    %c4 = arith.constant 4 : index
    %c0_241 = arith.constant 0 : index
    %313 = vector.load %arg17[%c4, %c0_241] : memref<16x128xf32, #tpu.memory_space<vmem>>, vector<6x128xf32>
    %c384_242 = arith.constant 384 : index
    %c0_243 = arith.constant 0 : index
    %314 = vector.load %arg8[%c384_242, %c0_243] : memref<1152x128xf32, #tpu.memory_space<vmem>>, vector<128x128xf32>
    %cst_244 = arith.constant dense<0.000000e+00> : vector<6x128xf32>
    %315 = tpu.matmul %313, %314, %cst_244 {dimension_numbers = #tpu.dot_dimension_numbers<[1], [0], [0], [1], [0, 0, 1, 1], [], []>} : vector<6x128xf32>, vector<128x128xf32>, vector<6x128xf32> -> vector<6x128xf32>
    %316 = arith.addf %312, %315 : vector<6x128xf32>
    %c5_245 = arith.constant 5 : index
    %c0_246 = arith.constant 0 : index
    %317 = vector.load %arg17[%c5_245, %c0_246] : memref<16x128xf32, #tpu.memory_space<vmem>>, vector<6x128xf32>
    %c512_247 = arith.constant 512 : index
    %c0_248 = arith.constant 0 : index
    %318 = vector.load %arg8[%c512_247, %c0_248] : memref<1152x128xf32, #tpu.memory_space<vmem>>, vector<128x128xf32>
    %cst_249 = arith.constant dense<0.000000e+00> : vector<6x128xf32>
    %319 = tpu.matmul %317, %318, %cst_249 {dimension_numbers = #tpu.dot_dimension_numbers<[1], [0], [0], [1], [0, 0, 1, 1], [], []>} : vector<6x128xf32>, vector<128x128xf32>, vector<6x128xf32> -> vector<6x128xf32>
    %320 = arith.addf %316, %319 : vector<6x128xf32>
    %c6_250 = arith.constant 6 : index
    %c0_251 = arith.constant 0 : index
    %321 = vector.load %arg17[%c6_250, %c0_251] : memref<16x128xf32, #tpu.memory_space<vmem>>, vector<6x128xf32>
    %c640 = arith.constant 640 : index
    %c0_252 = arith.constant 0 : index
    %322 = vector.load %arg8[%c640, %c0_252] : memref<1152x128xf32, #tpu.memory_space<vmem>>, vector<128x128xf32>
    %cst_253 = arith.constant dense<0.000000e+00> : vector<6x128xf32>
    %323 = tpu.matmul %321, %322, %cst_253 {dimension_numbers = #tpu.dot_dimension_numbers<[1], [0], [0], [1], [0, 0, 1, 1], [], []>} : vector<6x128xf32>, vector<128x128xf32>, vector<6x128xf32> -> vector<6x128xf32>
    %324 = arith.addf %320, %323 : vector<6x128xf32>
    %c8_254 = arith.constant 8 : index
    %c0_255 = arith.constant 0 : index
    %325 = vector.load %arg17[%c8_254, %c0_255] : memref<16x128xf32, #tpu.memory_space<vmem>>, vector<6x128xf32>
    %c768 = arith.constant 768 : index
    %c0_256 = arith.constant 0 : index
    %326 = vector.load %arg8[%c768, %c0_256] : memref<1152x128xf32, #tpu.memory_space<vmem>>, vector<128x128xf32>
    %cst_257 = arith.constant dense<0.000000e+00> : vector<6x128xf32>
    %327 = tpu.matmul %325, %326, %cst_257 {dimension_numbers = #tpu.dot_dimension_numbers<[1], [0], [0], [1], [0, 0, 1, 1], [], []>} : vector<6x128xf32>, vector<128x128xf32>, vector<6x128xf32> -> vector<6x128xf32>
    %328 = arith.addf %324, %327 : vector<6x128xf32>
    %c9_258 = arith.constant 9 : index
    %c0_259 = arith.constant 0 : index
    %329 = vector.load %arg17[%c9_258, %c0_259] : memref<16x128xf32, #tpu.memory_space<vmem>>, vector<6x128xf32>
    %c896 = arith.constant 896 : index
    %c0_260 = arith.constant 0 : index
    %330 = vector.load %arg8[%c896, %c0_260] : memref<1152x128xf32, #tpu.memory_space<vmem>>, vector<128x128xf32>
    %cst_261 = arith.constant dense<0.000000e+00> : vector<6x128xf32>
    %331 = tpu.matmul %329, %330, %cst_261 {dimension_numbers = #tpu.dot_dimension_numbers<[1], [0], [0], [1], [0, 0, 1, 1], [], []>} : vector<6x128xf32>, vector<128x128xf32>, vector<6x128xf32> -> vector<6x128xf32>
    %332 = arith.addf %328, %331 : vector<6x128xf32>
    %c10_262 = arith.constant 10 : index
    %c0_263 = arith.constant 0 : index
    %333 = vector.load %arg17[%c10_262, %c0_263] : memref<16x128xf32, #tpu.memory_space<vmem>>, vector<6x128xf32>
    %c1024 = arith.constant 1024 : index
    %c0_264 = arith.constant 0 : index
    %334 = vector.load %arg8[%c1024, %c0_264] : memref<1152x128xf32, #tpu.memory_space<vmem>>, vector<128x128xf32>
    %cst_265 = arith.constant dense<0.000000e+00> : vector<6x128xf32>
    %335 = tpu.matmul %333, %334, %cst_265 {dimension_numbers = #tpu.dot_dimension_numbers<[1], [0], [0], [1], [0, 0, 1, 1], [], []>} : vector<6x128xf32>, vector<128x128xf32>, vector<6x128xf32> -> vector<6x128xf32>
    %336 = arith.addf %332, %335 : vector<6x128xf32>
    %c0_266 = arith.constant 0 : index
    %c0_267 = arith.constant 0 : index
    %337 = vector.load %arg18[%c0_266, %c0_267] : memref<6x128xf32, #tpu.memory_space<vmem>>, vector<6x128xf32>
    tpu.vector_store %arg18[%c0_266, %c0_267], %336 {strides = array<i32>} : memref<6x128xf32, #tpu.memory_space<vmem>>, vector<6x128xf32>,
    %c0_268 = arith.constant 0 : index
    %c0_269 = arith.constant 0 : index
    %338 = vector.load %arg9[%c0_268, %c0_269] : memref<1x128xf32, #tpu.memory_space<vmem>>, vector<1x128xf32>
    %c0_270 = arith.constant 0 : index
    %c0_271 = arith.constant 0 : index
    %339 = vector.load %arg18[%c0_270, %c0_271] : memref<6x128xf32, #tpu.memory_space<vmem>>, vector<1x128xf32>
    %c1_272 = arith.constant 1 : index
    %c0_273 = arith.constant 0 : index
    %340 = vector.load %arg18[%c1_272, %c0_273] : memref<6x128xf32, #tpu.memory_space<vmem>>, vector<1x128xf32>
    %341 = arith.maximumf %339, %340 : vector<1x128xf32>
    %c4_274 = arith.constant 4 : index
    %c0_275 = arith.constant 0 : index
    %342 = vector.load %arg18[%c4_274, %c0_275] : memref<6x128xf32, #tpu.memory_space<vmem>>, vector<1x128xf32>
    %c5_276 = arith.constant 5 : index
    %c0_277 = arith.constant 0 : index
    %343 = vector.load %arg18[%c5_276, %c0_277] : memref<6x128xf32, #tpu.memory_space<vmem>>, vector<1x128xf32>
    %344 = arith.maximumf %342, %343 : vector<1x128xf32>
    %345 = arith.maximumf %341, %344 : vector<1x128xf32>
    %346 = arith.addf %345, %338 : vector<1x128xf32>
    %c0_278 = arith.constant 0 : index
    %c0_279 = arith.constant 0 : index
    %c0_280 = arith.constant 0 : index
    %347 = vector.load %arg11[%c0_278, %c0_279, %c0_280] : memref<1x1x128xf32, #tpu.memory_space<vmem>>, vector<1x1x128xf32>
    %348 = vector.shape_cast %347 : vector<1x1x128xf32> to vector<1x128xf32>
    %349 = vector.shape_cast %346 : vector<1x128xf32> to vector<1x1x128xf32>
    tpu.vector_store %arg11[%c0_278, %c0_279, %c0_280], %349 {strides = array<i32>} : memref<1x1x128xf32, #tpu.memory_space<vmem>>, vector<1x1x128xf32>,
    return
  }
  func.func @transform_0(%arg0: i32) -> (i32, i32, i32) {
    %c0_i32 = arith.constant 0 : i32
    %c0_i32_0 = arith.constant 0 : i32
    %c0_i32_1 = arith.constant 0 : i32
    return %arg0, %c0_i32, %c0_i32_0 : i32, i32, i32
  }
  func.func @transform_1(%arg0: i32) -> (i32, i32) {
    %c0_i32 = arith.constant 0 : i32
    %c0_i32_0 = arith.constant 0 : i32
    %c0_i32_1 = arith.constant 0 : i32
    return %c0_i32, %c0_i32_0 : i32, i32
  }
  func.func @transform_2(%arg0: i32) -> (i32, i32) {
    %c0_i32 = arith.constant 0 : i32
    %c0_i32_0 = arith.constant 0 : i32
    %c0_i32_1 = arith.constant 0 : i32
    return %c0_i32, %c0_i32_0 : i32, i32
  }
  func.func @transform_3(%arg0: i32) -> (i32, i32) {
    %c0_i32 = arith.constant 0 : i32
    %c0_i32_0 = arith.constant 0 : i32
    %c0_i32_1 = arith.constant 0 : i32
    return %c0_i32, %c0_i32_0 : i32, i32
  }
  func.func @transform_4(%arg0: i32) -> (i32, i32) {
    %c0_i32 = arith.constant 0 : i32
    %c0_i32_0 = arith.constant 0 : i32
    %c0_i32_1 = arith.constant 0 : i32
    return %c0_i32, %c0_i32_0 : i32, i32
  }
  func.func @transform_5(%arg0: i32) -> (i32, i32) {
    %c0_i32 = arith.constant 0 : i32
    %c0_i32_0 = arith.constant 0 : i32
    %c0_i32_1 = arith.constant 0 : i32
    return %c0_i32, %c0_i32_0 : i32, i32
  }
  func.func @transform_6(%arg0: i32) -> (i32, i32) {
    %c0_i32 = arith.constant 0 : i32
    %c0_i32_0 = arith.constant 0 : i32
    %c0_i32_1 = arith.constant 0 : i32
    return %c0_i32, %c0_i32_0 : i32, i32
  }
  func.func @transform_7(%arg0: i32) -> (i32, i32) {
    %c0_i32 = arith.constant 0 : i32
    %c0_i32_0 = arith.constant 0 : i32
    %c0_i32_1 = arith.constant 0 : i32
    return %c0_i32, %c0_i32_0 : i32, i32
  }
  func.func @transform_8(%arg0: i32) -> (i32, i32) {
    %c0_i32 = arith.constant 0 : i32
    %c0_i32_0 = arith.constant 0 : i32
    %c0_i32_1 = arith.constant 0 : i32
    return %c0_i32, %c0_i32_0 : i32, i32
  }
  func.func @transform_9(%arg0: i32) -> (i32, i32, i32) {
    %c0_i32 = arith.constant 0 : i32
    %c0_i32_0 = arith.constant 0 : i32
    %c0_i32_1 = arith.constant 0 : i32
    return %arg0, %c0_i32, %c0_i32_0 : i32, i32, i32
  }
  func.func @transform_10(%arg0: i32) -> (i32, i32, i32) {
    %c0_i32 = arith.constant 0 : i32
    %c0_i32_0 = arith.constant 0 : i32
    %c0_i32_1 = arith.constant 0 : i32
    return %arg0, %c0_i32, %c0_i32_0 : i32, i32, i32
  }
}

</mosaic_0001>

<llo_original>
// kernel: r2d2_embedding.1
$region0: #{r2d2_embedding.1}
  #allocation0 [shape = 'u32[]', space=smem, size = 0x4, offset = 0x4, fixed_abs, tag = 'smem constant byte address 0x4 - core index']
  #allocation1 [shape = 'u32[72,128]{1,0:T(1,128)}', space=vmem, size = 0x9000, scoped, tag = 'internal scratch']
  #allocation2 [shape = 'f32[256,32]{1,0:T(8,128)}', space=vmem, size = 0x20000, scoped, tag = 'scratch operand']
  #allocation3 [shape = 'f32[100,32]{1,0:T(8,128)}', space=vmem, size = 0xd000, scoped, tag = 'scratch operand']
  #allocation4 [shape = 'f32[78,64]{1,0:T(8,128)}', space=vmem, size = 0xa000, scoped, tag = 'scratch operand']
  #allocation5 [shape = 'f32[36,64]{1,0:T(8,128)}', space=vmem, size = 0x5000, scoped, tag = 'scratch operand']
  #allocation6 [shape = 'f32[22,128]{1,0:T(8,128)}', space=vmem, size = 0x3000, scoped, tag = 'scratch operand']
  #allocation7 [shape = 'f32[16,128]{1,0:T(8,128)}', space=vmem, size = 0x2000, scoped, tag = 'scratch operand']
  #allocation8 [shape = 'f32[6,128]{1,0:T(8,128)}', space=vmem, size = 0x1000, scoped, tag = 'scratch operand']
  %s0 = inlined_call_operand.vmem [shape: f32[2,256,32], index: 0, kind: input, shape index: {}]
  %s1 = inlined_call_operand.vmem [shape: f32[32,32], index: 1, kind: input, shape index: {}]
  %s2 = inlined_call_operand.vmem [shape: f32[1,32], index: 2, kind: input, shape index: {}]
  %s3 = inlined_call_operand.vmem [shape: f32[288,64], index: 3, kind: input, shape index: {}]
  %s4 = inlined_call_operand.vmem [shape: f32[1,64], index: 4, kind: input, shape index: {}]
  %s5 = inlined_call_operand.vmem [shape: f32[576,128], index: 5, kind: input, shape index: {}]
  %s6 = inlined_call_operand.vmem [shape: f32[1,128], index: 6, kind: input, shape index: {}]
  %s7 = inlined_call_operand.vmem [shape: f32[1152,128], index: 7, kind: input, shape index: {}]
  %s8 = inlined_call_operand.vmem [shape: f32[1,128], index: 8, kind: input, shape index: {}]
  %s9 = inlined_call_operand.vmem [shape: f32[2,4,128], index: 9, kind: output, shape index: {0}]
  %s10 = inlined_call_operand.vmem [shape: f32[2,1,128], index: 10, kind: output, shape index: {1}]
  %11 = xla_tuple %s9, %s10
  %s12 = sld [smem:[#allocation0]]
  $region77: #{r2d2_embedding.1} parent=0
    _
  %s14 = ssub.s32 1, %s12
  %s15 = scalar_select 0, %s14, %s12
  loop: start=0, step=1, limit=4
  $region2: #{r2d2_embedding.1} parent=0 // loop_pre_header
    _
  $region3: #{r2d2_embedding.1} parent=0 // loop_header
    %s17 = sphi 0, %s21
    %p18 = scmp.ge.s32.totalorder %s17, 4
    %s27 = sphi 0, %s29
    %s30 = sphi 0, %s27
    %s31 = sphi 0, %s30
    %s47 = sphi 0, %s31
    %s51 = sphi 0, %s51
    %s53 = sphi 0, %s51
    %s54 = sphi 0, %s53
    %s68 = sphi 0, %s54
    %s72 = sphi 0, %s72
    %s74 = sphi 0, %s72
    %s75 = sphi 0, %s74
    %s89 = sphi 0, %s75
    %s93 = sphi 0, %s93
    %s95 = sphi 0, %s93
    %s96 = sphi 0, %s95
    %s110 = sphi 0, %s96
    %s114 = sphi 0, %s114
    %s116 = sphi 0, %s114
    %s117 = sphi 0, %s116
    %s131 = sphi 0, %s117
    %s135 = sphi 0, %s135
    %s137 = sphi 0, %s135
    %s138 = sphi 0, %s137
    %s152 = sphi 0, %s138
    %s156 = sphi 0, %s156
    %s158 = sphi 0, %s156
    %s159 = sphi 0, %s158
    %s173 = sphi 0, %s159
    %s177 = sphi 0, %s177
    %s179 = sphi 0, %s177
    %s180 = sphi 0, %s179
    %s194 = sphi 0, %s180
    %s198 = sphi 0, %s198
    %s200 = sphi 0, %s198
    %s201 = sphi 0, %s200
    %s215 = sphi 0, %s201
    %s221 = sphi 0, %s223
    %s224 = sphi 0, %s221
    %s225 = sphi 0, %s224
    %s241 = sphi 0, %s225
    %s247 = sphi 0, %s249
    %s250 = sphi 0, %s247
    %s251 = sphi 0, %s250
    %s267 = sphi 0, %s251
  $region4: #{r2d2_embedding.1} parent=0 // loop_header_branch
    %20 = sbr.rel (%p18) target = $region8
  $region5: #{r2d2_embedding.1} parent=0 // loop_body
    %s22 = ssub.s32 %s17, 1
    %s23 = ssub.s32 %s17, 2
    %s24 = sadd.s32 %s17, 1
    %s25 = ssub.s32 %s17, %s24
    %p26 = scmp.eq.s32.totalorder %s25, 0
    %s28 = sadd.s32 %s27, 1
    %s29 = scalar_select %p26, %s27, %s28
    %p32 = pneg %p26
    %p33 = scmp.eq.s32.totalorder %s17, 1
    %p34 = por %p32, %p33
    %p35 = scmp.ne.s32.totalorder %s27, %s30
    %p36 = scmp.eq.s32.totalorder %s17, 0
    %p37 = por %p35, %p36
    %p38 = scmp.ne.s32.totalorder %s27, %s30
    %p39 = scmp.eq.s32.totalorder %s22, 1
    %p40 = por %p38, %p39
    %p41 = scmp.ne.s32.totalorder %s30, %s31
    %p42 = scmp.eq.s32.totalorder %s22, 0
    %p43 = por %p41, %p42
    %p44 = scmp.ne.s32.totalorder %s30, %s31
    %p45 = scmp.eq.s32.totalorder %s23, 1
    %p46 = por %p44, %p45
    %p48 = scmp.ne.s32.totalorder %s31, %s47
    %p49 = scmp.eq.s32.totalorder %s23, 0
    %p50 = por %p48, %p49
    %s52 = sadd.s32 %s51, 1
    %p55 = scmp.eq.s32.totalorder %s17, 1
    %p56 = scmp.ne.s32.totalorder %s51, %s53
    %p57 = scmp.eq.s32.totalorder %s17, 0
    %p58 = por %p56, %p57
    %p59 = scmp.ne.s32.totalorder %s51, %s53
    %p60 = scmp.eq.s32.totalorder %s22, 1
    %p61 = por %p59, %p60
    %p62 = scmp.ne.s32.totalorder %s53, %s54
    %p63 = scmp.eq.s32.totalorder %s22, 0
    %p64 = por %p62, %p63
    %p65 = scmp.ne.s32.totalorder %s53, %s54
    %p66 = scmp.eq.s32.totalorder %s23, 1
    %p67 = por %p65, %p66
    %p69 = scmp.ne.s32.totalorder %s54, %s68
    %p70 = scmp.eq.s32.totalorder %s23, 0
    %p71 = por %p69, %p70
    %s73 = sadd.s32 %s72, 1
    %p76 = scmp.eq.s32.totalorder %s17, 1
    %p77 = scmp.ne.s32.totalorder %s72, %s74
    %p78 = scmp.eq.s32.totalorder %s17, 0
    %p79 = por %p77, %p78
    %p80 = scmp.ne.s32.totalorder %s72, %s74
    %p81 = scmp.eq.s32.totalorder %s22, 1
    %p82 = por %p80, %p81
    %p83 = scmp.ne.s32.totalorder %s74, %s75
    %p84 = scmp.eq.s32.totalorder %s22, 0
    %p85 = por %p83, %p84
    %p86 = scmp.ne.s32.totalorder %s74, %s75
    %p87 = scmp.eq.s32.totalorder %s23, 1
    %p88 = por %p86, %p87
    %p90 = scmp.ne.s32.totalorder %s75, %s89
    %p91 = scmp.eq.s32.totalorder %s23, 0
    %p92 = por %p90, %p91
    %s94 = sadd.s32 %s93, 1
    %p97 = scmp.eq.s32.totalorder %s17, 1
    %p98 = scmp.ne.s32.totalorder %s93, %s95
    %p99 = scmp.eq.s32.totalorder %s17, 0
    %p100 = por %p98, %p99
    %p101 = scmp.ne.s32.totalorder %s93, %s95
    %p102 = scmp.eq.s32.totalorder %s22, 1
    %p103 = por %p101, %p102
    %p104 = scmp.ne.s32.totalorder %s95, %s96
    %p105 = scmp.eq.s32.totalorder %s22, 0
    %p106 = por %p104, %p105
    %p107 = scmp.ne.s32.totalorder %s95, %s96
    %p108 = scmp.eq.s32.totalorder %s23, 1
    %p109 = por %p107, %p108
    %p111 = scmp.ne.s32.totalorder %s96, %s110
    %p112 = scmp.eq.s32.totalorder %s23, 0
    %p113 = por %p111, %p112
    %s115 = sadd.s32 %s114, 1
    %p118 = scmp.eq.s32.totalorder %s17, 1
    %p119 = scmp.ne.s32.totalorder %s114, %s116
    %p120 = scmp.eq.s32.totalorder %s17, 0
    %p121 = por %p119, %p120
    %p122 = scmp.ne.s32.totalorder %s114, %s116
    %p123 = scmp.eq.s32.totalorder %s22, 1
    %p124 = por %p122, %p123
    %p125 = scmp.ne.s32.totalorder %s116, %s117
    %p126 = scmp.eq.s32.totalorder %s22, 0
    %p127 = por %p125, %p126
    %p128 = scmp.ne.s32.totalorder %s116, %s117
    %p129 = scmp.eq.s32.totalorder %s23, 1
    %p130 = por %p128, %p129
    %p132 = scmp.ne.s32.totalorder %s117, %s131
    %p133 = scmp.eq.s32.totalorder %s23, 0
    %p134 = por %p132, %p133
    %s136 = sadd.s32 %s135, 1
    %p139 = scmp.eq.s32.totalorder %s17, 1
    %p140 = scmp.ne.s32.totalorder %s135, %s137
    %p141 = scmp.eq.s32.totalorder %s17, 0
    %p142 = por %p140, %p141
    %p143 = scmp.ne.s32.totalorder %s135, %s137
    %p144 = scmp.eq.s32.totalorder %s22, 1
    %p145 = por %p143, %p144
    %p146 = scmp.ne.s32.totalorder %s137, %s138
    %p147 = scmp.eq.s32.totalorder %s22, 0
    %p148 = por %p146, %p147
    %p149 = scmp.ne.s32.totalorder %s137, %s138
    %p150 = scmp.eq.s32.totalorder %s23, 1
    %p151 = por %p149, %p150
    %p153 = scmp.ne.s32.totalorder %s138, %s152
    %p154 = scmp.eq.s32.totalorder %s23, 0
    %p155 = por %p153, %p154
    %s157 = sadd.s32 %s156, 1
    %p160 = scmp.eq.s32.totalorder %s17, 1
    %p161 = scmp.ne.s32.totalorder %s156, %s158
    %p162 = scmp.eq.s32.totalorder %s17, 0
    %p163 = por %p161, %p162
    %p164 = scmp.ne.s32.totalorder %s156, %s158
    %p165 = scmp.eq.s32.totalorder %s22, 1
    %p166 = por %p164, %p165
    %p167 = scmp.ne.s32.totalorder %s158, %s159
    %p168 = scmp.eq.s32.totalorder %s22, 0
    %p169 = por %p167, %p168
    %p170 = scmp.ne.s32.totalorder %s158, %s159
    %p171 = scmp.eq.s32.totalorder %s23, 1
    %p172 = por %p170, %p171
    %p174 = scmp.ne.s32.totalorder %s159, %s173
    %p175 = scmp.eq.s32.totalorder %s23, 0
    %p176 = por %p174, %p175
    %s178 = sadd.s32 %s177, 1
    %p181 = scmp.eq.s32.totalorder %s17, 1
    %p182 = scmp.ne.s32.totalorder %s177, %s179
    %p183 = scmp.eq.s32.totalorder %s17, 0
    %p184 = por %p182, %p183
    %p185 = scmp.ne.s32.totalorder %s177, %s179
    %p186 = scmp.eq.s32.totalorder %s22, 1
    %p187 = por %p185, %p186
    %p188 = scmp.ne.s32.totalorder %s179, %s180
    %p189 = scmp.eq.s32.totalorder %s22, 0
    %p190 = por %p188, %p189
    %p191 = scmp.ne.s32.totalorder %s179, %s180
    %p192 = scmp.eq.s32.totalorder %s23, 1
    %p193 = por %p191, %p192
    %p195 = scmp.ne.s32.totalorder %s180, %s194
    %p196 = scmp.eq.s32.totalorder %s23, 0
    %p197 = por %p195, %p196
    %s199 = sadd.s32 %s198, 1
    %p202 = scmp.eq.s32.totalorder %s17, 1
    %p203 = scmp.ne.s32.totalorder %s198, %s200
    %p204 = scmp.eq.s32.totalorder %s17, 0
    %p205 = por %p203, %p204
    %p206 = scmp.ne.s32.totalorder %s198, %s200
    %p207 = scmp.eq.s32.totalorder %s22, 1
    %p208 = por %p206, %p207
    %p209 = scmp.ne.s32.totalorder %s200, %s201
    %p210 = scmp.eq.s32.totalorder %s22, 0
    %p211 = por %p209, %p210
    %p212 = scmp.ne.s32.totalorder %s200, %s201
    %p213 = scmp.eq.s32.totalorder %s23, 1
    %p214 = por %p212, %p213
    %p216 = scmp.ne.s32.totalorder %s201, %s215
    %p217 = scmp.eq.s32.totalorder %s23, 0
    %p218 = por %p216, %p217
    %s219 = ssub.s32 %s17, %s24
    %p220 = scmp.eq.s32.totalorder %s219, 0
    %s222 = sadd.s32 %s221, 1
    %s223 = scalar_select %p220, %s221, %s222
    %p226 = pneg %p220
    %p227 = scmp.eq.s32.totalorder %s17, 1
    %p228 = por %p226, %p227
    %p229 = scmp.ne.s32.totalorder %s221, %s224
    %p230 = scmp.eq.s32.totalorder %s17, 0
    %p231 = por %p229, %p230
    %p232 = scmp.ne.s32.totalorder %s221, %s224
    %p233 = scmp.eq.s32.totalorder %s22, 1
    %p234 = por %p232, %p233
    %p235 = scmp.ne.s32.totalorder %s224, %s225
    %p236 = scmp.eq.s32.totalorder %s22, 0
    %p237 = por %p235, %p236
    %p238 = scmp.ne.s32.totalorder %s224, %s225
    %p239 = scmp.eq.s32.totalorder %s23, 1
    %p240 = por %p238, %p239
    %p242 = scmp.ne.s32.totalorder %s225, %s241
    %p243 = scmp.eq.s32.totalorder %s23, 0
    %p244 = por %p242, %p243
    %s245 = ssub.s32 %s17, %s24
    %p246 = scmp.eq.s32.totalorder %s245, 0
    %s248 = sadd.s32 %s247, 1
    %s249 = scalar_select %p246, %s247, %s248
    %p252 = pneg %p246
    %p253 = scmp.eq.s32.totalorder %s17, 1
    %p254 = por %p252, %p253
    %p255 = scmp.ne.s32.totalorder %s247, %s250
    %p256 = scmp.eq.s32.totalorder %s17, 0
    %p257 = por %p255, %p256
    %p258 = scmp.ne.s32.totalorder %s247, %s250
    %p259 = scmp.eq.s32.totalorder %s22, 1
    %p260 = por %p258, %p259
    %p261 = scmp.ne.s32.totalorder %s250, %s251
    %p262 = scmp.eq.s32.totalorder %s22, 0
    %p263 = por %p261, %p262
    %p264 = scmp.ne.s32.totalorder %s250, %s251
    %p265 = scmp.eq.s32.totalorder %s23, 1
    %p266 = por %p264, %p265
    %p268 = scmp.ne.s32.totalorder %s251, %s267
    %p269 = scmp.eq.s32.totalorder %s23, 0
    %p270 = por %p268, %p269
    %p271 = scmp.le.s32.totalorder 1, %s17
    %p272 = scmp.lt.s32.totalorder %s17, 3
    %p273 = pnand %p271, %p272
    %p274 = pneg %p273
    // Predicated region
    $region9: #{r2d2_embedding.1} parent=5 // pred_check
      _
    $region10: #{r2d2_embedding.1} parent=5 // pred_check_branch
      %276 = sbr.rel (%p273) target = $region12
    $region11: #{r2d2_embedding.1} parent=5 // pred_region
      %s277 = ssub.s32 %s17, 1
      // Predicated region
      $region13: #{r2d2_embedding.1} parent=11 // pred_check
        %p278 = pneg %p64
      $region14: #{r2d2_embedding.1} parent=11 // pred_check_branch
        %280 = sbr.rel (%p278) target = $region16
      $region15: #{r2d2_embedding.1} parent=11 // pred_region
        _
      $region16: #{r2d2_embedding.1} parent=11 // pred_fallthru
        _
      // Predicated region
      $region17: #{r2d2_embedding.1} parent=11 // pred_check
        %p281 = pneg %p85
      $region18: #{r2d2_embedding.1} parent=11 // pred_check_branch
        %283 = sbr.rel (%p281) target = $region20
      $region19: #{r2d2_embedding.1} parent=11 // pred_region
        _
      $region20: #{r2d2_embedding.1} parent=11 // pred_fallthru
        _
      // Predicated region
      $region21: #{r2d2_embedding.1} parent=11 // pred_check
        %p284 = pneg %p106
      $region22: #{r2d2_embedding.1} parent=11 // pred_check_branch
        %286 = sbr.rel (%p284) target = $region24
      $region23: #{r2d2_embedding.1} parent=11 // pred_region
        _
      $region24: #{r2d2_embedding.1} parent=11 // pred_fallthru
        _
      // Predicated region
      $region25: #{r2d2_embedding.1} parent=11 // pred_check
        %p287 = pneg %p127
      $region26: #{r2d2_embedding.1} parent=11 // pred_check_branch
        %289 = sbr.rel (%p287) target = $region28
      $region27: #{r2d2_embedding.1} parent=11 // pred_region
        _
      $region28: #{r2d2_embedding.1} parent=11 // pred_fallthru
        _
      // Predicated region
      $region29: #{r2d2_embedding.1} parent=11 // pred_check
        %p290 = pneg %p148
      $region30: #{r2d2_embedding.1} parent=11 // pred_check_branch
        %292 = sbr.rel (%p290) target = $region32
      $region31: #{r2d2_embedding.1} parent=11 // pred_region
        _
      $region32: #{r2d2_embedding.1} parent=11 // pred_fallthru
        _
      // Predicated region
      $region33: #{r2d2_embedding.1} parent=11 // pred_check
        %p293 = pneg %p169
      $region34: #{r2d2_embedding.1} parent=11 // pred_check_branch
        %295 = sbr.rel (%p293) target = $region36
      $region35: #{r2d2_embedding.1} parent=11 // pred_region
        _
      $region36: #{r2d2_embedding.1} parent=11 // pred_fallthru
        _
      // Predicated region
      $region37: #{r2d2_embedding.1} parent=11 // pred_check
        %p296 = pneg %p190
      $region38: #{r2d2_embedding.1} parent=11 // pred_check_branch
        %298 = sbr.rel (%p296) target = $region40
      $region39: #{r2d2_embedding.1} parent=11 // pred_region
        _
      $region40: #{r2d2_embedding.1} parent=11 // pred_fallthru
        _
      // Predicated region
      $region41: #{r2d2_embedding.1} parent=11 // pred_check
        %p299 = pneg %p211
      $region42: #{r2d2_embedding.1} parent=11 // pred_check_branch
        %301 = sbr.rel (%p299) target = $region44
      $region43: #{r2d2_embedding.1} parent=11 // pred_region
        _
      $region44: #{r2d2_embedding.1} parent=11 // pred_fallthru
        _
    $region12: #{r2d2_embedding.1} parent=5 // pred_fallthru
      _
    %p302 = scmp.lt.s32.totalorder %s17, 2
    // Predicated region
    $region45: #{r2d2_embedding.1} parent=5 // pred_check
      %p303 = pneg %p302
    $region46: #{r2d2_embedding.1} parent=5 // pred_check_branch
      %305 = sbr.rel (%p303) target = $region48
    $region47: #{r2d2_embedding.1} parent=5 // pred_region
      // Predicated region
      $region49: #{r2d2_embedding.1} parent=47 // pred_check
        %p306 = pneg %p37
      $region50: #{r2d2_embedding.1} parent=47 // pred_check_branch
        %308 = sbr.rel (%p306) target = $region52
      $region51: #{r2d2_embedding.1} parent=47 // pred_region
        %p309 = scmp.lt.s32.totalorder %s17, 1
        %s310 = scalar_select %p309, %s17, 1
        %s311 = smul.addr %s310, 32
        %s312 = smul.addr %s311, 8
        %s313 = scalar_lea.vmem %s0, %s312
      $region52: #{r2d2_embedding.1} parent=47 // pred_fallthru
        _
    $region48: #{r2d2_embedding.1} parent=5 // pred_fallthru
      _
    %p314 = scmp.le.s32.totalorder 1, %s17
    %p315 = scmp.lt.s32.totalorder %s17, 3
    %p316 = pnand %p314, %p315
    %p317 = pneg %p316
    // Predicated region
    $region53: #{r2d2_embedding.1} parent=5 // pred_check
      _
    $region54: #{r2d2_embedding.1} parent=5 // pred_check_branch
      %319 = sbr.rel (%p316) target = $region56
    $region55: #{r2d2_embedding.1} parent=5 // pred_region
      %s320 = ssub.s32 %s17, 1
      %p321 = scmp.lt.s32.totalorder %s22, 1
      %s322 = scalar_select %p321, %s22, 1
      %s323 = smul.addr %s322, 32
      %s324 = smul.addr %s323, 8
      %s325 = scalar_lea.vmem %s0, %s324
      %p326 = pneg %p43
      %p327 = pneg %p40
      %p328 = pneg %p64
      %p329 = pneg %p61
      %p330 = pneg %p85
      %p331 = pneg %p82
      %p332 = pneg %p106
      %p333 = pneg %p103
      %p334 = pneg %p127
      %p335 = pneg %p124
      %p336 = pneg %p148
      %p337 = pneg %p145
      %p338 = pneg %p169
      %p339 = pneg %p166
      %p340 = pneg %p190
      %p341 = pneg %p187
      %p342 = pneg %p211
      %p343 = pneg %p208
      %p344 = pneg %p237
      %p345 = pneg %p234
      %p346 = scmp.lt.s32.totalorder %s22, 1
      %s347 = scalar_select %p346, %s22, 1
      %s348 = smul.addr %s347, 4
      %s349 = scalar_lea.vmem %s9, %s348
      %p350 = pneg %p263
      %p351 = pneg %p260
      %p352 = scmp.lt.s32.totalorder %s22, 1
      %s353 = scalar_select %p352, %s22, 1
      %s354 = scalar_lea.vmem %s10, %s353
      %p355 = scmp.lt.s32.totalorder %s22, 1
      %s356 = scalar_select %p355, %s22, 1
      %s357 = smul.addr %s356, 32
      %s358 = smul.addr %s357, 8
      %s359 = scalar_lea.vmem %s0, %s358
      %p360 = scmp.lt.s32.totalorder %s22, 1
      %s361 = scalar_select %p360, %s22, 1
      %s362 = smul.addr %s361, 4
      %s363 = scalar_lea.vmem %s9, %s362
      %p364 = scmp.lt.s32.totalorder %s22, 1
      %s365 = scalar_select %p364, %s22, 1
      %s366 = scalar_lea.vmem %s10, %s365
      %vm367 = vcmask 261120
      %368 = vst.msk [vmem:[#allocation3] sm:$0xff] %vm367, 0.0
      %369 = vst.msk [vmem:[#allocation3 + $0x8] sm:$0xff] %vm367, 0.0
      %370 = vst.msk [vmem:[#allocation3 + $0x10] sm:$0xff] %vm367, 0.0
      %371 = vst.msk [vmem:[#allocation3 + $0x18] sm:$0xff] %vm367, 0.0
      %372 = vst.msk [vmem:[#allocation3 + $0x20] sm:$0xff] %vm367, 0.0
      %373 = vst.msk [vmem:[#allocation3 + $0x28] sm:$0xff] %vm367, 0.0
      %374 = vst.msk [vmem:[#allocation3 + $0x30] sm:$0xff] %vm367, 0.0
      %375 = vst.msk [vmem:[#allocation3 + $0x38] sm:$0xff] %vm367, 0.0
      %376 = vst.msk [vmem:[#allocation3 + $0x40] sm:$0xff] %vm367, 0.0
      %377 = vst.msk [vmem:[#allocation3 + $0x48] sm:$0xff] %vm367, 0.0
      %378 = vst.msk [vmem:[#allocation3 + $0x50] sm:$0xff] %vm367, 0.0
      %379 = vst.msk [vmem:[#allocation3 + $0x58] sm:$0xff] %vm367, 0.0
      %vm380 = vcmask 257024
      %381 = vst.msk [vmem:[#allocation3 + $0x60] sm:$0xf] %vm380, 0.0
      %vm382 = vcmask 523264
      %383 = vst.msk [vmem:[#allocation5] sm:$0xff] %vm382, 0.0
      %384 = vst.msk [vmem:[#allocation5 + $0x8] sm:$0xff] %vm382, 0.0
      %385 = vst.msk [vmem:[#allocation5 + $0x10] sm:$0xff] %vm382, 0.0
      %386 = vst.msk [vmem:[#allocation5 + $0x18] sm:$0xff] %vm382, 0.0
      %vm387 = vcmask 519168
      %388 = vst.msk [vmem:[#allocation5 + $0x20] sm:$0xf] %vm387, 0.0
      %389 = vst [vmem:[#allocation7] sm:$0xff] 0.0
      %390 = vst [vmem:[#allocation7 + $0x8] sm:$0xff] 0.0
      %v391 = vld [vmem:[%s359] sm:$0xff]
      %v392 = vld [vmem:[%s359 + $0x8] sm:$0xff]
      %v393 = vld [vmem:[%s359 + $0x10] sm:$0xff]
      %v394 = vld [vmem:[%s359 + $0x18] sm:$0xff]
      %v395 = vld [vmem:[%s359 + $0x20] sm:$0xff]
      %v396 = vld [vmem:[%s359 + $0x28] sm:$0xff]
      %v397 = vld [vmem:[%s359 + $0x30] sm:$0xff]
      %v398 = vld [vmem:[%s359 + $0x38] sm:$0xff]
      %v399 = vld [vmem:[%s359 + $0x40] sm:$0xff]
      %v400 = vld [vmem:[%s359 + $0x48] sm:$0xff]
      %v401 = vld [vmem:[%s359 + $0x50] sm:$0xff]
      %v402 = vld [vmem:[%s359 + $0x58] sm:$0xff]
      %v403 = vld [vmem:[%s359 + $0x60] sm:$0xff]
      %v404 = vld [vmem:[%s359 + $0x68] sm:$0xff]
      %v405 = vld [vmem:[%s359 + $0x70] sm:$0xff]
      %v406 = vld [vmem:[%s359 + $0x78] sm:$0xff]
      %v407 = vld [vmem:[%s359 + $0x80] sm:$0xff]
      %v408 = vld [vmem:[%s359 + $0x88] sm:$0xff]
      %v409 = vld [vmem:[%s359 + $0x90] sm:$0xff]
      %v410 = vld [vmem:[%s359 + $0x98] sm:$0xff]
      %v411 = vld [vmem:[%s359 + $0xa0] sm:$0xff]
      %v412 = vld [vmem:[%s359 + $0xa8] sm:$0xff]
      %v413 = vld [vmem:[%s359 + $0xb0] sm:$0xff]
      %v414 = vld [vmem:[%s359 + $0xb8] sm:$0xff]
      %v415 = vld [vmem:[%s359 + $0xc0] sm:$0xff]
      %v416 = vld [vmem:[%s359 + $0xc8] sm:$0xff]
      %v417 = vld [vmem:[%s359 + $0xd0] sm:$0xff]
      %v418 = vld [vmem:[%s359 + $0xd8] sm:$0xff]
      %v419 = vld [vmem:[%s359 + $0xe0] sm:$0xff]
      %v420 = vld [vmem:[%s359 + $0xe8] sm:$0xff]
      %v421 = vld [vmem:[%s359 + $0xf0] sm:$0xff]
      %v422 = vld [vmem:[%s359 + $0xf8] sm:$0xff]
      %v423 = vld [vmem:[%s1] sm:$0xff]
      %v424 = vld [vmem:[%s1 + $0x8] sm:$0xff]
      %v425 = vld [vmem:[%s1 + $0x10] sm:$0xff]
      %v426 = vld [vmem:[%s1 + $0x18] sm:$0xff]
      %v428 = vsel %vm367, %v391, 0
      %v431 = vsel %vm367, %v392, 0
      %v434 = vsel %vm367, %v393, 0
      %v437 = vsel %vm367, %v394, 0
      %v440 = vsel %vm367, %v395, 0
      %v443 = vsel %vm367, %v396, 0
      %v446 = vsel %vm367, %v397, 0
      %v449 = vsel %vm367, %v398, 0
      %v452 = vsel %vm367, %v399, 0
      %v455 = vsel %vm367, %v400, 0
      %v458 = vsel %vm367, %v401, 0
      %v461 = vsel %vm367, %v402, 0
      %v464 = vsel %vm367, %v403, 0
      %v467 = vsel %vm367, %v404, 0
      %v470 = vsel %vm367, %v405, 0
      %v473 = vsel %vm367, %v406, 0
      %v476 = vsel %vm367, %v407, 0
      %v479 = vsel %vm367, %v408, 0
      %v482 = vsel %vm367, %v409, 0
      %v485 = vsel %vm367, %v410, 0
      %v488 = vsel %vm367, %v411, 0
      %v491 = vsel %vm367, %v412, 0
      %v494 = vsel %vm367, %v413, 0
      %v497 = vsel %vm367, %v414, 0
      %v500 = vsel %vm367, %v415, 0
      %v503 = vsel %vm367, %v416, 0
      %v506 = vsel %vm367, %v417, 0
      %v509 = vsel %vm367, %v418, 0
      %v512 = vsel %vm367, %v419, 0
      %v515 = vsel %vm367, %v420, 0
      %v518 = vsel %vm367, %v421, 0
      %v521 = vsel %vm367, %v422, 0
      %523 = vmatpush.msra.mxu0 0.0
      %524 = vmatpush.msra.mxu0 0.0
      %525 = vmatpush.msra.mxu0 0.0
      %526 = vmatpush.msra.mxu0 0.0
      %527 = vmatpush.msra.mxu0 0.0
      %528 = vmatpush.msra.mxu0 0.0
      %529 = vmatpush.msra.mxu0 0.0
      %530 = vmatpush.msra.mxu0 0.0
      %531 = vmatpush.msra.mxu0 0.0
      %532 = vmatpush.msra.mxu0 0.0
      %533 = vmatpush.msra.mxu0 0.0
      %534 = vmatpush.msra.mxu0 0.0
      %535 = vmatpush.msra.mxu0 %v426
      %536 = vmatpush.msra.mxu0 %v425
      %537 = vmatpush.msra.mxu0 %v424
      %538 = vmatpush.msra.mxu0 %v423
      %539 = vmatmul.f32.gmra.mxu0 %v428
      %v540 = vpop.f32.mrf.mxu0
      %v541 = vadd.f32 0.0, %v540
      %542 = vmatmul.f32.gmra.mxu0 %v431
      %v543 = vpop.f32.mrf.mxu0
      %v544 = vadd.f32 0.0, %v543
      %545 = vmatmul.f32.gmra.mxu0 %v434
      %v546 = vpop.f32.mrf.mxu0
      %v547 = vadd.f32 0.0, %v546
      %548 = vmatmul.f32.gmra.mxu0 %v437
      %v549 = vpop.f32.mrf.mxu0
      %v550 = vadd.f32 0.0, %v549
      %551 = vmatmul.f32.gmra.mxu0 %v440
      %v552 = vpop.f32.mrf.mxu0
      %v553 = vadd.f32 0.0, %v552
      %554 = vmatmul.f32.gmra.mxu0 %v443
      %v555 = vpop.f32.mrf.mxu0
      %v556 = vadd.f32 0.0, %v555
      %557 = vmatmul.f32.gmra.mxu0 %v446
      %v558 = vpop.f32.mrf.mxu0
      %v559 = vadd.f32 0.0, %v558
      %560 = vmatmul.f32.gmra.mxu0 %v449
      %v561 = vpop.f32.mrf.mxu0
      %v562 = vadd.f32 0.0, %v561
      %563 = vmatmul.f32.gmra.mxu0 %v452
      %v564 = vpop.f32.mrf.mxu0
      %v565 = vadd.f32 0.0, %v564
      %566 = vmatmul.f32.gmra.mxu0 %v455
      %v567 = vpop.f32.mrf.mxu0
      %v568 = vadd.f32 0.0, %v567
      %569 = vmatmul.f32.gmra.mxu0 %v458
      %v570 = vpop.f32.mrf.mxu0
      %v571 = vadd.f32 0.0, %v570
      %572 = vmatmul.f32.gmra.mxu0 %v461
      %v573 = vpop.f32.mrf.mxu0
      %v574 = vadd.f32 0.0, %v573
      %575 = vmatmul.f32.gmra.mxu0 %v464
      %v576 = vpop.f32.mrf.mxu0
      %v577 = vadd.f32 0.0, %v576
      %578 = vmatmul.f32.gmra.mxu0 %v467
      %v579 = vpop.f32.mrf.mxu0
      %v580 = vadd.f32 0.0, %v579
      %581 = vmatmul.f32.gmra.mxu0 %v470
      %v582 = vpop.f32.mrf.mxu0
      %v583 = vadd.f32 0.0, %v582
      %584 = vmatmul.f32.gmra.mxu0 %v473
      %v585 = vpop.f32.mrf.mxu0
      %v586 = vadd.f32 0.0, %v585
      %587 = vmatmul.f32.gmra.mxu0 %v476
      %v588 = vpop.f32.mrf.mxu0
      %v589 = vadd.f32 0.0, %v588
      %590 = vmatmul.f32.gmra.mxu0 %v479
      %v591 = vpop.f32.mrf.mxu0
      %v592 = vadd.f32 0.0, %v591
      %593 = vmatmul.f32.gmra.mxu0 %v482
      %v594 = vpop.f32.mrf.mxu0
      %v595 = vadd.f32 0.0, %v594
      %596 = vmatmul.f32.gmra.mxu0 %v485
      %v597 = vpop.f32.mrf.mxu0
      %v598 = vadd.f32 0.0, %v597
      %599 = vmatmul.f32.gmra.mxu0 %v488
      %v600 = vpop.f32.mrf.mxu0
      %v601 = vadd.f32 0.0, %v600
      %602 = vmatmul.f32.gmra.mxu0 %v491
      %v603 = vpop.f32.mrf.mxu0
      %v604 = vadd.f32 0.0, %v603
      %605 = vmatmul.f32.gmra.mxu0 %v494
      %v606 = vpop.f32.mrf.mxu0
      %v607 = vadd.f32 0.0, %v606
      %608 = vmatmul.f32.gmra.mxu0 %v497
      %v609 = vpop.f32.mrf.mxu0
      %v610 = vadd.f32 0.0, %v609
      %611 = vmatmul.f32.gmra.mxu0 %v500
      %v612 = vpop.f32.mrf.mxu0
      %v613 = vadd.f32 0.0, %v612
      %614 = vmatmul.f32.gmra.mxu0 %v503
      %v615 = vpop.f32.mrf.mxu0
      %v616 = vadd.f32 0.0, %v615
      %617 = vmatmul.f32.gmra.mxu0 %v506
      %v618 = vpop.f32.mrf.mxu0
      %v619 = vadd.f32 0.0, %v618
      %620 = vmatmul.f32.gmra.mxu0 %v509
      %v621 = vpop.f32.mrf.mxu0
      %v622 = vadd.f32 0.0, %v621
      %623 = vmatmul.f32.gmra.mxu0 %v512
      %v624 = vpop.f32.mrf.mxu0
      %v625 = vadd.f32 0.0, %v624
      %626 = vmatmul.f32.gmra.mxu0 %v515
      %v627 = vpop.f32.mrf.mxu0
      %v628 = vadd.f32 0.0, %v627
      %629 = vmatmul.f32.gmra.mxu0 %v518
      %v630 = vpop.f32.mrf.mxu0
      %v631 = vadd.f32 0.0, %v630
      %632 = vmatmul.f32.gmra.mxu0 %v521
      %v633 = vpop.f32.mrf.mxu0
      %v634 = vadd.f32 0.0, %v633
      %635 = vdwg.mxu0
      %636 = vst.msk [vmem:[#allocation2] sm:$0xff] %vm367, %v541
      %637 = vst.msk [vmem:[#allocation2 + $0x8] sm:$0xff] %vm367, %v544
      %638 = vst.msk [vmem:[#allocation2 + $0x10] sm:$0xff] %vm367, %v547
      %639 = vst.msk [vmem:[#allocation2 + $0x18] sm:$0xff] %vm367, %v550
      %640 = vst.msk [vmem:[#allocation2 + $0x20] sm:$0xff] %vm367, %v553
      %641 = vst.msk [vmem:[#allocation2 + $0x28] sm:$0xff] %vm367, %v556
      %642 = vst.msk [vmem:[#allocation2 + $0x30] sm:$0xff] %vm367, %v559
      %643 = vst.msk [vmem:[#allocation2 + $0x38] sm:$0xff] %vm367, %v562
      %644 = vst.msk [vmem:[#allocation2 + $0x40] sm:$0xff] %vm367, %v565
      %645 = vst.msk [vmem:[#allocation2 + $0x48] sm:$0xff] %vm367, %v568
      %646 = vst.msk [vmem:[#allocation2 + $0x50] sm:$0xff] %vm367, %v571
      %647 = vst.msk [vmem:[#allocation2 + $0x58] sm:$0xff] %vm367, %v574
      %648 = vst.msk [vmem:[#allocation2 + $0x60] sm:$0xff] %vm367, %v577
      %649 = vst.msk [vmem:[#allocation2 + $0x68] sm:$0xff] %vm367, %v580
      %650 = vst.msk [vmem:[#allocation2 + $0x70] sm:$0xff] %vm367, %v583
      %651 = vst.msk [vmem:[#allocation2 + $0x78] sm:$0xff] %vm367, %v586
      %652 = vst.msk [vmem:[#allocation2 + $0x80] sm:$0xff] %vm367, %v589
      %653 = vst.msk [vmem:[#allocation2 + $0x88] sm:$0xff] %vm367, %v592
      %654 = vst.msk [vmem:[#allocation2 + $0x90] sm:$0xff] %vm367, %v595
      %655 = vst.msk [vmem:[#allocation2 + $0x98] sm:$0xff] %vm367, %v598
      %656 = vst.msk [vmem:[#allocation2 + $0xa0] sm:$0xff] %vm367, %v601
      %657 = vst.msk [vmem:[#allocation2 + $0xa8] sm:$0xff] %vm367, %v604
      %658 = vst.msk [vmem:[#allocation2 + $0xb0] sm:$0xff] %vm367, %v607
      %659 = vst.msk [vmem:[#allocation2 + $0xb8] sm:$0xff] %vm367, %v610
      %660 = vst.msk [vmem:[#allocation2 + $0xc0] sm:$0xff] %vm367, %v613
      %661 = vst.msk [vmem:[#allocation2 + $0xc8] sm:$0xff] %vm367, %v616
      %662 = vst.msk [vmem:[#allocation2 + $0xd0] sm:$0xff] %vm367, %v619
      %663 = vst.msk [vmem:[#allocation2 + $0xd8] sm:$0xff] %vm367, %v622
      %664 = vst.msk [vmem:[#allocation2 + $0xe0] sm:$0xff] %vm367, %v625
      %665 = vst.msk [vmem:[#allocation2 + $0xe8] sm:$0xff] %vm367, %v628
      %666 = vst.msk [vmem:[#allocation2 + $0xf0] sm:$0xff] %vm367, %v631
      %667 = vst.msk [vmem:[#allocation2 + $0xf8] sm:$0xff] %vm367, %v634
      %v668 = vld [vmem:[%s2] sm:$0x1]
      %v669 = vld [vmem:[#allocation2] ss:$2 sm:$0xff]
      %s670 = scalar_lea.vmem [#allocation2], 1
      %v671 = vld [vmem:[%s670] ss:$2 sm:$0xff]
      %v672 = vmax.f32 %v669, %v671
      %s673 = scalar_lea.vmem [#allocation2], 16
      %v674 = vld [vmem:[%s673] ss:$2 sm:$0xff]
      %s675 = scalar_lea.vmem [#allocation2], 17
      %v676 = vld [vmem:[%s675] ss:$2 sm:$0xff]
      %v677 = vmax.f32 %v674, %v676
      %v678 = vmax.f32 %v672, %v677
      %v680 = vperm.slane %v668, 0
      %v682 = vadd.f32 %v678, %v680
      %vm683 = vcmp.ge.f32.partialorder %v682, 0.0
      %v684 = vmul.f32 %v682, 0.1
      %v685 = vsel %vm683, %v682, %v684
      %686 = vst.msk [vmem:[#allocation3 + $0xb] sm:$0xff] %vm367, %v685
      %s687 = scalar_lea.vmem [#allocation2], 32
      %v688 = vld [vmem:[%s687] ss:$2 sm:$0xff]
      %s689 = scalar_lea.vmem [#allocation2], 33
      %v690 = vld [vmem:[%s689] ss:$2 sm:$0xff]
      %v691 = vmax.f32 %v688, %v690
      %s692 = scalar_lea.vmem [#allocation2], 48
      %v693 = vld [vmem:[%s692] ss:$2 sm:$0xff]
      %s694 = scalar_lea.vmem [#allocation2], 49
      %v695 = vld [vmem:[%s694] ss:$2 sm:$0xff]
      %v696 = vmax.f32 %v693, %v695
      %v697 = vmax.f32 %v691, %v696
      %v698 = vadd.f32 %v697, %v680
      %vm699 = vcmp.ge.f32.partialorder %v698, 0.0
      %v700 = vmul.f32 %v698, 0.1
      %v701 = vsel %vm699, %v698, %v700
      %702 = vst.msk [vmem:[#allocation3 + $0x15] sm:$0xff] %vm367, %v701
      %s703 = scalar_lea.vmem [#allocation2], 64
      %v704 = vld [vmem:[%s703] ss:$2 sm:$0xff]
      %s705 = scalar_lea.vmem [#allocation2], 65
      %v706 = vld [vmem:[%s705] ss:$2 sm:$0xff]
      %v707 = vmax.f32 %v704, %v706
      %s708 = scalar_lea.vmem [#allocation2], 80
      %v709 = vld [vmem:[%s708] ss:$2 sm:$0xff]
      %s710 = scalar_lea.vmem [#allocation2], 81
      %v711 = vld [vmem:[%s710] ss:$2 sm:$0xff]
      %v712 = vmax.f32 %v709, %v711
      %v713 = vmax.f32 %v707, %v712
      %v714 = vadd.f32 %v713, %v680
      %vm715 = vcmp.ge.f32.partialorder %v714, 0.0
      %v716 = vmul.f32 %v714, 0.1
      %v717 = vsel %vm715, %v714, %v716
      %718 = vst.msk [vmem:[#allocation3 + $0x1f] sm:$0xff] %vm367, %v717
      %s719 = scalar_lea.vmem [#allocation2], 96
      %v720 = vld [vmem:[%s719] ss:$2 sm:$0xff]
      %s721 = scalar_lea.vmem [#allocation2], 97
      %v722 = vld [vmem:[%s721] ss:$2 sm:$0xff]
      %v723 = vmax.f32 %v720, %v722
      %s724 = scalar_lea.vmem [#allocation2], 112
      %v725 = vld [vmem:[%s724] ss:$2 sm:$0xff]
      %s726 = scalar_lea.vmem [#allocation2], 113
      %v727 = vld [vmem:[%s726] ss:$2 sm:$0xff]
      %v728 = vmax.f32 %v725, %v727
      %v729 = vmax.f32 %v723, %v728
      %v730 = vadd.f32 %v729, %v680
      %vm731 = vcmp.ge.f32.partialorder %v730, 0.0
      %v732 = vmul.f32 %v730, 0.1
      %v733 = vsel %vm731, %v730, %v732
      %734 = vst.msk [vmem:[#allocation3 + $0x29] sm:$0xff] %vm367, %v733
      %s735 = scalar_lea.vmem [#allocation2], 128
      %v736 = vld [vmem:[%s735] ss:$2 sm:$0xff]
      %s737 = scalar_lea.vmem [#allocation2], 129
      %v738 = vld [vmem:[%s737] ss:$2 sm:$0xff]
      %v739 = vmax.f32 %v736, %v738
      %s740 = scalar_lea.vmem [#allocation2], 144
      %v741 = vld [vmem:[%s740] ss:$2 sm:$0xff]
      %s742 = scalar_lea.vmem [#allocation2], 145
      %v743 = vld [vmem:[%s742] ss:$2 sm:$0xff]
      %v744 = vmax.f32 %v741, %v743
      %v745 = vmax.f32 %v739, %v744
      %v746 = vadd.f32 %v745, %v680
      %vm747 = vcmp.ge.f32.partialorder %v746, 0.0
      %v748 = vmul.f32 %v746, 0.1
      %v749 = vsel %vm747, %v746, %v748
      %750 = vst.msk [vmem:[#allocation3 + $0x33] sm:$0xff] %vm367, %v749
      %s751 = scalar_lea.vmem [#allocation2], 160
      %v752 = vld [vmem:[%s751] ss:$2 sm:$0xff]
      %s753 = scalar_lea.vmem [#allocation2], 161
      %v754 = vld [vmem:[%s753] ss:$2 sm:$0xff]
      %v755 = vmax.f32 %v752, %v754
      %s756 = scalar_lea.vmem [#allocation2], 176
      %v757 = vld [vmem:[%s756] ss:$2 sm:$0xff]
      %s758 = scalar_lea.vmem [#allocation2], 177
      %v759 = vld [vmem:[%s758] ss:$2 sm:$0xff]
      %v760 = vmax.f32 %v757, %v759
      %v761 = vmax.f32 %v755, %v760
      %v762 = vadd.f32 %v761, %v680
      %vm763 = vcmp.ge.f32.partialorder %v762, 0.0
      %v764 = vmul.f32 %v762, 0.1
      %v765 = vsel %vm763, %v762, %v764
      %766 = vst.msk [vmem:[#allocation3 + $0x3d] sm:$0xff] %vm367, %v765
      %s767 = scalar_lea.vmem [#allocation2], 192
      %v768 = vld [vmem:[%s767] ss:$2 sm:$0xff]
      %s769 = scalar_lea.vmem [#allocation2], 193
      %v770 = vld [vmem:[%s769] ss:$2 sm:$0xff]
      %v771 = vmax.f32 %v768, %v770
      %s772 = scalar_lea.vmem [#allocation2], 208
      %v773 = vld [vmem:[%s772] ss:$2 sm:$0xff]
      %s774 = scalar_lea.vmem [#allocation2], 209
      %v775 = vld [vmem:[%s774] ss:$2 sm:$0xff]
      %v776 = vmax.f32 %v773, %v775
      %v777 = vmax.f32 %v771, %v776
      %v778 = vadd.f32 %v777, %v680
      %vm779 = vcmp.ge.f32.partialorder %v778, 0.0
      %v780 = vmul.f32 %v778, 0.1
      %v781 = vsel %vm779, %v778, %v780
      %782 = vst.msk [vmem:[#allocation3 + $0x47] sm:$0xff] %vm367, %v781
      %s783 = scalar_lea.vmem [#allocation2], 224
      %v784 = vld [vmem:[%s783] ss:$2 sm:$0xff]
      %s785 = scalar_lea.vmem [#allocation2], 225
      %v786 = vld [vmem:[%s785] ss:$2 sm:$0xff]
      %v787 = vmax.f32 %v784, %v786
      %s788 = scalar_lea.vmem [#allocation2], 240
      %v789 = vld [vmem:[%s788] ss:$2 sm:$0xff]
      %s790 = scalar_lea.vmem [#allocation2], 241
      %v791 = vld [vmem:[%s790] ss:$2 sm:$0xff]
      %v792 = vmax.f32 %v789, %v791
      %v793 = vmax.f32 %v787, %v792
      %v794 = vadd.f32 %v793, %v680
      %vm795 = vcmp.ge.f32.partialorder %v794, 0.0
      %v796 = vmul.f32 %v794, 0.1
      %v797 = vsel %vm795, %v794, %v796
      %798 = vst.msk [vmem:[#allocation3 + $0x51] sm:$0xff] %vm367, %v797
      %v799 = vld [vmem:[#allocation3] sm:$0xff]
      %v800 = vld [vmem:[#allocation3 + $0x8] sm:$0xff]
      %v801 = vld [vmem:[#allocation3 + $0x10] sm:$0xff]
      %v802 = vld [vmem:[#allocation3 + $0x18] sm:$0xff]
      %v803 = vld [vmem:[#allocation3 + $0x20] sm:$0xff]
      %v804 = vld [vmem:[#allocation3 + $0x28] sm:$0xff]
      %v805 = vld [vmem:[#allocation3 + $0x30] sm:$0xff]
      %v806 = vld [vmem:[#allocation3 + $0x38] sm:$0xff]
      %v807 = vld [vmem:[#allocation3 + $0x40] sm:$0xff]
      %v808 = vld [vmem:[#allocation3 + $0x48] sm:$0x3f]
      %v809 = vld [vmem:[%s3] sm:$0xff]
      %v810 = vld [vmem:[%s3 + $0x8] sm:$0xff]
      %v811 = vld [vmem:[%s3 + $0x10] sm:$0xff]
      %v812 = vld [vmem:[%s3 + $0x18] sm:$0xff]
      %v813 = vld [vmem:[#allocation3 + $0x1] sm:$0xff]
      %v814 = vld [vmem:[#allocation3 + $0x9] sm:$0xff]
      %v815 = vld [vmem:[#allocation3 + $0x11] sm:$0xff]
      %v816 = vld [vmem:[#allocation3 + $0x19] sm:$0xff]
      %v817 = vld [vmem:[#allocation3 + $0x21] sm:$0xff]
      %v818 = vld [vmem:[#allocation3 + $0x29] sm:$0xff]
      %v819 = vld [vmem:[#allocation3 + $0x31] sm:$0xff]
      %v820 = vld [vmem:[#allocation3 + $0x39] sm:$0xff]
      %v821 = vld [vmem:[#allocation3 + $0x41] sm:$0xff]
      %v822 = vld [vmem:[#allocation3 + $0x49] sm:$0x3f]
      %v823 = vld [vmem:[%s3 + $0x20] sm:$0xff]
      %v824 = vld [vmem:[%s3 + $0x28] sm:$0xff]
      %v825 = vld [vmem:[%s3 + $0x30] sm:$0xff]
      %v826 = vld [vmem:[%s3 + $0x38] sm:$0xff]
      %v828 = vsel %vm367, %v813, 0
      %v831 = vsel %vm367, %v814, 0
      %v834 = vsel %vm367, %v815, 0
      %v837 = vsel %vm367, %v816, 0
      %v840 = vsel %vm367, %v817, 0
      %v843 = vsel %vm367, %v818, 0
      %v846 = vsel %vm367, %v819, 0
      %v849 = vsel %vm367, %v820, 0
      %v852 = vsel %vm367, %v821, 0
      %v855 = vsel %vm367, %v822, 0
      %857 = vmatpush.msra.mxu0 0.0
      %858 = vmatpush.msra.mxu0 0.0
      %859 = vmatpush.msra.mxu0 0.0
      %860 = vmatpush.msra.mxu0 0.0
      %861 = vmatpush.msra.mxu0 0.0
      %862 = vmatpush.msra.mxu0 0.0
      %863 = vmatpush.msra.mxu0 0.0
      %864 = vmatpush.msra.mxu0 0.0
      %865 = vmatpush.msra.mxu0 0.0
      %866 = vmatpush.msra.mxu0 0.0
      %867 = vmatpush.msra.mxu0 0.0
      %868 = vmatpush.msra.mxu0 0.0
      %869 = vmatpush.msra.mxu0 %v826
      %870 = vmatpush.msra.mxu0 %v825
      %871 = vmatpush.msra.mxu0 %v824
      %872 = vmatpush.msra.mxu0 %v823
      %873 = vmatmul.f32.gmra.mxu0 %v828
      %v874 = vpop.f32.mrf.mxu0
      %v875 = vadd.f32 0.0, %v874
      %876 = vmatmul.f32.gmra.mxu0 %v831
      %v877 = vpop.f32.mrf.mxu0
      %v878 = vadd.f32 0.0, %v877
      %879 = vmatmul.f32.gmra.mxu0 %v834
      %v880 = vpop.f32.mrf.mxu0
      %v881 = vadd.f32 0.0, %v880
      %882 = vmatmul.f32.gmra.mxu0 %v837
      %v883 = vpop.f32.mrf.mxu0
      %v884 = vadd.f32 0.0, %v883
      %885 = vmatmul.f32.gmra.mxu0 %v840
      %v886 = vpop.f32.mrf.mxu0
      %v887 = vadd.f32 0.0, %v886
      %888 = vmatmul.f32.gmra.mxu0 %v843
      %v889 = vpop.f32.mrf.mxu0
      %v890 = vadd.f32 0.0, %v889
      %891 = vmatmul.f32.gmra.mxu0 %v846
      %v892 = vpop.f32.mrf.mxu0
      %v893 = vadd.f32 0.0, %v892
      %894 = vmatmul.f32.gmra.mxu0 %v849
      %v895 = vpop.f32.mrf.mxu0
      %v896 = vadd.f32 0.0, %v895
      %897 = vmatmul.f32.gmra.mxu0 %v852
      %v898 = vpop.f32.mrf.mxu0
      %v899 = vadd.f32 0.0, %v898
      %900 = vmatmul.f32.gmra.mxu0 %v855
      %v901 = vpop.f32.mrf.mxu0
      %v902 = vadd.f32 0.0, %v901
      %903 = vdwg.mxu0
      %v905 = vsel %vm367, %v799, 0
      %v908 = vsel %vm367, %v800, 0
      %v911 = vsel %vm367, %v801, 0
      %v914 = vsel %vm367, %v802, 0
      %v917 = vsel %vm367, %v803, 0
      %v920 = vsel %vm367, %v804, 0
      %v923 = vsel %vm367, %v805, 0
      %v926 = vsel %vm367, %v806, 0
      %v929 = vsel %vm367, %v807, 0
      %v932 = vsel %vm367, %v808, 0
      %934 = vmatpush.msra.mxu0 0.0
      %935 = vmatpush.msra.mxu0 0.0
      %936 = vmatpush.msra.mxu0 0.0
      %937 = vmatpush.msra.mxu0 0.0
      %938 = vmatpush.msra.mxu0 0.0
      %939 = vmatpush.msra.mxu0 0.0
      %940 = vmatpush.msra.mxu0 0.0
      %941 = vmatpush.msra.mxu0 0.0
      %942 = vmatpush.msra.mxu0 0.0
      %943 = vmatpush.msra.mxu0 0.0
      %944 = vmatpush.msra.mxu0 0.0
      %945 = vmatpush.msra.mxu0 0.0
      %946 = vmatpush.msra.mxu0 %v812
      %947 = vmatpush.msra.mxu0 %v811
      %948 = vmatpush.msra.mxu0 %v810
      %949 = vmatpush.msra.mxu0 %v809
      %950 = vmatmul.f32.gmra.mxu0 %v905
      %v951 = vpop.f32.mrf.mxu0
      %v952 = vadd.f32 %v875, %v951
      %953 = vmatmul.f32.gmra.mxu0 %v908
      %v954 = vpop.f32.mrf.mxu0
      %v955 = vadd.f32 %v878, %v954
      %956 = vmatmul.f32.gmra.mxu0 %v911
      %v957 = vpop.f32.mrf.mxu0
      %v958 = vadd.f32 %v881, %v957
      %959 = vmatmul.f32.gmra.mxu0 %v914
      %v960 = vpop.f32.mrf.mxu0
      %v961 = vadd.f32 %v884, %v960
      %962 = vmatmul.f32.gmra.mxu0 %v917
      %v963 = vpop.f32.mrf.mxu0
      %v964 = vadd.f32 %v887, %v963
      %965 = vmatmul.f32.gmra.mxu0 %v920
      %v966 = vpop.f32.mrf.mxu0
      %v967 = vadd.f32 %v890, %v966
      %968 = vmatmul.f32.gmra.mxu0 %v923
      %v969 = vpop.f32.mrf.mxu0
      %v970 = vadd.f32 %v893, %v969
      %971 = vmatmul.f32.gmra.mxu0 %v926
      %v972 = vpop.f32.mrf.mxu0
      %v973 = vadd.f32 %v896, %v972
      %974 = vmatmul.f32.gmra.mxu0 %v929
      %v975 = vpop.f32.mrf.mxu0
      %v976 = vadd.f32 %v899, %v975
      %977 = vmatmul.f32.gmra.mxu0 %v932
      %v978 = vpop.f32.mrf.mxu0
      %v979 = vadd.f32 %v902, %v978
      %980 = vdwg.mxu0
      %v981 = vld [vmem:[#allocation3 + $0x2] sm:$0xff]
      %v982 = vld [vmem:[#allocation3 + $0xa] sm:$0xff]
      %v983 = vld [vmem:[#allocation3 + $0x12] sm:$0xff]
      %v984 = vld [vmem:[#allocation3 + $0x1a] sm:$0xff]
      %v985 = vld [vmem:[#allocation3 + $0x22] sm:$0xff]
      %v986 = vld [vmem:[#allocation3 + $0x2a] sm:$0xff]
      %v987 = vld [vmem:[#allocation3 + $0x32] sm:$0xff]
      %v988 = vld [vmem:[#allocation3 + $0x3a] sm:$0xff]
      %v989 = vld [vmem:[#allocation3 + $0x42] sm:$0xff]
      %v990 = vld [vmem:[#allocation3 + $0x4a] sm:$0x3f]
      %v991 = vld [vmem:[%s3 + $0x40] sm:$0xff]
      %v992 = vld [vmem:[%s3 + $0x48] sm:$0xff]
      %v993 = vld [vmem:[%s3 + $0x50] sm:$0xff]
      %v994 = vld [vmem:[%s3 + $0x58] sm:$0xff]
      %v996 = vsel %vm367, %v981, 0
      %v999 = vsel %vm367, %v982, 0
      %v1002 = vsel %vm367, %v983, 0
      %v1005 = vsel %vm367, %v984, 0
      %v1008 = vsel %vm367, %v985, 0
      %v1011 = vsel %vm367, %v986, 0
      %v1014 = vsel %vm367, %v987, 0
      %v1017 = vsel %vm367, %v988, 0
      %v1020 = vsel %vm367, %v989, 0
      %v1023 = vsel %vm367, %v990, 0
      %1025 = vmatpush.msra.mxu0 0.0
      %1026 = vmatpush.msra.mxu0 0.0
      %1027 = vmatpush.msra.mxu0 0.0
      %1028 = vmatpush.msra.mxu0 0.0
      %1029 = vmatpush.msra.mxu0 0.0
      %1030 = vmatpush.msra.mxu0 0.0
      %1031 = vmatpush.msra.mxu0 0.0
      %1032 = vmatpush.msra.mxu0 0.0
      %1033 = vmatpush.msra.mxu0 0.0
      %1034 = vmatpush.msra.mxu0 0.0
      %1035 = vmatpush.msra.mxu0 0.0
      %1036 = vmatpush.msra.mxu0 0.0
      %1037 = vmatpush.msra.mxu0 %v994
      %1038 = vmatpush.msra.mxu0 %v993
      %1039 = vmatpush.msra.mxu0 %v992
      %1040 = vmatpush.msra.mxu0 %v991
      %1041 = vmatmul.f32.gmra.mxu0 %v996
      %v1042 = vpop.f32.mrf.mxu0
      %v1043 = vadd.f32 0.0, %v1042
      %1044 = vmatmul.f32.gmra.mxu0 %v999
      %v1045 = vpop.f32.mrf.mxu0
      %v1046 = vadd.f32 0.0, %v1045
      %1047 = vmatmul.f32.gmra.mxu0 %v1002
      %v1048 = vpop.f32.mrf.mxu0
      %v1049 = vadd.f32 0.0, %v1048
      %1050 = vmatmul.f32.gmra.mxu0 %v1005
      %v1051 = vpop.f32.mrf.mxu0
      %v1052 = vadd.f32 0.0, %v1051
      %1053 = vmatmul.f32.gmra.mxu0 %v1008
      %v1054 = vpop.f32.mrf.mxu0
      %v1055 = vadd.f32 0.0, %v1054
      %1056 = vmatmul.f32.gmra.mxu0 %v1011
      %v1057 = vpop.f32.mrf.mxu0
      %v1058 = vadd.f32 0.0, %v1057
      %1059 = vmatmul.f32.gmra.mxu0 %v1014
      %v1060 = vpop.f32.mrf.mxu0
      %v1061 = vadd.f32 0.0, %v1060
      %1062 = vmatmul.f32.gmra.mxu0 %v1017
      %v1063 = vpop.f32.mrf.mxu0
      %v1064 = vadd.f32 0.0, %v1063
      %1065 = vmatmul.f32.gmra.mxu0 %v1020
      %v1066 = vpop.f32.mrf.mxu0
      %v1067 = vadd.f32 0.0, %v1066
      %1068 = vmatmul.f32.gmra.mxu0 %v1023
      %v1069 = vpop.f32.mrf.mxu0
      %v1070 = vadd.f32 0.0, %v1069
      %1071 = vdwg.mxu0
      %v1072 = vadd.f32 %v952, %v1043
      %v1073 = vadd.f32 %v955, %v1046
      %v1074 = vadd.f32 %v958, %v1049
      %v1075 = vadd.f32 %v961, %v1052
      %v1076 = vadd.f32 %v964, %v1055
      %v1077 = vadd.f32 %v967, %v1058
      %v1078 = vadd.f32 %v970, %v1061
      %v1079 = vadd.f32 %v973, %v1064
      %v1080 = vadd.f32 %v976, %v1067
      %v1081 = vadd.f32 %v979, %v1070
      %v1082 = vld [vmem:[#allocation3 + $0xa] sm:$0xff]
      %v1083 = vld [vmem:[#allocation3 + $0x12] sm:$0xff]
      %v1084 = vld [vmem:[#allocation3 + $0x1a] sm:$0xff]
      %v1085 = vld [vmem:[#allocation3 + $0x22] sm:$0xff]
      %v1086 = vld [vmem:[#allocation3 + $0x2a] sm:$0xff]
      %v1087 = vld [vmem:[#allocation3 + $0x32] sm:$0xff]
      %v1088 = vld [vmem:[#allocation3 + $0x3a] sm:$0xff]
      %v1089 = vld [vmem:[#allocation3 + $0x42] sm:$0xff]
      %v1090 = vld [vmem:[#allocation3 + $0x4a] sm:$0xff]
      %v1091 = vld [vmem:[#allocation3 + $0x52] sm:$0x3f]
      %v1092 = vld [vmem:[%s3 + $0x60] sm:$0xff]
      %v1093 = vld [vmem:[%s3 + $0x68] sm:$0xff]
      %v1094 = vld [vmem:[%s3 + $0x70] sm:$0xff]
      %v1095 = vld [vmem:[%s3 + $0x78] sm:$0xff]
      %v1097 = vsel %vm367, %v1082, 0
      %v1100 = vsel %vm367, %v1083, 0
      %v1103 = vsel %vm367, %v1084, 0
      %v1106 = vsel %vm367, %v1085, 0
      %v1109 = vsel %vm367, %v1086, 0
      %v1112 = vsel %vm367, %v1087, 0
      %v1115 = vsel %vm367, %v1088, 0
      %v1118 = vsel %vm367, %v1089, 0
      %v1121 = vsel %vm367, %v1090, 0
      %v1124 = vsel %vm367, %v1091, 0
      %1126 = vmatpush.msra.mxu0 0.0
      %1127 = vmatpush.msra.mxu0 0.0
      %1128 = vmatpush.msra.mxu0 0.0
      %1129 = vmatpush.msra.mxu0 0.0
      %1130 = vmatpush.msra.mxu0 0.0
      %1131 = vmatpush.msra.mxu0 0.0
      %1132 = vmatpush.msra.mxu0 0.0
      %1133 = vmatpush.msra.mxu0 0.0
      %1134 = vmatpush.msra.mxu0 0.0
      %1135 = vmatpush.msra.mxu0 0.0
      %1136 = vmatpush.msra.mxu0 0.0
      %1137 = vmatpush.msra.mxu0 0.0
      %1138 = vmatpush.msra.mxu0 %v1095
      %1139 = vmatpush.msra.mxu0 %v1094
      %1140 = vmatpush.msra.mxu0 %v1093
      %1141 = vmatpush.msra.mxu0 %v1092
      %1142 = vmatmul.f32.gmra.mxu0 %v1097
      %v1143 = vpop.f32.mrf.mxu0
      %v1144 = vadd.f32 0.0, %v1143
      %1145 = vmatmul.f32.gmra.mxu0 %v1100
      %v1146 = vpop.f32.mrf.mxu0
      %v1147 = vadd.f32 0.0, %v1146
      %1148 = vmatmul.f32.gmra.mxu0 %v1103
      %v1149 = vpop.f32.mrf.mxu0
      %v1150 = vadd.f32 0.0, %v1149
      %1151 = vmatmul.f32.gmra.mxu0 %v1106
      %v1152 = vpop.f32.mrf.mxu0
      %v1153 = vadd.f32 0.0, %v1152
      %1154 = vmatmul.f32.gmra.mxu0 %v1109
      %v1155 = vpop.f32.mrf.mxu0
      %v1156 = vadd.f32 0.0, %v1155
      %1157 = vmatmul.f32.gmra.mxu0 %v1112
      %v1158 = vpop.f32.mrf.mxu0
      %v1159 = vadd.f32 0.0, %v1158
      %1160 = vmatmul.f32.gmra.mxu0 %v1115
      %v1161 = vpop.f32.mrf.mxu0
      %v1162 = vadd.f32 0.0, %v1161
      %1163 = vmatmul.f32.gmra.mxu0 %v1118
      %v1164 = vpop.f32.mrf.mxu0
      %v1165 = vadd.f32 0.0, %v1164
      %1166 = vmatmul.f32.gmra.mxu0 %v1121
      %v1167 = vpop.f32.mrf.mxu0
      %v1168 = vadd.f32 0.0, %v1167
      %1169 = vmatmul.f32.gmra.mxu0 %v1124
      %v1170 = vpop.f32.mrf.mxu0
      %v1171 = vadd.f32 0.0, %v1170
      %1172 = vdwg.mxu0
      %v1173 = vadd.f32 %v1072, %v1144
      %v1174 = vadd.f32 %v1073, %v1147
      %v1175 = vadd.f32 %v1074, %v1150
      %v1176 = vadd.f32 %v1075, %v1153
      %v1177 = vadd.f32 %v1076, %v1156
      %v1178 = vadd.f32 %v1077, %v1159
      %v1179 = vadd.f32 %v1078, %v1162
      %v1180 = vadd.f32 %v1079, %v1165
      %v1181 = vadd.f32 %v1080, %v1168
      %v1182 = vadd.f32 %v1081, %v1171
      %v1183 = vld [vmem:[#allocation3 + $0xb] sm:$0xff]
      %v1184 = vld [vmem:[#allocation3 + $0x13] sm:$0xff]
      %v1185 = vld [vmem:[#allocation3 + $0x1b] sm:$0xff]
      %v1186 = vld [vmem:[#allocation3 + $0x23] sm:$0xff]
      %v1187 = vld [vmem:[#allocation3 + $0x2b] sm:$0xff]
      %v1188 = vld [vmem:[#allocation3 + $0x33] sm:$0xff]
      %v1189 = vld [vmem:[#allocation3 + $0x3b] sm:$0xff]
      %v1190 = vld [vmem:[#allocation3 + $0x43] sm:$0xff]
      %v1191 = vld [vmem:[#allocation3 + $0x4b] sm:$0xff]
      %v1192 = vld [vmem:[#allocation3 + $0x53] sm:$0x3f]
      %v1193 = vld [vmem:[%s3 + $0x80] sm:$0xff]
      %v1194 = vld [vmem:[%s3 + $0x88] sm:$0xff]
      %v1195 = vld [vmem:[%s3 + $0x90] sm:$0xff]
      %v1196 = vld [vmem:[%s3 + $0x98] sm:$0xff]
      %v1198 = vsel %vm367, %v1183, 0
      %v1201 = vsel %vm367, %v1184, 0
      %v1204 = vsel %vm367, %v1185, 0
      %v1207 = vsel %vm367, %v1186, 0
      %v1210 = vsel %vm367, %v1187, 0
      %v1213 = vsel %vm367, %v1188, 0
      %v1216 = vsel %vm367, %v1189, 0
      %v1219 = vsel %vm367, %v1190, 0
      %v1222 = vsel %vm367, %v1191, 0
      %v1225 = vsel %vm367, %v1192, 0
      %1227 = vmatpush.msra.mxu0 0.0
      %1228 = vmatpush.msra.mxu0 0.0
      %1229 = vmatpush.msra.mxu0 0.0
      %1230 = vmatpush.msra.mxu0 0.0
      %1231 = vmatpush.msra.mxu0 0.0
      %1232 = vmatpush.msra.mxu0 0.0
      %1233 = vmatpush.msra.mxu0 0.0
      %1234 = vmatpush.msra.mxu0 0.0
      %1235 = vmatpush.msra.mxu0 0.0
      %1236 = vmatpush.msra.mxu0 0.0
      %1237 = vmatpush.msra.mxu0 0.0
      %1238 = vmatpush.msra.mxu0 0.0
      %1239 = vmatpush.msra.mxu0 %v1196
      %1240 = vmatpush.msra.mxu0 %v1195
      %1241 = vmatpush.msra.mxu0 %v1194
      %1242 = vmatpush.msra.mxu0 %v1193
      %1243 = vmatmul.f32.gmra.mxu0 %v1198
      %v1244 = vpop.f32.mrf.mxu0
      %v1245 = vadd.f32 0.0, %v1244
      %1246 = vmatmul.f32.gmra.mxu0 %v1201
      %v1247 = vpop.f32.mrf.mxu0
      %v1248 = vadd.f32 0.0, %v1247
      %1249 = vmatmul.f32.gmra.mxu0 %v1204
      %v1250 = vpop.f32.mrf.mxu0
      %v1251 = vadd.f32 0.0, %v1250
      %1252 = vmatmul.f32.gmra.mxu0 %v1207
      %v1253 = vpop.f32.mrf.mxu0
      %v1254 = vadd.f32 0.0, %v1253
      %1255 = vmatmul.f32.gmra.mxu0 %v1210
      %v1256 = vpop.f32.mrf.mxu0
      %v1257 = vadd.f32 0.0, %v1256
      %1258 = vmatmul.f32.gmra.mxu0 %v1213
      %v1259 = vpop.f32.mrf.mxu0
      %v1260 = vadd.f32 0.0, %v1259
      %1261 = vmatmul.f32.gmra.mxu0 %v1216
      %v1262 = vpop.f32.mrf.mxu0
      %v1263 = vadd.f32 0.0, %v1262
      %1264 = vmatmul.f32.gmra.mxu0 %v1219
      %v1265 = vpop.f32.mrf.mxu0
      %v1266 = vadd.f32 0.0, %v1265
      %1267 = vmatmul.f32.gmra.mxu0 %v1222
      %v1268 = vpop.f32.mrf.mxu0
      %v1269 = vadd.f32 0.0, %v1268
      %1270 = vmatmul.f32.gmra.mxu0 %v1225
      %v1271 = vpop.f32.mrf.mxu0
      %v1272 = vadd.f32 0.0, %v1271
      %1273 = vdwg.mxu0
      %v1274 = vadd.f32 %v1173, %v1245
      %v1275 = vadd.f32 %v1174, %v1248
      %v1276 = vadd.f32 %v1175, %v1251
      %v1277 = vadd.f32 %v1176, %v1254
      %v1278 = vadd.f32 %v1177, %v1257
      %v1279 = vadd.f32 %v1178, %v1260
      %v1280 = vadd.f32 %v1179, %v1263
      %v1281 = vadd.f32 %v1180, %v1266
      %v1282 = vadd.f32 %v1181, %v1269
      %v1283 = vadd.f32 %v1182, %v1272
      %v1284 = vld [vmem:[#allocation3 + $0xc] sm:$0xff]
      %v1285 = vld [vmem:[#allocation3 + $0x14] sm:$0xff]
      %v1286 = vld [vmem:[#allocation3 + $0x1c] sm:$0xff]
      %v1287 = vld [vmem:[#allocation3 + $0x24] sm:$0xff]
      %v1288 = vld [vmem:[#allocation3 + $0x2c] sm:$0xff]
      %v1289 = vld [vmem:[#allocation3 + $0x34] sm:$0xff]
      %v1290 = vld [vmem:[#allocation3 + $0x3c] sm:$0xff]
      %v1291 = vld [vmem:[#allocation3 + $0x44] sm:$0xff]
      %v1292 = vld [vmem:[#allocation3 + $0x4c] sm:$0xff]
      %v1293 = vld [vmem:[#allocation3 + $0x54] sm:$0x3f]
      %v1294 = vld [vmem:[%s3 + $0xa0] sm:$0xff]
      %v1295 = vld [vmem:[%s3 + $0xa8] sm:$0xff]
      %v1296 = vld [vmem:[%s3 + $0xb0] sm:$0xff]
      %v1297 = vld [vmem:[%s3 + $0xb8] sm:$0xff]
      %v1299 = vsel %vm367, %v1284, 0
      %v1302 = vsel %vm367, %v1285, 0
      %v1305 = vsel %vm367, %v1286, 0
      %v1308 = vsel %vm367, %v1287, 0
      %v1311 = vsel %vm367, %v1288, 0
      %v1314 = vsel %vm367, %v1289, 0
      %v1317 = vsel %vm367, %v1290, 0
      %v1320 = vsel %vm367, %v1291, 0
      %v1323 = vsel %vm367, %v1292, 0
      %v1326 = vsel %vm367, %v1293, 0
      %1328 = vmatpush.msra.mxu0 0.0
      %1329 = vmatpush.msra.mxu0 0.0
      %1330 = vmatpush.msra.mxu0 0.0
      %1331 = vmatpush.msra.mxu0 0.0
      %1332 = vmatpush.msra.mxu0 0.0
      %1333 = vmatpush.msra.mxu0 0.0
      %1334 = vmatpush.msra.mxu0 0.0
      %1335 = vmatpush.msra.mxu0 0.0
      %1336 = vmatpush.msra.mxu0 0.0
      %1337 = vmatpush.msra.mxu0 0.0
      %1338 = vmatpush.msra.mxu0 0.0
      %1339 = vmatpush.msra.mxu0 0.0
      %1340 = vmatpush.msra.mxu0 %v1297
      %1341 = vmatpush.msra.mxu0 %v1296
      %1342 = vmatpush.msra.mxu0 %v1295
      %1343 = vmatpush.msra.mxu0 %v1294
      %1344 = vmatmul.f32.gmra.mxu0 %v1299
      %v1345 = vpop.f32.mrf.mxu0
      %v1346 = vadd.f32 0.0, %v1345
      %1347 = vmatmul.f32.gmra.mxu0 %v1302
      %v1348 = vpop.f32.mrf.mxu0
      %v1349 = vadd.f32 0.0, %v1348
      %1350 = vmatmul.f32.gmra.mxu0 %v1305
      %v1351 = vpop.f32.mrf.mxu0
      %v1352 = vadd.f32 0.0, %v1351
      %1353 = vmatmul.f32.gmra.mxu0 %v1308
      %v1354 = vpop.f32.mrf.mxu0
      %v1355 = vadd.f32 0.0, %v1354
      %1356 = vmatmul.f32.gmra.mxu0 %v1311
      %v1357 = vpop.f32.mrf.mxu0
      %v1358 = vadd.f32 0.0, %v1357
      %1359 = vmatmul.f32.gmra.mxu0 %v1314
      %v1360 = vpop.f32.mrf.mxu0
      %v1361 = vadd.f32 0.0, %v1360
      %1362 = vmatmul.f32.gmra.mxu0 %v1317
      %v1363 = vpop.f32.mrf.mxu0
      %v1364 = vadd.f32 0.0, %v1363
      %1365 = vmatmul.f32.gmra.mxu0 %v1320
      %v1366 = vpop.f32.mrf.mxu0
      %v1367 = vadd.f32 0.0, %v1366
      %1368 = vmatmul.f32.gmra.mxu0 %v1323
      %v1369 = vpop.f32.mrf.mxu0
      %v1370 = vadd.f32 0.0, %v1369
      %1371 = vmatmul.f32.gmra.mxu0 %v1326
      %v1372 = vpop.f32.mrf.mxu0
      %v1373 = vadd.f32 0.0, %v1372
      %1374 = vdwg.mxu0
      %v1375 = vadd.f32 %v1274, %v1346
      %v1376 = vadd.f32 %v1275, %v1349
      %v1377 = vadd.f32 %v1276, %v1352
      %v1378 = vadd.f32 %v1277, %v1355
      %v1379 = vadd.f32 %v1278, %v1358
      %v1380 = vadd.f32 %v1279, %v1361
      %v1381 = vadd.f32 %v1280, %v1364
      %v1382 = vadd.f32 %v1281, %v1367
      %v1383 = vadd.f32 %v1282, %v1370
      %v1384 = vadd.f32 %v1283, %v1373
      %v1385 = vld [vmem:[#allocation3 + $0x14] sm:$0xff]
      %v1386 = vld [vmem:[#allocation3 + $0x1c] sm:$0xff]
      %v1387 = vld [vmem:[#allocation3 + $0x24] sm:$0xff]
      %v1388 = vld [vmem:[#allocation3 + $0x2c] sm:$0xff]
      %v1389 = vld [vmem:[#allocation3 + $0x34] sm:$0xff]
      %v1390 = vld [vmem:[#allocation3 + $0x3c] sm:$0xff]
      %v1391 = vld [vmem:[#allocation3 + $0x44] sm:$0xff]
      %v1392 = vld [vmem:[#allocation3 + $0x4c] sm:$0xff]
      %v1393 = vld [vmem:[#allocation3 + $0x54] sm:$0xff]
      %v1394 = vld [vmem:[#allocation3 + $0x5c] sm:$0x3f]
      %v1395 = vld [vmem:[%s3 + $0xc0] sm:$0xff]
      %v1396 = vld [vmem:[%s3 + $0xc8] sm:$0xff]
      %v1397 = vld [vmem:[%s3 + $0xd0] sm:$0xff]
      %v1398 = vld [vmem:[%s3 + $0xd8] sm:$0xff]
      %v1400 = vsel %vm367, %v1385, 0
      %v1403 = vsel %vm367, %v1386, 0
      %v1406 = vsel %vm367, %v1387, 0
      %v1409 = vsel %vm367, %v1388, 0
      %v1412 = vsel %vm367, %v1389, 0
      %v1415 = vsel %vm367, %v1390, 0
      %v1418 = vsel %vm367, %v1391, 0
      %v1421 = vsel %vm367, %v1392, 0
      %v1424 = vsel %vm367, %v1393, 0
      %v1427 = vsel %vm367, %v1394, 0
      %1429 = vmatpush.msra.mxu0 0.0
      %1430 = vmatpush.msra.mxu0 0.0
      %1431 = vmatpush.msra.mxu0 0.0
      %1432 = vmatpush.msra.mxu0 0.0
      %1433 = vmatpush.msra.mxu0 0.0
      %1434 = vmatpush.msra.mxu0 0.0
      %1435 = vmatpush.msra.mxu0 0.0
      %1436 = vmatpush.msra.mxu0 0.0
      %1437 = vmatpush.msra.mxu0 0.0
      %1438 = vmatpush.msra.mxu0 0.0
      %1439 = vmatpush.msra.mxu0 0.0
      %1440 = vmatpush.msra.mxu0 0.0
      %1441 = vmatpush.msra.mxu0 %v1398
      %1442 = vmatpush.msra.mxu0 %v1397
      %1443 = vmatpush.msra.mxu0 %v1396
      %1444 = vmatpush.msra.mxu0 %v1395
      %1445 = vmatmul.f32.gmra.mxu0 %v1400
      %v1446 = vpop.f32.mrf.mxu0
      %v1447 = vadd.f32 0.0, %v1446
      %1448 = vmatmul.f32.gmra.mxu0 %v1403
      %v1449 = vpop.f32.mrf.mxu0
      %v1450 = vadd.f32 0.0, %v1449
      %1451 = vmatmul.f32.gmra.mxu0 %v1406
      %v1452 = vpop.f32.mrf.mxu0
      %v1453 = vadd.f32 0.0, %v1452
      %1454 = vmatmul.f32.gmra.mxu0 %v1409
      %v1455 = vpop.f32.mrf.mxu0
      %v1456 = vadd.f32 0.0, %v1455
      %1457 = vmatmul.f32.gmra.mxu0 %v1412
      %v1458 = vpop.f32.mrf.mxu0
      %v1459 = vadd.f32 0.0, %v1458
      %1460 = vmatmul.f32.gmra.mxu0 %v1415
      %v1461 = vpop.f32.mrf.mxu0
      %v1462 = vadd.f32 0.0, %v1461
      %1463 = vmatmul.f32.gmra.mxu0 %v1418
      %v1464 = vpop.f32.mrf.mxu0
      %v1465 = vadd.f32 0.0, %v1464
      %1466 = vmatmul.f32.gmra.mxu0 %v1421
      %v1467 = vpop.f32.mrf.mxu0
      %v1468 = vadd.f32 0.0, %v1467
      %1469 = vmatmul.f32.gmra.mxu0 %v1424
      %v1470 = vpop.f32.mrf.mxu0
      %v1471 = vadd.f32 0.0, %v1470
      %1472 = vmatmul.f32.gmra.mxu0 %v1427
      %v1473 = vpop.f32.mrf.mxu0
      %v1474 = vadd.f32 0.0, %v1473
      %1475 = vdwg.mxu0
      %v1476 = vadd.f32 %v1375, %v1447
      %v1477 = vadd.f32 %v1376, %v1450
      %v1478 = vadd.f32 %v1377, %v1453
      %v1479 = vadd.f32 %v1378, %v1456
      %v1480 = vadd.f32 %v1379, %v1459
      %v1481 = vadd.f32 %v1380, %v1462
      %v1482 = vadd.f32 %v1381, %v1465
      %v1483 = vadd.f32 %v1382, %v1468
      %v1484 = vadd.f32 %v1383, %v1471
      %v1485 = vadd.f32 %v1384, %v1474
      %v1486 = vld [vmem:[#allocation3 + $0x15] sm:$0xff]
      %v1487 = vld [vmem:[#allocation3 + $0x1d] sm:$0xff]
      %v1488 = vld [vmem:[#allocation3 + $0x25] sm:$0xff]
      %v1489 = vld [vmem:[#allocation3 + $0x2d] sm:$0xff]
      %v1490 = vld [vmem:[#allocation3 + $0x35] sm:$0xff]
      %v1491 = vld [vmem:[#allocation3 + $0x3d] sm:$0xff]
      %v1492 = vld [vmem:[#allocation3 + $0x45] sm:$0xff]
      %v1493 = vld [vmem:[#allocation3 + $0x4d] sm:$0xff]
      %v1494 = vld [vmem:[#allocation3 + $0x55] sm:$0xff]
      %v1495 = vld [vmem:[#allocation3 + $0x5d] sm:$0x3f]
      %v1496 = vld [vmem:[%s3 + $0xe0] sm:$0xff]
      %v1497 = vld [vmem:[%s3 + $0xe8] sm:$0xff]
      %v1498 = vld [vmem:[%s3 + $0xf0] sm:$0xff]
      %v1499 = vld [vmem:[%s3 + $0xf8] sm:$0xff]
      %v1501 = vsel %vm367, %v1486, 0
      %v1504 = vsel %vm367, %v1487, 0
      %v1507 = vsel %vm367, %v1488, 0
      %v1510 = vsel %vm367, %v1489, 0
      %v1513 = vsel %vm367, %v1490, 0
      %v1516 = vsel %vm367, %v1491, 0
      %v1519 = vsel %vm367, %v1492, 0
      %v1522 = vsel %vm367, %v1493, 0
      %v1525 = vsel %vm367, %v1494, 0
      %v1528 = vsel %vm367, %v1495, 0
      %1530 = vmatpush.msra.mxu0 0.0
      %1531 = vmatpush.msra.mxu0 0.0
      %1532 = vmatpush.msra.mxu0 0.0
      %1533 = vmatpush.msra.mxu0 0.0
      %1534 = vmatpush.msra.mxu0 0.0
      %1535 = vmatpush.msra.mxu0 0.0
      %1536 = vmatpush.msra.mxu0 0.0
      %1537 = vmatpush.msra.mxu0 0.0
      %1538 = vmatpush.msra.mxu0 0.0
      %1539 = vmatpush.msra.mxu0 0.0
      %1540 = vmatpush.msra.mxu0 0.0
      %1541 = vmatpush.msra.mxu0 0.0
      %1542 = vmatpush.msra.mxu0 %v1499
      %1543 = vmatpush.msra.mxu0 %v1498
      %1544 = vmatpush.msra.mxu0 %v1497
      %1545 = vmatpush.msra.mxu0 %v1496
      %1546 = vmatmul.f32.gmra.mxu0 %v1501
      %v1547 = vpop.f32.mrf.mxu0
      %v1548 = vadd.f32 0.0, %v1547
      %1549 = vmatmul.f32.gmra.mxu0 %v1504
      %v1550 = vpop.f32.mrf.mxu0
      %v1551 = vadd.f32 0.0, %v1550
      %1552 = vmatmul.f32.gmra.mxu0 %v1507
      %v1553 = vpop.f32.mrf.mxu0
      %v1554 = vadd.f32 0.0, %v1553
      %1555 = vmatmul.f32.gmra.mxu0 %v1510
      %v1556 = vpop.f32.mrf.mxu0
      %v1557 = vadd.f32 0.0, %v1556
      %1558 = vmatmul.f32.gmra.mxu0 %v1513
      %v1559 = vpop.f32.mrf.mxu0
      %v1560 = vadd.f32 0.0, %v1559
      %1561 = vmatmul.f32.gmra.mxu0 %v1516
      %v1562 = vpop.f32.mrf.mxu0
      %v1563 = vadd.f32 0.0, %v1562
      %1564 = vmatmul.f32.gmra.mxu0 %v1519
      %v1565 = vpop.f32.mrf.mxu0
      %v1566 = vadd.f32 0.0, %v1565
      %1567 = vmatmul.f32.gmra.mxu0 %v1522
      %v1568 = vpop.f32.mrf.mxu0
      %v1569 = vadd.f32 0.0, %v1568
      %1570 = vmatmul.f32.gmra.mxu0 %v1525
      %v1571 = vpop.f32.mrf.mxu0
      %v1572 = vadd.f32 0.0, %v1571
      %1573 = vmatmul.f32.gmra.mxu0 %v1528
      %v1574 = vpop.f32.mrf.mxu0
      %v1575 = vadd.f32 0.0, %v1574
      %1576 = vdwg.mxu0
      %v1577 = vadd.f32 %v1476, %v1548
      %v1578 = vadd.f32 %v1477, %v1551
      %v1579 = vadd.f32 %v1478, %v1554
      %v1580 = vadd.f32 %v1479, %v1557
      %v1581 = vadd.f32 %v1480, %v1560
      %v1582 = vadd.f32 %v1481, %v1563
      %v1583 = vadd.f32 %v1482, %v1566
      %v1584 = vadd.f32 %v1483, %v1569
      %v1585 = vadd.f32 %v1484, %v1572
      %v1586 = vadd.f32 %v1485, %v1575
      %v1587 = vld [vmem:[#allocation3 + $0x16] sm:$0xff]
      %v1588 = vld [vmem:[#allocation3 + $0x1e] sm:$0xff]
      %v1589 = vld [vmem:[#allocation3 + $0x26] sm:$0xff]
      %v1590 = vld [vmem:[#allocation3 + $0x2e] sm:$0xff]
      %v1591 = vld [vmem:[#allocation3 + $0x36] sm:$0xff]
      %v1592 = vld [vmem:[#allocation3 + $0x3e] sm:$0xff]
      %v1593 = vld [vmem:[#allocation3 + $0x46] sm:$0xff]
      %v1594 = vld [vmem:[#allocation3 + $0x4e] sm:$0xff]
      %v1595 = vld [vmem:[#allocation3 + $0x56] sm:$0xff]
      %v1596 = vld [vmem:[#allocation3 + $0x5e] sm:$0x3f]
      %v1597 = vld [vmem:[%s3 + $0x100] sm:$0xff]
      %v1598 = vld [vmem:[%s3 + $0x108] sm:$0xff]
      %v1599 = vld [vmem:[%s3 + $0x110] sm:$0xff]
      %v1600 = vld [vmem:[%s3 + $0x118] sm:$0xff]
      %v1602 = vsel %vm367, %v1587, 0
      %v1605 = vsel %vm367, %v1588, 0
      %v1608 = vsel %vm367, %v1589, 0
      %v1611 = vsel %vm367, %v1590, 0
      %v1614 = vsel %vm367, %v1591, 0
      %v1617 = vsel %vm367, %v1592, 0
      %v1620 = vsel %vm367, %v1593, 0
      %v1623 = vsel %vm367, %v1594, 0
      %v1626 = vsel %vm367, %v1595, 0
      %v1629 = vsel %vm367, %v1596, 0
      %1631 = vmatpush.msra.mxu0 0.0
      %1632 = vmatpush.msra.mxu0 0.0
      %1633 = vmatpush.msra.mxu0 0.0
      %1634 = vmatpush.msra.mxu0 0.0
      %1635 = vmatpush.msra.mxu0 0.0
      %1636 = vmatpush.msra.mxu0 0.0
      %1637 = vmatpush.msra.mxu0 0.0
      %1638 = vmatpush.msra.mxu0 0.0
      %1639 = vmatpush.msra.mxu0 0.0
      %1640 = vmatpush.msra.mxu0 0.0
      %1641 = vmatpush.msra.mxu0 0.0
      %1642 = vmatpush.msra.mxu0 0.0
      %1643 = vmatpush.msra.mxu0 %v1600
      %1644 = vmatpush.msra.mxu0 %v1599
      %1645 = vmatpush.msra.mxu0 %v1598
      %1646 = vmatpush.msra.mxu0 %v1597
      %1647 = vmatmul.f32.gmra.mxu0 %v1602
      %v1648 = vpop.f32.mrf.mxu0
      %v1649 = vadd.f32 0.0, %v1648
      %1650 = vmatmul.f32.gmra.mxu0 %v1605
      %v1651 = vpop.f32.mrf.mxu0
      %v1652 = vadd.f32 0.0, %v1651
      %1653 = vmatmul.f32.gmra.mxu0 %v1608
      %v1654 = vpop.f32.mrf.mxu0
      %v1655 = vadd.f32 0.0, %v1654
      %1656 = vmatmul.f32.gmra.mxu0 %v1611
      %v1657 = vpop.f32.mrf.mxu0
      %v1658 = vadd.f32 0.0, %v1657
      %1659 = vmatmul.f32.gmra.mxu0 %v1614
      %v1660 = vpop.f32.mrf.mxu0
      %v1661 = vadd.f32 0.0, %v1660
      %1662 = vmatmul.f32.gmra.mxu0 %v1617
      %v1663 = vpop.f32.mrf.mxu0
      %v1664 = vadd.f32 0.0, %v1663
      %1665 = vmatmul.f32.gmra.mxu0 %v1620
      %v1666 = vpop.f32.mrf.mxu0
      %v1667 = vadd.f32 0.0, %v1666
      %1668 = vmatmul.f32.gmra.mxu0 %v1623
      %v1669 = vpop.f32.mrf.mxu0
      %v1670 = vadd.f32 0.0, %v1669
      %1671 = vmatmul.f32.gmra.mxu0 %v1626
      %v1672 = vpop.f32.mrf.mxu0
      %v1673 = vadd.f32 0.0, %v1672
      %1674 = vmatmul.f32.gmra.mxu0 %v1629
      %v1675 = vpop.f32.mrf.mxu0
      %v1676 = vadd.f32 0.0, %v1675
      %1677 = vdwg.mxu0
      %v1678 = vadd.f32 %v1577, %v1649
      %v1679 = vadd.f32 %v1578, %v1652
      %v1680 = vadd.f32 %v1579, %v1655
      %v1681 = vadd.f32 %v1580, %v1658
      %v1682 = vadd.f32 %v1581, %v1661
      %v1683 = vadd.f32 %v1582, %v1664
      %v1684 = vadd.f32 %v1583, %v1667
      %v1685 = vadd.f32 %v1584, %v1670
      %v1686 = vadd.f32 %v1585, %v1673
      %v1687 = vadd.f32 %v1586, %v1676
      %1688 = vst.msk [vmem:[#allocation4] sm:$0xff] %vm382, %v1678
      %1689 = vst.msk [vmem:[#allocation4 + $0x8] sm:$0xff] %vm382, %v1679
      %1690 = vst.msk [vmem:[#allocation4 + $0x10] sm:$0xff] %vm382, %v1680
      %1691 = vst.msk [vmem:[#allocation4 + $0x18] sm:$0xff] %vm382, %v1681
      %1692 = vst.msk [vmem:[#allocation4 + $0x20] sm:$0xff] %vm382, %v1682
      %1693 = vst.msk [vmem:[#allocation4 + $0x28] sm:$0xff] %vm382, %v1683
      %1694 = vst.msk [vmem:[#allocation4 + $0x30] sm:$0xff] %vm382, %v1684
      %1695 = vst.msk [vmem:[#allocation4 + $0x38] sm:$0xff] %vm382, %v1685
      %1696 = vst.msk [vmem:[#allocation4 + $0x40] sm:$0xff] %vm382, %v1686
      %vm1697 = vcmask 521216
      %1698 = vst.msk [vmem:[#allocation4 + $0x48] sm:$0x3f] %vm1697, %v1687
      %v1699 = vld [vmem:[%s4] sm:$0x1]
      %v1700 = vld [vmem:[#allocation4] ss:$2 sm:$0xf]
      %s1701 = scalar_lea.vmem [#allocation4], 1
      %v1702 = vld [vmem:[%s1701] ss:$2 sm:$0xf]
      %v1703 = vmax.f32 %v1700, %v1702
      %s1704 = scalar_lea.vmem [#allocation4], 10
      %v1705 = vld [vmem:[%s1704] ss:$2 sm:$0xf]
      %s1706 = scalar_lea.vmem [#allocation4], 11
      %v1707 = vld [vmem:[%s1706] ss:$2 sm:$0xf]
      %v1708 = vmax.f32 %v1705, %v1707
      %v1709 = vmax.f32 %v1703, %v1708
      %v1711 = vperm.slane %v1699, 0
      %v1713 = vadd.f32 %v1709, %v1711
      %vm1714 = vcmp.ge.f32.partialorder %v1713, 0.0
      %v1715 = vmul.f32 %v1713, 0.1
      %v1716 = vsel %vm1714, %v1713, %v1715
      %1717 = vst.msk [vmem:[#allocation5 + $0x7] sm:$0xf] %vm387, %v1716
      %s1718 = scalar_lea.vmem [#allocation4], 20
      %v1719 = vld [vmem:[%s1718] ss:$2 sm:$0xf]
      %s1720 = scalar_lea.vmem [#allocation4], 21
      %v1721 = vld [vmem:[%s1720] ss:$2 sm:$0xf]
      %v1722 = vmax.f32 %v1719, %v1721
      %s1723 = scalar_lea.vmem [#allocation4], 30
      %v1724 = vld [vmem:[%s1723] ss:$2 sm:$0xf]
      %s1725 = scalar_lea.vmem [#allocation4], 31
      %v1726 = vld [vmem:[%s1725] ss:$2 sm:$0xf]
      %v1727 = vmax.f32 %v1724, %v1726
      %v1728 = vmax.f32 %v1722, %v1727
      %v1729 = vadd.f32 %v1728, %v1711
      %vm1730 = vcmp.ge.f32.partialorder %v1729, 0.0
      %v1731 = vmul.f32 %v1729, 0.1
      %v1732 = vsel %vm1730, %v1729, %v1731
      %1733 = vst.msk [vmem:[#allocation5 + $0xd] sm:$0xf] %vm387, %v1732
      %s1734 = scalar_lea.vmem [#allocation4], 40
      %v1735 = vld [vmem:[%s1734] ss:$2 sm:$0xf]
      %s1736 = scalar_lea.vmem [#allocation4], 41
      %v1737 = vld [vmem:[%s1736] ss:$2 sm:$0xf]
      %v1738 = vmax.f32 %v1735, %v1737
      %s1739 = scalar_lea.vmem [#allocation4], 50
      %v1740 = vld [vmem:[%s1739] ss:$2 sm:$0xf]
      %s1741 = scalar_lea.vmem [#allocation4], 51
      %v1742 = vld [vmem:[%s1741] ss:$2 sm:$0xf]
      %v1743 = vmax.f32 %v1740, %v1742
      %v1744 = vmax.f32 %v1738, %v1743
      %v1745 = vadd.f32 %v1744, %v1711
      %vm1746 = vcmp.ge.f32.partialorder %v1745, 0.0
      %v1747 = vmul.f32 %v1745, 0.1
      %v1748 = vsel %vm1746, %v1745, %v1747
      %1749 = vst.msk [vmem:[#allocation5 + $0x13] sm:$0xf] %vm387, %v1748
      %s1750 = scalar_lea.vmem [#allocation4], 60
      %v1751 = vld [vmem:[%s1750] ss:$2 sm:$0xf]
      %s1752 = scalar_lea.vmem [#allocation4], 61
      %v1753 = vld [vmem:[%s1752] ss:$2 sm:$0xf]
      %v1754 = vmax.f32 %v1751, %v1753
      %s1755 = scalar_lea.vmem [#allocation4], 70
      %v1756 = vld [vmem:[%s1755] ss:$2 sm:$0xf]
      %s1757 = scalar_lea.vmem [#allocation4], 71
      %v1758 = vld [vmem:[%s1757] ss:$2 sm:$0xf]
      %v1759 = vmax.f32 %v1756, %v1758
      %v1760 = vmax.f32 %v1754, %v1759
      %v1761 = vadd.f32 %v1760, %v1711
      %vm1762 = vcmp.ge.f32.partialorder %v1761, 0.0
      %v1763 = vmul.f32 %v1761, 0.1
      %v1764 = vsel %vm1762, %v1761, %v1763
      %1765 = vst.msk [vmem:[#allocation5 + $0x19] sm:$0xf] %vm387, %v1764
      %v1766 = vld [vmem:[#allocation5] sm:$0xff]
      %v1767 = vld [vmem:[#allocation5 + $0x8] sm:$0xff]
      %v1768 = vld [vmem:[#allocation5 + $0x10] sm:$0x3f]
      %v1769 = vld [vmem:[%s5] sm:$0xff]
      %v1770 = vld [vmem:[%s5 + $0x8] sm:$0xff]
      %v1771 = vld [vmem:[%s5 + $0x10] sm:$0xff]
      %v1772 = vld [vmem:[%s5 + $0x18] sm:$0xff]
      %v1773 = vld [vmem:[%s5 + $0x20] sm:$0xff]
      %v1774 = vld [vmem:[%s5 + $0x28] sm:$0xff]
      %v1775 = vld [vmem:[%s5 + $0x30] sm:$0xff]
      %v1776 = vld [vmem:[%s5 + $0x38] sm:$0xff]
      %v1777 = vld [vmem:[#allocation5 + $0x1] sm:$0xff]
      %v1778 = vld [vmem:[#allocation5 + $0x9] sm:$0xff]
      %v1779 = vld [vmem:[#allocation5 + $0x11] sm:$0x3f]
      %v1780 = vld [vmem:[%s5 + $0x40] sm:$0xff]
      %v1781 = vld [vmem:[%s5 + $0x48] sm:$0xff]
      %v1782 = vld [vmem:[%s5 + $0x50] sm:$0xff]
      %v1783 = vld [vmem:[%s5 + $0x58] sm:$0xff]
      %v1784 = vld [vmem:[%s5 + $0x60] sm:$0xff]
      %v1785 = vld [vmem:[%s5 + $0x68] sm:$0xff]
      %v1786 = vld [vmem:[%s5 + $0x70] sm:$0xff]
      %v1787 = vld [vmem:[%s5 + $0x78] sm:$0xff]
      %v1789 = vsel %vm382, %v1777, 0
      %v1792 = vsel %vm382, %v1778, 0
      %v1795 = vsel %vm382, %v1779, 0
      %1797 = vmatpush.msra.mxu0 0.0
      %1798 = vmatpush.msra.mxu0 0.0
      %1799 = vmatpush.msra.mxu0 0.0
      %1800 = vmatpush.msra.mxu0 0.0
      %1801 = vmatpush.msra.mxu0 0.0
      %1802 = vmatpush.msra.mxu0 0.0
      %1803 = vmatpush.msra.mxu0 0.0
      %1804 = vmatpush.msra.mxu0 0.0
      %1805 = vmatpush.msra.mxu0 %v1787
      %1806 = vmatpush.msra.mxu0 %v1786
      %1807 = vmatpush.msra.mxu0 %v1785
      %1808 = vmatpush.msra.mxu0 %v1784
      %1809 = vmatpush.msra.mxu0 %v1783
      %1810 = vmatpush.msra.mxu0 %v1782
      %1811 = vmatpush.msra.mxu0 %v1781
      %1812 = vmatpush.msra.mxu0 %v1780
      %1813 = vmatmul.f32.gmra.mxu0 %v1789
      %v1814 = vpop.f32.mrf.mxu0
      %v1815 = vadd.f32 0.0, %v1814
      %1816 = vmatmul.f32.gmra.mxu0 %v1792
      %v1817 = vpop.f32.mrf.mxu0
      %v1818 = vadd.f32 0.0, %v1817
      %1819 = vmatmul.f32.gmra.mxu0 %v1795
      %v1820 = vpop.f32.mrf.mxu0
      %v1821 = vadd.f32 0.0, %v1820
      %1822 = vdwg.mxu0
      %v1824 = vsel %vm382, %v1766, 0
      %v1827 = vsel %vm382, %v1767, 0
      %v1830 = vsel %vm382, %v1768, 0
      %1832 = vmatpush.msra.mxu0 0.0
      %1833 = vmatpush.msra.mxu0 0.0
      %1834 = vmatpush.msra.mxu0 0.0
      %1835 = vmatpush.msra.mxu0 0.0
      %1836 = vmatpush.msra.mxu0 0.0
      %1837 = vmatpush.msra.mxu0 0.0
      %1838 = vmatpush.msra.mxu0 0.0
      %1839 = vmatpush.msra.mxu0 0.0
      %1840 = vmatpush.msra.mxu0 %v1776
      %1841 = vmatpush.msra.mxu0 %v1775
      %1842 = vmatpush.msra.mxu0 %v1774
      %1843 = vmatpush.msra.mxu0 %v1773
      %1844 = vmatpush.msra.mxu0 %v1772
      %1845 = vmatpush.msra.mxu0 %v1771
      %1846 = vmatpush.msra.mxu0 %v1770
      %1847 = vmatpush.msra.mxu0 %v1769
      %1848 = vmatmul.f32.gmra.mxu0 %v1824
      %v1849 = vpop.f32.mrf.mxu0
      %v1850 = vadd.f32 %v1815, %v1849
      %1851 = vmatmul.f32.gmra.mxu0 %v1827
      %v1852 = vpop.f32.mrf.mxu0
      %v1853 = vadd.f32 %v1818, %v1852
      %1854 = vmatmul.f32.gmra.mxu0 %v1830
      %v1855 = vpop.f32.mrf.mxu0
      %v1856 = vadd.f32 %v1821, %v1855
      %1857 = vdwg.mxu0
      %v1858 = vld [vmem:[#allocation5 + $0x2] sm:$0xff]
      %v1859 = vld [vmem:[#allocation5 + $0xa] sm:$0xff]
      %v1860 = vld [vmem:[#allocation5 + $0x12] sm:$0x3f]
      %v1861 = vld [vmem:[%s5 + $0x80] sm:$0xff]
      %v1862 = vld [vmem:[%s5 + $0x88] sm:$0xff]
      %v1863 = vld [vmem:[%s5 + $0x90] sm:$0xff]
      %v1864 = vld [vmem:[%s5 + $0x98] sm:$0xff]
      %v1865 = vld [vmem:[%s5 + $0xa0] sm:$0xff]
      %v1866 = vld [vmem:[%s5 + $0xa8] sm:$0xff]
      %v1867 = vld [vmem:[%s5 + $0xb0] sm:$0xff]
      %v1868 = vld [vmem:[%s5 + $0xb8] sm:$0xff]
      %v1870 = vsel %vm382, %v1858, 0
      %v1873 = vsel %vm382, %v1859, 0
      %v1876 = vsel %vm382, %v1860, 0
      %1878 = vmatpush.msra.mxu0 0.0
      %1879 = vmatpush.msra.mxu0 0.0
      %1880 = vmatpush.msra.mxu0 0.0
      %1881 = vmatpush.msra.mxu0 0.0
      %1882 = vmatpush.msra.mxu0 0.0
      %1883 = vmatpush.msra.mxu0 0.0
      %1884 = vmatpush.msra.mxu0 0.0
      %1885 = vmatpush.msra.mxu0 0.0
      %1886 = vmatpush.msra.mxu0 %v1868
      %1887 = vmatpush.msra.mxu0 %v1867
      %1888 = vmatpush.msra.mxu0 %v1866
      %1889 = vmatpush.msra.mxu0 %v1865
      %1890 = vmatpush.msra.mxu0 %v1864
      %1891 = vmatpush.msra.mxu0 %v1863
      %1892 = vmatpush.msra.mxu0 %v1862
      %1893 = vmatpush.msra.mxu0 %v1861
      %1894 = vmatmul.f32.gmra.mxu0 %v1870
      %v1895 = vpop.f32.mrf.mxu0
      %v1896 = vadd.f32 0.0, %v1895
      %1897 = vmatmul.f32.gmra.mxu0 %v1873
      %v1898 = vpop.f32.mrf.mxu0
      %v1899 = vadd.f32 0.0, %v1898
      %1900 = vmatmul.f32.gmra.mxu0 %v1876
      %v1901 = vpop.f32.mrf.mxu0
      %v1902 = vadd.f32 0.0, %v1901
      %1903 = vdwg.mxu0
      %v1904 = vadd.f32 %v1850, %v1896
      %v1905 = vadd.f32 %v1853, %v1899
      %v1906 = vadd.f32 %v1856, %v1902
      %v1907 = vld [vmem:[#allocation5 + $0x6] sm:$0xff]
      %v1908 = vld [vmem:[#allocation5 + $0xe] sm:$0xff]
      %v1909 = vld [vmem:[#allocation5 + $0x16] sm:$0x3f]
      %v1910 = vld [vmem:[%s5 + $0xc0] sm:$0xff]
      %v1911 = vld [vmem:[%s5 + $0xc8] sm:$0xff]
      %v1912 = vld [vmem:[%s5 + $0xd0] sm:$0xff]
      %v1913 = vld [vmem:[%s5 + $0xd8] sm:$0xff]
      %v1914 = vld [vmem:[%s5 + $0xe0] sm:$0xff]
      %v1915 = vld [vmem:[%s5 + $0xe8] sm:$0xff]
      %v1916 = vld [vmem:[%s5 + $0xf0] sm:$0xff]
      %v1917 = vld [vmem:[%s5 + $0xf8] sm:$0xff]
      %v1919 = vsel %vm382, %v1907, 0
      %v1922 = vsel %vm382, %v1908, 0
      %v1925 = vsel %vm382, %v1909, 0
      %1927 = vmatpush.msra.mxu0 0.0
      %1928 = vmatpush.msra.mxu0 0.0
      %1929 = vmatpush.msra.mxu0 0.0
      %1930 = vmatpush.msra.mxu0 0.0
      %1931 = vmatpush.msra.mxu0 0.0
      %1932 = vmatpush.msra.mxu0 0.0
      %1933 = vmatpush.msra.mxu0 0.0
      %1934 = vmatpush.msra.mxu0 0.0
      %1935 = vmatpush.msra.mxu0 %v1917
      %1936 = vmatpush.msra.mxu0 %v1916
      %1937 = vmatpush.msra.mxu0 %v1915
      %1938 = vmatpush.msra.mxu0 %v1914
      %1939 = vmatpush.msra.mxu0 %v1913
      %1940 = vmatpush.msra.mxu0 %v1912
      %1941 = vmatpush.msra.mxu0 %v1911
      %1942 = vmatpush.msra.mxu0 %v1910
      %1943 = vmatmul.f32.gmra.mxu0 %v1919
      %v1944 = vpop.f32.mrf.mxu0
      %v1945 = vadd.f32 0.0, %v1944
      %1946 = vmatmul.f32.gmra.mxu0 %v1922
      %v1947 = vpop.f32.mrf.mxu0
      %v1948 = vadd.f32 0.0, %v1947
      %1949 = vmatmul.f32.gmra.mxu0 %v1925
      %v1950 = vpop.f32.mrf.mxu0
      %v1951 = vadd.f32 0.0, %v1950
      %1952 = vdwg.mxu0
      %v1953 = vadd.f32 %v1904, %v1945
      %v1954 = vadd.f32 %v1905, %v1948
      %v1955 = vadd.f32 %v1906, %v1951
      %v1956 = vld [vmem:[#allocation5 + $0x7] sm:$0xff]
      %v1957 = vld [vmem:[#allocation5 + $0xf] sm:$0xff]
      %v1958 = vld [vmem:[#allocation5 + $0x17] sm:$0x3f]
      %v1959 = vld [vmem:[%s5 + $0x100] sm:$0xff]
      %v1960 = vld [vmem:[%s5 + $0x108] sm:$0xff]
      %v1961 = vld [vmem:[%s5 + $0x110] sm:$0xff]
      %v1962 = vld [vmem:[%s5 + $0x118] sm:$0xff]
      %v1963 = vld [vmem:[%s5 + $0x120] sm:$0xff]
      %v1964 = vld [vmem:[%s5 + $0x128] sm:$0xff]
      %v1965 = vld [vmem:[%s5 + $0x130] sm:$0xff]
      %v1966 = vld [vmem:[%s5 + $0x138] sm:$0xff]
      %v1968 = vsel %vm382, %v1956, 0
      %v1971 = vsel %vm382, %v1957, 0
      %v1974 = vsel %vm382, %v1958, 0
      %1976 = vmatpush.msra.mxu0 0.0
      %1977 = vmatpush.msra.mxu0 0.0
      %1978 = vmatpush.msra.mxu0 0.0
      %1979 = vmatpush.msra.mxu0 0.0
      %1980 = vmatpush.msra.mxu0 0.0
      %1981 = vmatpush.msra.mxu0 0.0
      %1982 = vmatpush.msra.mxu0 0.0
      %1983 = vmatpush.msra.mxu0 0.0
      %1984 = vmatpush.msra.mxu0 %v1966
      %1985 = vmatpush.msra.mxu0 %v1965
      %1986 = vmatpush.msra.mxu0 %v1964
      %1987 = vmatpush.msra.mxu0 %v1963
      %1988 = vmatpush.msra.mxu0 %v1962
      %1989 = vmatpush.msra.mxu0 %v1961
      %1990 = vmatpush.msra.mxu0 %v1960
      %1991 = vmatpush.msra.mxu0 %v1959
      %1992 = vmatmul.f32.gmra.mxu0 %v1968
      %v1993 = vpop.f32.mrf.mxu0
      %v1994 = vadd.f32 0.0, %v1993
      %1995 = vmatmul.f32.gmra.mxu0 %v1971
      %v1996 = vpop.f32.mrf.mxu0
      %v1997 = vadd.f32 0.0, %v1996
      %1998 = vmatmul.f32.gmra.mxu0 %v1974
      %v1999 = vpop.f32.mrf.mxu0
      %v2000 = vadd.f32 0.0, %v1999
      %2001 = vdwg.mxu0
      %v2002 = vadd.f32 %v1953, %v1994
      %v2003 = vadd.f32 %v1954, %v1997
      %v2004 = vadd.f32 %v1955, %v2000
      %v2005 = vld [vmem:[#allocation5 + $0x8] sm:$0xff]
      %v2006 = vld [vmem:[#allocation5 + $0x10] sm:$0xff]
      %v2007 = vld [vmem:[#allocation5 + $0x18] sm:$0x3f]
      %v2008 = vld [vmem:[%s5 + $0x140] sm:$0xff]
      %v2009 = vld [vmem:[%s5 + $0x148] sm:$0xff]
      %v2010 = vld [vmem:[%s5 + $0x150] sm:$0xff]
      %v2011 = vld [vmem:[%s5 + $0x158] sm:$0xff]
      %v2012 = vld [vmem:[%s5 + $0x160] sm:$0xff]
      %v2013 = vld [vmem:[%s5 + $0x168] sm:$0xff]
      %v2014 = vld [vmem:[%s5 + $0x170] sm:$0xff]
      %v2015 = vld [vmem:[%s5 + $0x178] sm:$0xff]
      %v2017 = vsel %vm382, %v2005, 0
      %v2020 = vsel %vm382, %v2006, 0
      %v2023 = vsel %vm382, %v2007, 0
      %2025 = vmatpush.msra.mxu0 0.0
      %2026 = vmatpush.msra.mxu0 0.0
      %2027 = vmatpush.msra.mxu0 0.0
      %2028 = vmatpush.msra.mxu0 0.0
      %2029 = vmatpush.msra.mxu0 0.0
      %2030 = vmatpush.msra.mxu0 0.0
      %2031 = vmatpush.msra.mxu0 0.0
      %2032 = vmatpush.msra.mxu0 0.0
      %2033 = vmatpush.msra.mxu0 %v2015
      %2034 = vmatpush.msra.mxu0 %v2014
      %2035 = vmatpush.msra.mxu0 %v2013
      %2036 = vmatpush.msra.mxu0 %v2012
      %2037 = vmatpush.msra.mxu0 %v2011
      %2038 = vmatpush.msra.mxu0 %v2010
      %2039 = vmatpush.msra.mxu0 %v2009
      %2040 = vmatpush.msra.mxu0 %v2008
      %2041 = vmatmul.f32.gmra.mxu0 %v2017
      %v2042 = vpop.f32.mrf.mxu0
      %v2043 = vadd.f32 0.0, %v2042
      %2044 = vmatmul.f32.gmra.mxu0 %v2020
      %v2045 = vpop.f32.mrf.mxu0
      %v2046 = vadd.f32 0.0, %v2045
      %2047 = vmatmul.f32.gmra.mxu0 %v2023
      %v2048 = vpop.f32.mrf.mxu0
      %v2049 = vadd.f32 0.0, %v2048
      %2050 = vdwg.mxu0
      %v2051 = vadd.f32 %v2002, %v2043
      %v2052 = vadd.f32 %v2003, %v2046
      %v2053 = vadd.f32 %v2004, %v2049
      %v2054 = vld [vmem:[#allocation5 + $0xc] sm:$0xff]
      %v2055 = vld [vmem:[#allocation5 + $0x14] sm:$0xff]
      %v2056 = vld [vmem:[#allocation5 + $0x1c] sm:$0x3f]
      %v2057 = vld [vmem:[%s5 + $0x180] sm:$0xff]
      %v2058 = vld [vmem:[%s5 + $0x188] sm:$0xff]
      %v2059 = vld [vmem:[%s5 + $0x190] sm:$0xff]
      %v2060 = vld [vmem:[%s5 + $0x198] sm:$0xff]
      %v2061 = vld [vmem:[%s5 + $0x1a0] sm:$0xff]
      %v2062 = vld [vmem:[%s5 + $0x1a8] sm:$0xff]
      %v2063 = vld [vmem:[%s5 + $0x1b0] sm:$0xff]
      %v2064 = vld [vmem:[%s5 + $0x1b8] sm:$0xff]
      %v2066 = vsel %vm382, %v2054, 0
      %v2069 = vsel %vm382, %v2055, 0
      %v2072 = vsel %vm382, %v2056, 0
      %2074 = vmatpush.msra.mxu0 0.0
      %2075 = vmatpush.msra.mxu0 0.0
      %2076 = vmatpush.msra.mxu0 0.0
      %2077 = vmatpush.msra.mxu0 0.0
      %2078 = vmatpush.msra.mxu0 0.0
      %2079 = vmatpush.msra.mxu0 0.0
      %2080 = vmatpush.msra.mxu0 0.0
      %2081 = vmatpush.msra.mxu0 0.0
      %2082 = vmatpush.msra.mxu0 %v2064
      %2083 = vmatpush.msra.mxu0 %v2063
      %2084 = vmatpush.msra.mxu0 %v2062
      %2085 = vmatpush.msra.mxu0 %v2061
      %2086 = vmatpush.msra.mxu0 %v2060
      %2087 = vmatpush.msra.mxu0 %v2059
      %2088 = vmatpush.msra.mxu0 %v2058
      %2089 = vmatpush.msra.mxu0 %v2057
      %2090 = vmatmul.f32.gmra.mxu0 %v2066
      %v2091 = vpop.f32.mrf.mxu0
      %v2092 = vadd.f32 0.0, %v2091
      %2093 = vmatmul.f32.gmra.mxu0 %v2069
      %v2094 = vpop.f32.mrf.mxu0
      %v2095 = vadd.f32 0.0, %v2094
      %2096 = vmatmul.f32.gmra.mxu0 %v2072
      %v2097 = vpop.f32.mrf.mxu0
      %v2098 = vadd.f32 0.0, %v2097
      %2099 = vdwg.mxu0
      %v2100 = vadd.f32 %v2051, %v2092
      %v2101 = vadd.f32 %v2052, %v2095
      %v2102 = vadd.f32 %v2053, %v2098
      %v2103 = vld [vmem:[#allocation5 + $0xd] sm:$0xff]
      %v2104 = vld [vmem:[#allocation5 + $0x15] sm:$0xff]
      %v2105 = vld [vmem:[#allocation5 + $0x1d] sm:$0x3f]
      %v2106 = vld [vmem:[%s5 + $0x1c0] sm:$0xff]
      %v2107 = vld [vmem:[%s5 + $0x1c8] sm:$0xff]
      %v2108 = vld [vmem:[%s5 + $0x1d0] sm:$0xff]
      %v2109 = vld [vmem:[%s5 + $0x1d8] sm:$0xff]
      %v2110 = vld [vmem:[%s5 + $0x1e0] sm:$0xff]
      %v2111 = vld [vmem:[%s5 + $0x1e8] sm:$0xff]
      %v2112 = vld [vmem:[%s5 + $0x1f0] sm:$0xff]
      %v2113 = vld [vmem:[%s5 + $0x1f8] sm:$0xff]
      %v2115 = vsel %vm382, %v2103, 0
      %v2118 = vsel %vm382, %v2104, 0
      %v2121 = vsel %vm382, %v2105, 0
      %2123 = vmatpush.msra.mxu0 0.0
      %2124 = vmatpush.msra.mxu0 0.0
      %2125 = vmatpush.msra.mxu0 0.0
      %2126 = vmatpush.msra.mxu0 0.0
      %2127 = vmatpush.msra.mxu0 0.0
      %2128 = vmatpush.msra.mxu0 0.0
      %2129 = vmatpush.msra.mxu0 0.0
      %2130 = vmatpush.msra.mxu0 0.0
      %2131 = vmatpush.msra.mxu0 %v2113
      %2132 = vmatpush.msra.mxu0 %v2112
      %2133 = vmatpush.msra.mxu0 %v2111
      %2134 = vmatpush.msra.mxu0 %v2110
      %2135 = vmatpush.msra.mxu0 %v2109
      %2136 = vmatpush.msra.mxu0 %v2108
      %2137 = vmatpush.msra.mxu0 %v2107
      %2138 = vmatpush.msra.mxu0 %v2106
      %2139 = vmatmul.f32.gmra.mxu0 %v2115
      %v2140 = vpop.f32.mrf.mxu0
      %v2141 = vadd.f32 0.0, %v2140
      %2142 = vmatmul.f32.gmra.mxu0 %v2118
      %v2143 = vpop.f32.mrf.mxu0
      %v2144 = vadd.f32 0.0, %v2143
      %2145 = vmatmul.f32.gmra.mxu0 %v2121
      %v2146 = vpop.f32.mrf.mxu0
      %v2147 = vadd.f32 0.0, %v2146
      %2148 = vdwg.mxu0
      %v2149 = vadd.f32 %v2100, %v2141
      %v2150 = vadd.f32 %v2101, %v2144
      %v2151 = vadd.f32 %v2102, %v2147
      %v2152 = vld [vmem:[#allocation5 + $0xe] sm:$0xff]
      %v2153 = vld [vmem:[#allocation5 + $0x16] sm:$0xff]
      %v2154 = vld [vmem:[#allocation5 + $0x1e] sm:$0x3f]
      %v2155 = vld [vmem:[%s5 + $0x200] sm:$0xff]
      %v2156 = vld [vmem:[%s5 + $0x208] sm:$0xff]
      %v2157 = vld [vmem:[%s5 + $0x210] sm:$0xff]
      %v2158 = vld [vmem:[%s5 + $0x218] sm:$0xff]
      %v2159 = vld [vmem:[%s5 + $0x220] sm:$0xff]
      %v2160 = vld [vmem:[%s5 + $0x228] sm:$0xff]
      %v2161 = vld [vmem:[%s5 + $0x230] sm:$0xff]
      %v2162 = vld [vmem:[%s5 + $0x238] sm:$0xff]
      %v2164 = vsel %vm382, %v2152, 0
      %v2167 = vsel %vm382, %v2153, 0
      %v2170 = vsel %vm382, %v2154, 0
      %2172 = vmatpush.msra.mxu0 0.0
      %2173 = vmatpush.msra.mxu0 0.0
      %2174 = vmatpush.msra.mxu0 0.0
      %2175 = vmatpush.msra.mxu0 0.0
      %2176 = vmatpush.msra.mxu0 0.0
      %2177 = vmatpush.msra.mxu0 0.0
      %2178 = vmatpush.msra.mxu0 0.0
      %2179 = vmatpush.msra.mxu0 0.0
      %2180 = vmatpush.msra.mxu0 %v2162
      %2181 = vmatpush.msra.mxu0 %v2161
      %2182 = vmatpush.msra.mxu0 %v2160
      %2183 = vmatpush.msra.mxu0 %v2159
      %2184 = vmatpush.msra.mxu0 %v2158
      %2185 = vmatpush.msra.mxu0 %v2157
      %2186 = vmatpush.msra.mxu0 %v2156
      %2187 = vmatpush.msra.mxu0 %v2155
      %2188 = vmatmul.f32.gmra.mxu0 %v2164
      %v2189 = vpop.f32.mrf.mxu0
      %v2190 = vadd.f32 0.0, %v2189
      %2191 = vmatmul.f32.gmra.mxu0 %v2167
      %v2192 = vpop.f32.mrf.mxu0
      %v2193 = vadd.f32 0.0, %v2192
      %2194 = vmatmul.f32.gmra.mxu0 %v2170
      %v2195 = vpop.f32.mrf.mxu0
      %v2196 = vadd.f32 0.0, %v2195
      %2197 = vdwg.mxu0
      %v2198 = vadd.f32 %v2149, %v2190
      %v2199 = vadd.f32 %v2150, %v2193
      %v2200 = vadd.f32 %v2151, %v2196
      %2201 = vst [vmem:[#allocation6] sm:$0xff] %v2198
      %2202 = vst [vmem:[#allocation6 + $0x8] sm:$0xff] %v2199
      %2203 = vst [vmem:[#allocation6 + $0x10] sm:$0x3f] %v2200
      %v2204 = vld [vmem:[%s6] sm:$0x1]
      %v2205 = vld [vmem:[#allocation6] ss:$2 sm:$0x3]
      %s2206 = scalar_lea.vmem [#allocation6], 1
      %v2207 = vld [vmem:[%s2206] ss:$2 sm:$0x3]
      %v2208 = vmax.f32 %v2205, %v2207
      %s2209 = scalar_lea.vmem [#allocation6], 6
      %v2210 = vld [vmem:[%s2209] ss:$2 sm:$0x3]
      %s2211 = scalar_lea.vmem [#allocation6], 7
      %v2212 = vld [vmem:[%s2211] ss:$2 sm:$0x3]
      %v2213 = vmax.f32 %v2210, %v2212
      %v2214 = vmax.f32 %v2208, %v2213
      %v2216 = vperm.slane %v2204, 0
      %v2218 = vadd.f32 %v2214, %v2216
      %vm2219 = vcmp.ge.f32.partialorder %v2218, 0.0
      %v2220 = vmul.f32 %v2218, 0.1
      %v2221 = vsel %vm2219, %v2218, %v2220
      %2222 = vst [vmem:[#allocation7 + $0x5] sm:$0x3] %v2221
      %2223 = vst [vmem:[%s363] sm:$0x3] %v2221
      %s2224 = scalar_lea.vmem [#allocation6], 12
      %v2225 = vld [vmem:[%s2224] ss:$2 sm:$0x3]
      %s2226 = scalar_lea.vmem [#allocation6], 13
      %v2227 = vld [vmem:[%s2226] ss:$2 sm:$0x3]
      %v2228 = vmax.f32 %v2225, %v2227
      %s2229 = scalar_lea.vmem [#allocation6], 18
      %v2230 = vld [vmem:[%s2229] ss:$2 sm:$0x3]
      %s2231 = scalar_lea.vmem [#allocation6], 19
      %v2232 = vld [vmem:[%s2231] ss:$2 sm:$0x3]
      %v2233 = vmax.f32 %v2230, %v2232
      %v2234 = vmax.f32 %v2228, %v2233
      %v2235 = vadd.f32 %v2234, %v2216
      %vm2236 = vcmp.ge.f32.partialorder %v2235, 0.0
      %v2237 = vmul.f32 %v2235, 0.1
      %v2238 = vsel %vm2236, %v2235, %v2237
      %2239 = vst [vmem:[#allocation7 + $0x9] sm:$0x3] %v2238
      %2240 = vst [vmem:[%s363 + $0x2] sm:$0x3] %v2238
      %v2241 = vld [vmem:[#allocation7] sm:$0x3f]
      %v2242 = vld [vmem:[%s7] sm:$0xff]
      %v2243 = vld [vmem:[%s7 + $0x8] sm:$0xff]
      %v2244 = vld [vmem:[%s7 + $0x10] sm:$0xff]
      %v2245 = vld [vmem:[%s7 + $0x18] sm:$0xff]
      %v2246 = vld [vmem:[%s7 + $0x20] sm:$0xff]
      %v2247 = vld [vmem:[%s7 + $0x28] sm:$0xff]
      %v2248 = vld [vmem:[%s7 + $0x30] sm:$0xff]
      %v2249 = vld [vmem:[%s7 + $0x38] sm:$0xff]
      %v2250 = vld [vmem:[%s7 + $0x40] sm:$0xff]
      %v2251 = vld [vmem:[%s7 + $0x48] sm:$0xff]
      %v2252 = vld [vmem:[%s7 + $0x50] sm:$0xff]
      %v2253 = vld [vmem:[%s7 + $0x58] sm:$0xff]
      %v2254 = vld [vmem:[%s7 + $0x60] sm:$0xff]
      %v2255 = vld [vmem:[%s7 + $0x68] sm:$0xff]
      %v2256 = vld [vmem:[%s7 + $0x70] sm:$0xff]
      %v2257 = vld [vmem:[%s7 + $0x78] sm:$0xff]
      %v2258 = vld [vmem:[#allocation7 + $0x1] sm:$0x3f]
      %v2259 = vld [vmem:[%s7 + $0x80] sm:$0xff]
      %v2260 = vld [vmem:[%s7 + $0x88] sm:$0xff]
      %v2261 = vld [vmem:[%s7 + $0x90] sm:$0xff]
      %v2262 = vld [vmem:[%s7 + $0x98] sm:$0xff]
      %v2263 = vld [vmem:[%s7 + $0xa0] sm:$0xff]
      %v2264 = vld [vmem:[%s7 + $0xa8] sm:$0xff]
      %v2265 = vld [vmem:[%s7 + $0xb0] sm:$0xff]
      %v2266 = vld [vmem:[%s7 + $0xb8] sm:$0xff]
      %v2267 = vld [vmem:[%s7 + $0xc0] sm:$0xff]
      %v2268 = vld [vmem:[%s7 + $0xc8] sm:$0xff]
      %v2269 = vld [vmem:[%s7 + $0xd0] sm:$0xff]
      %v2270 = vld [vmem:[%s7 + $0xd8] sm:$0xff]
      %v2271 = vld [vmem:[%s7 + $0xe0] sm:$0xff]
      %v2272 = vld [vmem:[%s7 + $0xe8] sm:$0xff]
      %v2273 = vld [vmem:[%s7 + $0xf0] sm:$0xff]
      %v2274 = vld [vmem:[%s7 + $0xf8] sm:$0xff]
      %2275 = vmatpush.msra.mxu0 %v2274
      %2276 = vmatpush.msra.mxu0 %v2273
      %2277 = vmatpush.msra.mxu0 %v2272
      %2278 = vmatpush.msra.mxu0 %v2271
      %2279 = vmatpush.msra.mxu0 %v2270
      %2280 = vmatpush.msra.mxu0 %v2269
      %2281 = vmatpush.msra.mxu0 %v2268
      %2282 = vmatpush.msra.mxu0 %v2267
      %2283 = vmatpush.msra.mxu0 %v2266
      %2284 = vmatpush.msra.mxu0 %v2265
      %2285 = vmatpush.msra.mxu0 %v2264
      %2286 = vmatpush.msra.mxu0 %v2263
      %2287 = vmatpush.msra.mxu0 %v2262
      %2288 = vmatpush.msra.mxu0 %v2261
      %2289 = vmatpush.msra.mxu0 %v2260
      %2290 = vmatpush.msra.mxu0 %v2259
      %2291 = vmatmul.f32.gmra.mxu0 %v2258
      %v2292 = vpop.f32.mrf.mxu0
      %v2293 = vadd.f32 0.0, %v2292
      %2294 = vdwg.mxu0
      %2295 = vmatpush.msra.mxu0 %v2257
      %2296 = vmatpush.msra.mxu0 %v2256
      %2297 = vmatpush.msra.mxu0 %v2255
      %2298 = vmatpush.msra.mxu0 %v2254
      %2299 = vmatpush.msra.mxu0 %v2253
      %2300 = vmatpush.msra.mxu0 %v2252
      %2301 = vmatpush.msra.mxu0 %v2251
      %2302 = vmatpush.msra.mxu0 %v2250
      %2303 = vmatpush.msra.mxu0 %v2249
      %2304 = vmatpush.msra.mxu0 %v2248
      %2305 = vmatpush.msra.mxu0 %v2247
      %2306 = vmatpush.msra.mxu0 %v2246
      %2307 = vmatpush.msra.mxu0 %v2245
      %2308 = vmatpush.msra.mxu0 %v2244
      %2309 = vmatpush.msra.mxu0 %v2243
      %2310 = vmatpush.msra.mxu0 %v2242
      %2311 = vmatmul.f32.gmra.mxu0 %v2241
      %v2312 = vpop.f32.mrf.mxu0
      %v2313 = vadd.f32 %v2293, %v2312
      %2314 = vdwg.mxu0
      %v2315 = vld [vmem:[#allocation7 + $0x2] sm:$0x3f]
      %v2316 = vld [vmem:[%s7 + $0x100] sm:$0xff]
      %v2317 = vld [vmem:[%s7 + $0x108] sm:$0xff]
      %v2318 = vld [vmem:[%s7 + $0x110] sm:$0xff]
      %v2319 = vld [vmem:[%s7 + $0x118] sm:$0xff]
      %v2320 = vld [vmem:[%s7 + $0x120] sm:$0xff]
      %v2321 = vld [vmem:[%s7 + $0x128] sm:$0xff]
      %v2322 = vld [vmem:[%s7 + $0x130] sm:$0xff]
      %v2323 = vld [vmem:[%s7 + $0x138] sm:$0xff]
      %v2324 = vld [vmem:[%s7 + $0x140] sm:$0xff]
      %v2325 = vld [vmem:[%s7 + $0x148] sm:$0xff]
      %v2326 = vld [vmem:[%s7 + $0x150] sm:$0xff]
      %v2327 = vld [vmem:[%s7 + $0x158] sm:$0xff]
      %v2328 = vld [vmem:[%s7 + $0x160] sm:$0xff]
      %v2329 = vld [vmem:[%s7 + $0x168] sm:$0xff]
      %v2330 = vld [vmem:[%s7 + $0x170] sm:$0xff]
      %v2331 = vld [vmem:[%s7 + $0x178] sm:$0xff]
      %2332 = vmatpush.msra.mxu0 %v2331
      %2333 = vmatpush.msra.mxu0 %v2330
      %2334 = vmatpush.msra.mxu0 %v2329
      %2335 = vmatpush.msra.mxu0 %v2328
      %2336 = vmatpush.msra.mxu0 %v2327
      %2337 = vmatpush.msra.mxu0 %v2326
      %2338 = vmatpush.msra.mxu0 %v2325
      %2339 = vmatpush.msra.mxu0 %v2324
      %2340 = vmatpush.msra.mxu0 %v2323
      %2341 = vmatpush.msra.mxu0 %v2322
      %2342 = vmatpush.msra.mxu0 %v2321
      %2343 = vmatpush.msra.mxu0 %v2320
      %2344 = vmatpush.msra.mxu0 %v2319
      %2345 = vmatpush.msra.mxu0 %v2318
      %2346 = vmatpush.msra.mxu0 %v2317
      %2347 = vmatpush.msra.mxu0 %v2316
      %2348 = vmatmul.f32.gmra.mxu0 %v2315
      %v2349 = vpop.f32.mrf.mxu0
      %v2350 = vadd.f32 0.0, %v2349
      %2351 = vdwg.mxu0
      %v2352 = vadd.f32 %v2313, %v2350
      %v2353 = vld [vmem:[#allocation7 + $0x4] sm:$0x3f]
      %v2354 = vld [vmem:[%s7 + $0x180] sm:$0xff]
      %v2355 = vld [vmem:[%s7 + $0x188] sm:$0xff]
      %v2356 = vld [vmem:[%s7 + $0x190] sm:$0xff]
      %v2357 = vld [vmem:[%s7 + $0x198] sm:$0xff]
      %v2358 = vld [vmem:[%s7 + $0x1a0] sm:$0xff]
      %v2359 = vld [vmem:[%s7 + $0x1a8] sm:$0xff]
      %v2360 = vld [vmem:[%s7 + $0x1b0] sm:$0xff]
      %v2361 = vld [vmem:[%s7 + $0x1b8] sm:$0xff]
      %v2362 = vld [vmem:[%s7 + $0x1c0] sm:$0xff]
      %v2363 = vld [vmem:[%s7 + $0x1c8] sm:$0xff]
      %v2364 = vld [vmem:[%s7 + $0x1d0] sm:$0xff]
      %v2365 = vld [vmem:[%s7 + $0x1d8] sm:$0xff]
      %v2366 = vld [vmem:[%s7 + $0x1e0] sm:$0xff]
      %v2367 = vld [vmem:[%s7 + $0x1e8] sm:$0xff]
      %v2368 = vld [vmem:[%s7 + $0x1f0] sm:$0xff]
      %v2369 = vld [vmem:[%s7 + $0x1f8] sm:$0xff]
      %2370 = vmatpush.msra.mxu0 %v2369
      %2371 = vmatpush.msra.mxu0 %v2368
      %2372 = vmatpush.msra.mxu0 %v2367
      %2373 = vmatpush.msra.mxu0 %v2366
      %2374 = vmatpush.msra.mxu0 %v2365
      %2375 = vmatpush.msra.mxu0 %v2364
      %2376 = vmatpush.msra.mxu0 %v2363
      %2377 = vmatpush.msra.mxu0 %v2362
      %2378 = vmatpush.msra.mxu0 %v2361
      %2379 = vmatpush.msra.mxu0 %v2360
      %2380 = vmatpush.msra.mxu0 %v2359
      %2381 = vmatpush.msra.mxu0 %v2358
      %2382 = vmatpush.msra.mxu0 %v2357
      %2383 = vmatpush.msra.mxu0 %v2356
      %2384 = vmatpush.msra.mxu0 %v2355
      %2385 = vmatpush.msra.mxu0 %v2354
      %2386 = vmatmul.f32.gmra.mxu0 %v2353
      %v2387 = vpop.f32.mrf.mxu0
      %v2388 = vadd.f32 0.0, %v2387
      %2389 = vdwg.mxu0
      %v2390 = vadd.f32 %v2352, %v2388
      %v2391 = vld [vmem:[#allocation7 + $0x5] sm:$0x3f]
      %v2392 = vld [vmem:[%s7 + $0x200] sm:$0xff]
      %v2393 = vld [vmem:[%s7 + $0x208] sm:$0xff]
      %v2394 = vld [vmem:[%s7 + $0x210] sm:$0xff]
      %v2395 = vld [vmem:[%s7 + $0x218] sm:$0xff]
      %v2396 = vld [vmem:[%s7 + $0x220] sm:$0xff]
      %v2397 = vld [vmem:[%s7 + $0x228] sm:$0xff]
      %v2398 = vld [vmem:[%s7 + $0x230] sm:$0xff]
      %v2399 = vld [vmem:[%s7 + $0x238] sm:$0xff]
      %v2400 = vld [vmem:[%s7 + $0x240] sm:$0xff]
      %v2401 = vld [vmem:[%s7 + $0x248] sm:$0xff]
      %v2402 = vld [vmem:[%s7 + $0x250] sm:$0xff]
      %v2403 = vld [vmem:[%s7 + $0x258] sm:$0xff]
      %v2404 = vld [vmem:[%s7 + $0x260] sm:$0xff]
      %v2405 = vld [vmem:[%s7 + $0x268] sm:$0xff]
      %v2406 = vld [vmem:[%s7 + $0x270] sm:$0xff]
      %v2407 = vld [vmem:[%s7 + $0x278] sm:$0xff]
      %2408 = vmatpush.msra.mxu0 %v2407
      %2409 = vmatpush.msra.mxu0 %v2406
      %2410 = vmatpush.msra.mxu0 %v2405
      %2411 = vmatpush.msra.mxu0 %v2404
      %2412 = vmatpush.msra.mxu0 %v2403
      %2413 = vmatpush.msra.mxu0 %v2402
      %2414 = vmatpush.msra.mxu0 %v2401
      %2415 = vmatpush.msra.mxu0 %v2400
      %2416 = vmatpush.msra.mxu0 %v2399
      %2417 = vmatpush.msra.mxu0 %v2398
      %2418 = vmatpush.msra.mxu0 %v2397
      %2419 = vmatpush.msra.mxu0 %v2396
      %2420 = vmatpush.msra.mxu0 %v2395
      %2421 = vmatpush.msra.mxu0 %v2394
      %2422 = vmatpush.msra.mxu0 %v2393
      %2423 = vmatpush.msra.mxu0 %v2392
      %2424 = vmatmul.f32.gmra.mxu0 %v2391
      %v2425 = vpop.f32.mrf.mxu0
      %v2426 = vadd.f32 0.0, %v2425
      %2427 = vdwg.mxu0
      %v2428 = vadd.f32 %v2390, %v2426
      %v2429 = vld [vmem:[#allocation7 + $0x6] sm:$0x3f]
      %v2430 = vld [vmem:[%s7 + $0x280] sm:$0xff]
      %v2431 = vld [vmem:[%s7 + $0x288] sm:$0xff]
      %v2432 = vld [vmem:[%s7 + $0x290] sm:$0xff]
      %v2433 = vld [vmem:[%s7 + $0x298] sm:$0xff]
      %v2434 = vld [vmem:[%s7 + $0x2a0] sm:$0xff]
      %v2435 = vld [vmem:[%s7 + $0x2a8] sm:$0xff]
      %v2436 = vld [vmem:[%s7 + $0x2b0] sm:$0xff]
      %v2437 = vld [vmem:[%s7 + $0x2b8] sm:$0xff]
      %v2438 = vld [vmem:[%s7 + $0x2c0] sm:$0xff]
      %v2439 = vld [vmem:[%s7 + $0x2c8] sm:$0xff]
      %v2440 = vld [vmem:[%s7 + $0x2d0] sm:$0xff]
      %v2441 = vld [vmem:[%s7 + $0x2d8] sm:$0xff]
      %v2442 = vld [vmem:[%s7 + $0x2e0] sm:$0xff]
      %v2443 = vld [vmem:[%s7 + $0x2e8] sm:$0xff]
      %v2444 = vld [vmem:[%s7 + $0x2f0] sm:$0xff]
      %v2445 = vld [vmem:[%s7 + $0x2f8] sm:$0xff]
      %2446 = vmatpush.msra.mxu0 %v2445
      %2447 = vmatpush.msra.mxu0 %v2444
      %2448 = vmatpush.msra.mxu0 %v2443
      %2449 = vmatpush.msra.mxu0 %v2442
      %2450 = vmatpush.msra.mxu0 %v2441
      %2451 = vmatpush.msra.mxu0 %v2440
      %2452 = vmatpush.msra.mxu0 %v2439
      %2453 = vmatpush.msra.mxu0 %v2438
      %2454 = vmatpush.msra.mxu0 %v2437
      %2455 = vmatpush.msra.mxu0 %v2436
      %2456 = vmatpush.msra.mxu0 %v2435
      %2457 = vmatpush.msra.mxu0 %v2434
      %2458 = vmatpush.msra.mxu0 %v2433
      %2459 = vmatpush.msra.mxu0 %v2432
      %2460 = vmatpush.msra.mxu0 %v2431
      %2461 = vmatpush.msra.mxu0 %v2430
      %2462 = vmatmul.f32.gmra.mxu0 %v2429
      %v2463 = vpop.f32.mrf.mxu0
      %v2464 = vadd.f32 0.0, %v2463
      %2465 = vdwg.mxu0
      %v2466 = vadd.f32 %v2428, %v2464
      %v2467 = vld [vmem:[#allocation7 + $0x8] sm:$0x3f]
      %v2468 = vld [vmem:[%s7 + $0x300] sm:$0xff]
      %v2469 = vld [vmem:[%s7 + $0x308] sm:$0xff]
      %v2470 = vld [vmem:[%s7 + $0x310] sm:$0xff]
      %v2471 = vld [vmem:[%s7 + $0x318] sm:$0xff]
      %v2472 = vld [vmem:[%s7 + $0x320] sm:$0xff]
      %v2473 = vld [vmem:[%s7 + $0x328] sm:$0xff]
      %v2474 = vld [vmem:[%s7 + $0x330] sm:$0xff]
      %v2475 = vld [vmem:[%s7 + $0x338] sm:$0xff]
      %v2476 = vld [vmem:[%s7 + $0x340] sm:$0xff]
      %v2477 = vld [vmem:[%s7 + $0x348] sm:$0xff]
      %v2478 = vld [vmem:[%s7 + $0x350] sm:$0xff]
      %v2479 = vld [vmem:[%s7 + $0x358] sm:$0xff]
      %v2480 = vld [vmem:[%s7 + $0x360] sm:$0xff]
      %v2481 = vld [vmem:[%s7 + $0x368] sm:$0xff]
      %v2482 = vld [vmem:[%s7 + $0x370] sm:$0xff]
      %v2483 = vld [vmem:[%s7 + $0x378] sm:$0xff]
      %2484 = vmatpush.msra.mxu0 %v2483
      %2485 = vmatpush.msra.mxu0 %v2482
      %2486 = vmatpush.msra.mxu0 %v2481
      %2487 = vmatpush.msra.mxu0 %v2480
      %2488 = vmatpush.msra.mxu0 %v2479
      %2489 = vmatpush.msra.mxu0 %v2478
      %2490 = vmatpush.msra.mxu0 %v2477
      %2491 = vmatpush.msra.mxu0 %v2476
      %2492 = vmatpush.msra.mxu0 %v2475
      %2493 = vmatpush.msra.mxu0 %v2474
      %2494 = vmatpush.msra.mxu0 %v2473
      %2495 = vmatpush.msra.mxu0 %v2472
      %2496 = vmatpush.msra.mxu0 %v2471
      %2497 = vmatpush.msra.mxu0 %v2470
      %2498 = vmatpush.msra.mxu0 %v2469
      %2499 = vmatpush.msra.mxu0 %v2468
      %2500 = vmatmul.f32.gmra.mxu0 %v2467
      %v2501 = vpop.f32.mrf.mxu0
      %v2502 = vadd.f32 0.0, %v2501
      %2503 = vdwg.mxu0
      %v2504 = vadd.f32 %v2466, %v2502
      %v2505 = vld [vmem:[#allocation7 + $0x9] sm:$0x3f]
      %v2506 = vld [vmem:[%s7 + $0x380] sm:$0xff]
      %v2507 = vld [vmem:[%s7 + $0x388] sm:$0xff]
      %v2508 = vld [vmem:[%s7 + $0x390] sm:$0xff]
      %v2509 = vld [vmem:[%s7 + $0x398] sm:$0xff]
      %v2510 = vld [vmem:[%s7 + $0x3a0] sm:$0xff]
      %v2511 = vld [vmem:[%s7 + $0x3a8] sm:$0xff]
      %v2512 = vld [vmem:[%s7 + $0x3b0] sm:$0xff]
      %v2513 = vld [vmem:[%s7 + $0x3b8] sm:$0xff]
      %v2514 = vld [vmem:[%s7 + $0x3c0] sm:$0xff]
      %v2515 = vld [vmem:[%s7 + $0x3c8] sm:$0xff]
      %v2516 = vld [vmem:[%s7 + $0x3d0] sm:$0xff]
      %v2517 = vld [vmem:[%s7 + $0x3d8] sm:$0xff]
      %v2518 = vld [vmem:[%s7 + $0x3e0] sm:$0xff]
      %v2519 = vld [vmem:[%s7 + $0x3e8] sm:$0xff]
      %v2520 = vld [vmem:[%s7 + $0x3f0] sm:$0xff]
      %v2521 = vld [vmem:[%s7 + $0x3f8] sm:$0xff]
      %2522 = vmatpush.msra.mxu0 %v2521
      %2523 = vmatpush.msra.mxu0 %v2520
      %2524 = vmatpush.msra.mxu0 %v2519
      %2525 = vmatpush.msra.mxu0 %v2518
      %2526 = vmatpush.msra.mxu0 %v2517
      %2527 = vmatpush.msra.mxu0 %v2516
      %2528 = vmatpush.msra.mxu0 %v2515
      %2529 = vmatpush.msra.mxu0 %v2514
      %2530 = vmatpush.msra.mxu0 %v2513
      %2531 = vmatpush.msra.mxu0 %v2512
      %2532 = vmatpush.msra.mxu0 %v2511
      %2533 = vmatpush.msra.mxu0 %v2510
      %2534 = vmatpush.msra.mxu0 %v2509
      %2535 = vmatpush.msra.mxu0 %v2508
      %2536 = vmatpush.msra.mxu0 %v2507
      %2537 = vmatpush.msra.mxu0 %v2506
      %2538 = vmatmul.f32.gmra.mxu0 %v2505
      %v2539 = vpop.f32.mrf.mxu0
      %v2540 = vadd.f32 0.0, %v2539
      %2541 = vdwg.mxu0
      %v2542 = vadd.f32 %v2504, %v2540
      %v2543 = vld [vmem:[#allocation7 + $0xa] sm:$0x3f]
      %v2544 = vld [vmem:[%s7 + $0x400] sm:$0xff]
      %v2545 = vld [vmem:[%s7 + $0x408] sm:$0xff]
      %v2546 = vld [vmem:[%s7 + $0x410] sm:$0xff]
      %v2547 = vld [vmem:[%s7 + $0x418] sm:$0xff]
      %v2548 = vld [vmem:[%s7 + $0x420] sm:$0xff]
      %v2549 = vld [vmem:[%s7 + $0x428] sm:$0xff]
      %v2550 = vld [vmem:[%s7 + $0x430] sm:$0xff]
      %v2551 = vld [vmem:[%s7 + $0x438] sm:$0xff]
      %v2552 = vld [vmem:[%s7 + $0x440] sm:$0xff]
      %v2553 = vld [vmem:[%s7 + $0x448] sm:$0xff]
      %v2554 = vld [vmem:[%s7 + $0x450] sm:$0xff]
      %v2555 = vld [vmem:[%s7 + $0x458] sm:$0xff]
      %v2556 = vld [vmem:[%s7 + $0x460] sm:$0xff]
      %v2557 = vld [vmem:[%s7 + $0x468] sm:$0xff]
      %v2558 = vld [vmem:[%s7 + $0x470] sm:$0xff]
      %v2559 = vld [vmem:[%s7 + $0x478] sm:$0xff]
      %2560 = vmatpush.msra.mxu0 %v2559
      %2561 = vmatpush.msra.mxu0 %v2558
      %2562 = vmatpush.msra.mxu0 %v2557
      %2563 = vmatpush.msra.mxu0 %v2556
      %2564 = vmatpush.msra.mxu0 %v2555
      %2565 = vmatpush.msra.mxu0 %v2554
      %2566 = vmatpush.msra.mxu0 %v2553
      %2567 = vmatpush.msra.mxu0 %v2552
      %2568 = vmatpush.msra.mxu0 %v2551
      %2569 = vmatpush.msra.mxu0 %v2550
      %2570 = vmatpush.msra.mxu0 %v2549
      %2571 = vmatpush.msra.mxu0 %v2548
      %2572 = vmatpush.msra.mxu0 %v2547
      %2573 = vmatpush.msra.mxu0 %v2546
      %2574 = vmatpush.msra.mxu0 %v2545
      %2575 = vmatpush.msra.mxu0 %v2544
      %2576 = vmatmul.f32.gmra.mxu0 %v2543
      %v2577 = vpop.f32.mrf.mxu0
      %v2578 = vadd.f32 0.0, %v2577
      %2579 = vdwg.mxu0
      %v2580 = vadd.f32 %v2542, %v2578
      %2581 = vst [vmem:[#allocation8] sm:$0x3f] %v2580
      %v2582 = vld [vmem:[%s8] sm:$0x1]
      %v2583 = vld [vmem:[#allocation8] sm:$0x1]
      %v2584 = vld [vmem:[#allocation8 + $0x1] sm:$0x1]
      %v2585 = vmax.f32 %v2583, %v2584
      %v2586 = vld [vmem:[#allocation8 + $0x4] sm:$0x1]
      %v2587 = vld [vmem:[#allocation8 + $0x5] sm:$0x1]
      %v2588 = vmax.f32 %v2586, %v2587
      %v2589 = vmax.f32 %v2585, %v2588
      %v2590 = vadd.f32 %v2589, %v2582
      %2591 = vst [vmem:[%s366] sm:$0x1] %v2590
      %p2592 = scmp.lt.s32.totalorder %s22, 1
      %s2593 = scalar_select %p2592, %s22, 1
      %s2594 = smul.addr %s2593, 4
      %s2595 = scalar_lea.vmem %s9, %s2594
      %p2596 = scmp.lt.s32.totalorder %s22, 1
      %s2597 = scalar_select %p2596, %s22, 1
      %s2598 = scalar_lea.vmem %s10, %s2597
      // Predicated region
      $region57: #{r2d2_embedding.1} parent=55 // pred_check
        %p2599 = pneg %p234
      $region58: #{r2d2_embedding.1} parent=55 // pred_check_branch
        %2601 = sbr.rel (%p2599) target = $region60
      $region59: #{r2d2_embedding.1} parent=55 // pred_region
        _
      $region60: #{r2d2_embedding.1} parent=55 // pred_fallthru
        _
      // Predicated region
      $region61: #{r2d2_embedding.1} parent=55 // pred_check
        %p2602 = pneg %p260
      $region62: #{r2d2_embedding.1} parent=55 // pred_check_branch
        %2604 = sbr.rel (%p2602) target = $region64
      $region63: #{r2d2_embedding.1} parent=55 // pred_region
        _
      $region64: #{r2d2_embedding.1} parent=55 // pred_fallthru
        _
    $region56: #{r2d2_embedding.1} parent=5 // pred_fallthru
      _
    %p2605 = scmp.le.s32.totalorder 2, %s17
    // Predicated region
    $region65: #{r2d2_embedding.1} parent=5 // pred_check
      %p2606 = pneg %p2605
    $region66: #{r2d2_embedding.1} parent=5 // pred_check_branch
      %2608 = sbr.rel (%p2606) target = $region68
    $region67: #{r2d2_embedding.1} parent=5 // pred_region
      %s2609 = ssub.s32 %s17, 2
      // Predicated region
      $region69: #{r2d2_embedding.1} parent=67 // pred_check
        %p2610 = pneg %p240
      $region70: #{r2d2_embedding.1} parent=67 // pred_check_branch
        %2612 = sbr.rel (%p2610) target = $region72
      $region71: #{r2d2_embedding.1} parent=67 // pred_region
        %p2613 = scmp.lt.s32.totalorder %s23, 1
        %s2614 = scalar_select %p2613, %s23, 1
        %s2615 = smul.addr %s2614, 4
        %s2616 = scalar_lea.vmem %s9, %s2615
      $region72: #{r2d2_embedding.1} parent=67 // pred_fallthru
        _
      // Predicated region
      $region73: #{r2d2_embedding.1} parent=67 // pred_check
        %p2617 = pneg %p266
      $region74: #{r2d2_embedding.1} parent=67 // pred_check_branch
        %2619 = sbr.rel (%p2617) target = $region76
      $region75: #{r2d2_embedding.1} parent=67 // pred_region
        %p2620 = scmp.lt.s32.totalorder %s23, 1
        %s2621 = scalar_select %p2620, %s23, 1
        %s2622 = scalar_lea.vmem %s10, %s2621
      $region76: #{r2d2_embedding.1} parent=67 // pred_fallthru
        _
    $region68: #{r2d2_embedding.1} parent=5 // pred_fallthru
      _
  $region6: #{r2d2_embedding.1} parent=0 // loop_footer
    %s21 = sadd.s32 1, %s17
  $region7: #{r2d2_embedding.1} parent=0 // loop_footer_branch
    %16 = sbr.rel target = $region3
  $region8: #{r2d2_embedding.1} parent=0 // loop_exit
    _

</llo_original>
